<compile_context>
chip_gen: v6e
topology: v6e:2x2x1
jax: 0.10.0
libtpu: 0.0.40
codegen_flags: <defaults>
</compile_context>

<pallas_src>
from functools import partial

import jax
import jax.numpy as jnp
from jax.experimental import pallas as pl
from jax.experimental.pallas import tpu as pltpu


# ----------------------------- in-kernel helpers ---------------------------- #

def _layernorm(x, gamma, beta):
    mean = jnp.mean(x, axis=-1, keepdims=True)
    var = jnp.mean((x - mean) ** 2, axis=-1, keepdims=True)
    return (x - mean) * jax.lax.rsqrt(var + 1e-5) * gamma + beta


def _attend(q, k, v, bias, ctx_ref, *, n_heads, scale):
    """Per-head softmax attention; writes the (Sq, D) context into ctx_ref (f32 VMEM).

    q: (Sq, D) f32, k/v: (Sk, D) f32, bias: (Sq, Sk) additive mask bias (0 or -1e9),
    computed ONCE by the caller (hoisted out of the head loop).
    The output projection is done by the caller as a single full-K matmul on ctx_ref.
    """
    D = q.shape[-1]
    dh = D // n_heads
    qb = q.astype(jnp.bfloat16)
    kb = k.astype(jnp.bfloat16)
    vb = v.astype(jnp.bfloat16)
    for h in range(n_heads):
        sl = slice(h * dh, (h + 1) * dh)
        # contract on the last axes directly (no explicit K transpose in VMEM)
        s = jax.lax.dot_general(
            qb[:, sl], kb[:, sl], (((1,), (1,)), ((), ())),
            preferred_element_type=jnp.float32) * scale + bias
        s = s - jnp.max(s, axis=-1, keepdims=True)
        p = jnp.exp(s)
        p = p / jnp.sum(p, axis=-1, keepdims=True)          # exact normalization (f32)
        ctx_ref[:, sl] = jnp.dot(p.astype(jnp.bfloat16), vb[:, sl],
                                 preferred_element_type=jnp.float32)


# --------------------------------- fused kernel ------------------------------ #

def decoder_block_kernel(
        x_ref, enc_ref, dmask_ref, emask_ref,
        ln1g_ref, ln1b_ref, wqkv_ref, bqkv_ref, wo1_ref, bo1_ref,
        ln2g_ref, ln2b_ref, wq2_ref, bq2_ref, wkv2_ref, bkv2_ref, wo2_ref, bo2_ref,
        ln3g_ref, ln3b_ref, w1_ref, b1_ref, w2_ref, b2_ref,
        o_ref, ctx_ref, *, n_heads, scale):
    x = x_ref[0]                                            # (Sq, D) f32
    D = x.shape[-1]

    # additive mask biases -- computed once per grid step, reused by every head
    dbias = jnp.where(dmask_ref[0] == 0.0, -1e9, 0.0)       # (Sq, Sq)
    ebias = jnp.where(emask_ref[0] == 0.0, -1e9, 0.0)       # (Sq, Sk)

    # ---- x = x + self_mha(LN1(x), dec_mask) ---------------------------------
    xn = _layernorm(x, ln1g_ref[...], ln1b_ref[...])
    qkv = jnp.dot(xn.astype(jnp.bfloat16), wqkv_ref[...],
                  preferred_element_type=jnp.float32) + bqkv_ref[...]
    _attend(qkv[:, :D], qkv[:, D:2 * D], qkv[:, 2 * D:], dbias, ctx_ref,
            n_heads=n_heads, scale=scale)
    x = x + jnp.dot(ctx_ref[...].astype(jnp.bfloat16), wo1_ref[...],
                    preferred_element_type=jnp.float32) + bo1_ref[...]

    # ---- x = x + cross_mha(LN2(x), enc_x, enc_x, enc_mask) ------------------
    xn = _layernorm(x, ln2g_ref[...], ln2b_ref[...])
    q = jnp.dot(xn.astype(jnp.bfloat16), wq2_ref[...],
                preferred_element_type=jnp.float32) + bq2_ref[...]
    e = enc_ref[0]                                          # (Sk, D) f32
    kv = jnp.dot(e.astype(jnp.bfloat16), wkv2_ref[...],
                 preferred_element_type=jnp.float32) + bkv2_ref[...]
    _attend(q, kv[:, :D], kv[:, D:], ebias, ctx_ref, n_heads=n_heads, scale=scale)
    x = x + jnp.dot(ctx_ref[...].astype(jnp.bfloat16), wo2_ref[...],
                    preferred_element_type=jnp.float32) + bo2_ref[...]

    # ---- x = x + ffw(LN3(x)) -------------------------------------------------
    xn = _layernorm(x, ln3g_ref[...], ln3b_ref[...])
    h = jnp.dot(xn.astype(jnp.bfloat16), w1_ref[...],
                preferred_element_type=jnp.float32) + b1_ref[...]
    h = jnp.maximum(h, 0.0)                                 # ReLU
    x = x + jnp.dot(h.astype(jnp.bfloat16), w2_ref[...],
                    preferred_element_type=jnp.float32) + b2_ref[...]

    o_ref[0] = x


# ----------------------------------- wrapper --------------------------------- #

def decoder_block(x, dec_mask, enc_x, enc_mask, kp, n_heads):
    """Fused pre-norm decoder block. `kp` = prepared (fused/bf16) kernel params."""
    B, Sq, D = x.shape
    Sk = enc_x.shape[1]
    d_ff = kp["w1"].shape[1]
    dh = D // n_heads
    scale = 1.0 / (dh ** 0.5)

    dm = dec_mask.reshape(B, Sq, Sq)       # drop the broadcast head axis
    em = enc_mask.reshape(B, Sq, Sk)

    const2 = lambda b: (0, 0)              # whole-weight blocks, resident every step

    return pl.pallas_call(
        partial(decoder_block_kernel, n_heads=n_heads, scale=scale),
        out_shape=jax.ShapeDtypeStruct((B, Sq, D), jnp.float32),
        grid=(B,),
        in_specs=[
            pl.BlockSpec((1, Sq, D), lambda b: (b, 0, 0)),     # x
            pl.BlockSpec((1, Sk, D), lambda b: (b, 0, 0)),     # enc_x
            pl.BlockSpec((1, Sq, Sq), lambda b: (b, 0, 0)),    # dec mask
            pl.BlockSpec((1, Sq, Sk), lambda b: (b, 0, 0)),    # enc mask
            pl.BlockSpec((1, D), const2),                      # ln1 gamma
            pl.BlockSpec((1, D), const2),                      # ln1 beta
            pl.BlockSpec((D, 3 * D), const2),                  # fused Wqkv  (bf16)
            pl.BlockSpec((1, 3 * D), const2),                  # fused bqkv  (f32)
            pl.BlockSpec((D, D), const2),                      # self Wo     (bf16)
            pl.BlockSpec((1, D), const2),                      # self bo
            pl.BlockSpec((1, D), const2),                      # ln2 gamma
            pl.BlockSpec((1, D), const2),                      # ln2 beta
            pl.BlockSpec((D, D), const2),                      # cross Wq    (bf16)
            pl.BlockSpec((1, D), const2),                      # cross bq
            pl.BlockSpec((D, 2 * D), const2),                  # fused Wkv   (bf16)
            pl.BlockSpec((1, 2 * D), const2),                  # fused bkv
            pl.BlockSpec((D, D), const2),                      # cross Wo    (bf16)
            pl.BlockSpec((1, D), const2),                      # cross bo
            pl.BlockSpec((1, D), const2),                      # ln3 gamma
            pl.BlockSpec((1, D), const2),                      # ln3 beta
            pl.BlockSpec((D, d_ff), const2),                   # W1          (bf16)
            pl.BlockSpec((1, d_ff), const2),                   # b1
            pl.BlockSpec((d_ff, D), const2),                   # W2          (bf16)
            pl.BlockSpec((1, D), const2),                      # b2
        ],
        out_specs=pl.BlockSpec((1, Sq, D), lambda b: (b, 0, 0)),
        scratch_shapes=[pltpu.VMEM((Sq, D), jnp.float32)],     # per-head context buffer
        compiler_params=pltpu.CompilerParams(
            dimension_semantics=("parallel",),
            vmem_limit_bytes=48 * 1024 * 1024),
    )(x, enc_x, dm, em,
      kp["ln1_g"], kp["ln1_b"], kp["wqkv"], kp["bqkv"], kp["wo1"], kp["bo1"],
      kp["ln2_g"], kp["ln2_b"], kp["wq2"], kp["bq2"], kp["wkv2"], kp["bkv2"],
      kp["wo2"], kp["bo2"],
      kp["ln3_g"], kp["ln3_b"], kp["w1"], kp["b1"], kp["w2"], kp["b2"])


def prepare_params(params):
    """One-time parameter prep: fuse QKV / KV weights, cast matmul weights to bf16,
    reshape vectors to (1, dim) for lane-major VMEM layout. Biases/LN stay f32."""
    ps, pc, pf = params["self_mha"], params["cross_mha"], params["ffw"]
    bf = jnp.bfloat16

    def row(v):
        return v.reshape(1, -1).astype(jnp.float32)

    return {
        "ln1_g": row(params["ln1_g"]), "ln1_b": row(params["ln1_b"]),
        "wqkv": jnp.concatenate([ps["wq"], ps["wk"], ps["wv"]], axis=1).astype(bf),
        "bqkv": row(jnp.concatenate([ps["bq"], ps["bk"], ps["bv"]])),
        "wo1": ps["wo"].astype(bf), "bo1": row(ps["bo"]),
        "ln2_g": row(params["ln2_g"]), "ln2_b": row(params["ln2_b"]),
        "wq2": pc["wq"].astype(bf), "bq2": row(pc["bq"]),
        "wkv2": jnp.concatenate([pc["wk"], pc["wv"]], axis=1).astype(bf),
        "bkv2": row(jnp.concatenate([pc["bk"], pc["bv"]])),
        "wo2": pc["wo"].astype(bf), "bo2": row(pc["bo"]),
        "ln3_g": row(params["ln3_g"]), "ln3_b": row(params["ln3_b"]),
        "w1": pf["w1"].astype(bf), "b1": row(pf["b1"]),
        "w2": pf["w2"].astype(bf), "b2": row(pf["b2"]),
    }


# ------------------------------ pure-JAX reference --------------------------- #

def _ref_ln(x, g, b):
    m = x.mean(-1, keepdims=True)
    v = ((x - m) ** 2).mean(-1, keepdims=True)
    return (x - m) / jnp.sqrt(v + 1e-5) * g + b


def _ref_mha(q_in, k_in, v_in, mask, p, n_heads):
    B, Sq, D = q_in.shape
    Sk = k_in.shape[1]
    dh = D // n_heads
    q = (q_in @ p["wq"] + p["bq"]).reshape(B, Sq, n_heads, dh).transpose(0, 2, 1, 3)
    k = (k_in @ p["wk"] + p["bk"]).reshape(B, Sk, n_heads, dh).transpose(0, 2, 1, 3)
    v = (v_in @ p["wv"] + p["bv"]).reshape(B, Sk, n_heads, dh).transpose(0, 2, 1, 3)
    s = jnp.einsum("bhqd,bhkd->bhqk", q, k) / (dh ** 0.5)
    s = jnp.where(mask == 0.0, -1e9, s)
    a = jax.nn.softmax(s, axis=-1)
    o = jnp.einsum("bhqk,bhkd->bhqd", a, v).transpose(0, 2, 1, 3).reshape(B, Sq, D)
    return o @ p["wo"] + p["bo"]


def _ref_block(x, dec_mask, enc_x, enc_mask, p, n_heads):
    xn = _ref_ln(x, p["ln1_g"], p["ln1_b"])
    x = x + _ref_mha(xn, xn, xn, dec_mask, p["self_mha"], n_heads)
    xn = _ref_ln(x, p["ln2_g"], p["ln2_b"])
    x = x + _ref_mha(xn, enc_x, enc_x, enc_mask, p["cross_mha"], n_heads)
    xn = _ref_ln(x, p["ln3_g"], p["ln3_b"])
    h = jnp.maximum(xn @ p["ffw"]["w1"] + p["ffw"]["b1"], 0.0)
    return x + (h @ p["ffw"]["w2"] + p["ffw"]["b2"])


# ------------------------------------ main ----------------------------------- #

def _init_params(key, D, H, d_ff):
    ks = jax.random.split(key, 4)

    def lin(k, din, dout):
        return 0.05 * jax.random.normal(k, (din, dout), jnp.float32)

    def mha_params(ki):
        kk = jax.random.split(ki, 4)
        return {
            "wq": lin(kk[0], D, D), "bq": jnp.zeros((D,), jnp.float32),
            "wk": lin(kk[1], D, D), "bk": jnp.zeros((D,), jnp.float32),
            "wv": lin(kk[2], D, D), "bv": jnp.zeros((D,), jnp.float32),
            "wo": lin(kk[3], D, D), "bo": jnp.zeros((D,), jnp.float32),
        }

    return {
        "self_mha": mha_params(ks[0]),
        "cross_mha": mha_params(ks[1]),
        "ffw": {
            "w1": lin(ks[2], D, d_ff), "b1": jnp.zeros((d_ff,), jnp.float32),
            "w2": lin(ks[3], d_ff, D), "b2": jnp.zeros((D,), jnp.float32),
        },
        "ln1_g": jnp.ones((D,), jnp.float32), "ln1_b": jnp.zeros((D,), jnp.float32),
        "ln2_g": jnp.ones((D,), jnp.float32), "ln2_b": jnp.zeros((D,), jnp.float32),
        "ln3_g": jnp.ones((D,), jnp.float32), "ln3_b": jnp.zeros((D,), jnp.float32),
    }


if __name__ == "__main__":
    B, S_dec, S_enc, D, H, d_ff = 2, 8, 16, 32, 4, 64

    key = jax.random.PRNGKey(0)
    k_x, k_e, k_p = jax.random.split(key, 3)

    x = jax.random.normal(k_x, (B, S_dec, D), jnp.float32)
    enc_x = jax.random.normal(k_e, (B, S_enc, D), jnp.float32)

    # causal decoder self-attention mask, full cross-attention mask
    dec_mask = jnp.broadcast_to(
        jnp.tril(jnp.ones((S_dec, S_dec), jnp.float32))[None, None],
        (B, 1, S_dec, S_dec))
    enc_mask = jnp.ones((B, 1, S_dec, S_enc), jnp.float32)

    params = _init_params(k_p, D, H, d_ff)
    kparams = prepare_params(params)       # one-time weight fusion + bf16 cast

    run = jax.jit(decoder_block, static_argnames=("n_heads",))
    out = run(x, dec_mask, enc_x, enc_mask, kparams, n_heads=H)
    out = jax.block_until_ready(out)

    ref = _ref_block(x, dec_mask, enc_x, enc_mask, params, H)
    assert out.shape == (B, S_dec, D)
    # tolerance reflects bf16 MXU operands (f32 accumulation) vs the f32 reference
    assert jnp.allclose(out, ref, atol=1e-2, rtol=1e-2), "mismatch vs reference"

    print("KERNEL_OK")
</pallas_src>

<mosaic_0001>
module attributes {stable_mosaic.version = 11 : i64} {
  func.func @decoder_block_kernel(%arg0: i32, %arg1: memref<1x8x32xf32, #tpu.memory_space<vmem>>, %arg2: memref<1x16x32xf32, #tpu.memory_space<vmem>>, %arg3: memref<1x8x8xf32, #tpu.memory_space<vmem>>, %arg4: memref<1x8x16xf32, #tpu.memory_space<vmem>>, %arg5: memref<1x32xf32, #tpu.memory_space<vmem>>, %arg6: memref<1x32xf32, #tpu.memory_space<vmem>>, %arg7: memref<32x96xbf16, #tpu.memory_space<vmem>>, %arg8: memref<1x96xf32, #tpu.memory_space<vmem>>, %arg9: memref<32x32xbf16, #tpu.memory_space<vmem>>, %arg10: memref<1x32xf32, #tpu.memory_space<vmem>>, %arg11: memref<1x32xf32, #tpu.memory_space<vmem>>, %arg12: memref<1x32xf32, #tpu.memory_space<vmem>>, %arg13: memref<32x32xbf16, #tpu.memory_space<vmem>>, %arg14: memref<1x32xf32, #tpu.memory_space<vmem>>, %arg15: memref<32x64xbf16, #tpu.memory_space<vmem>>, %arg16: memref<1x64xf32, #tpu.memory_space<vmem>>, %arg17: memref<32x32xbf16, #tpu.memory_space<vmem>>, %arg18: memref<1x32xf32, #tpu.memory_space<vmem>>, %arg19: memref<1x32xf32, #tpu.memory_space<vmem>>, %arg20: memref<1x32xf32, #tpu.memory_space<vmem>>, %arg21: memref<32x64xbf16, #tpu.memory_space<vmem>>, %arg22: memref<1x64xf32, #tpu.memory_space<vmem>>, %arg23: memref<64x32xbf16, #tpu.memory_space<vmem>>, %arg24: memref<1x32xf32, #tpu.memory_space<vmem>>, %arg25: memref<1x8x32xf32, #tpu.memory_space<vmem>>, %arg26: memref<8x32xf32, #tpu.memory_space<vmem>>) attributes {dimension_semantics = [#tpu.dimension_semantics<parallel>], iteration_bounds = array<i64: 2>, scalar_prefetch = 0 : i64, scratch_operands = 1 : i64, tpu.core_type = #tpu.core_type<tc>, window_params = [{transform_indices = @transform_0, window_bounds = array<i64: 1, 8, 32>}, {transform_indices = @transform_1, window_bounds = array<i64: 1, 16, 32>}, {transform_indices = @transform_2, window_bounds = array<i64: 1, 8, 8>}, {transform_indices = @transform_3, window_bounds = array<i64: 1, 8, 16>}, {pipeline_mode = #tpu.pipeline_mode<synchronous>, transform_indices = @transform_4, window_bounds = array<i64: 1, 32>}, {pipeline_mode = #tpu.pipeline_mode<synchronous>, transform_indices = @transform_5, window_bounds = array<i64: 1, 32>}, {pipeline_mode = #tpu.pipeline_mode<synchronous>, transform_indices = @transform_6, window_bounds = array<i64: 32, 96>}, {pipeline_mode = #tpu.pipeline_mode<synchronous>, transform_indices = @transform_7, window_bounds = array<i64: 1, 96>}, {pipeline_mode = #tpu.pipeline_mode<synchronous>, transform_indices = @transform_8, window_bounds = array<i64: 32, 32>}, {pipeline_mode = #tpu.pipeline_mode<synchronous>, transform_indices = @transform_9, window_bounds = array<i64: 1, 32>}, {pipeline_mode = #tpu.pipeline_mode<synchronous>, transform_indices = @transform_10, window_bounds = array<i64: 1, 32>}, {pipeline_mode = #tpu.pipeline_mode<synchronous>, transform_indices = @transform_11, window_bounds = array<i64: 1, 32>}, {pipeline_mode = #tpu.pipeline_mode<synchronous>, transform_indices = @transform_12, window_bounds = array<i64: 32, 32>}, {pipeline_mode = #tpu.pipeline_mode<synchronous>, transform_indices = @transform_13, window_bounds = array<i64: 1, 32>}, {pipeline_mode = #tpu.pipeline_mode<synchronous>, transform_indices = @transform_14, window_bounds = array<i64: 32, 64>}, {pipeline_mode = #tpu.pipeline_mode<synchronous>, transform_indices = @transform_15, window_bounds = array<i64: 1, 64>}, {pipeline_mode = #tpu.pipeline_mode<synchronous>, transform_indices = @transform_16, window_bounds = array<i64: 32, 32>}, {pipeline_mode = #tpu.pipeline_mode<synchronous>, transform_indices = @transform_17, window_bounds = array<i64: 1, 32>}, {pipeline_mode = #tpu.pipeline_mode<synchronous>, transform_indices = @transform_18, window_bounds = array<i64: 1, 32>}, {pipeline_mode = #tpu.pipeline_mode<synchronous>, transform_indices = @transform_19, window_bounds = array<i64: 1, 32>}, {pipeline_mode = #tpu.pipeline_mode<synchronous>, transform_indices = @transform_20, window_bounds = array<i64: 32, 64>}, {pipeline_mode = #tpu.pipeline_mode<synchronous>, transform_indices = @transform_21, window_bounds = array<i64: 1, 64>}, {pipeline_mode = #tpu.pipeline_mode<synchronous>, transform_indices = @transform_22, window_bounds = array<i64: 64, 32>}, {pipeline_mode = #tpu.pipeline_mode<synchronous>, transform_indices = @transform_23, window_bounds = array<i64: 1, 32>}, {transform_indices = @transform_24, window_bounds = array<i64: 1, 8, 32>}]} {
    %c0 = arith.constant 0 : index
    %c0_0 = arith.constant 0 : index
    %c0_1 = arith.constant 0 : index
    %0 = vector.load %arg1[%c0, %c0_0, %c0_1] : memref<1x8x32xf32, #tpu.memory_space<vmem>>, vector<1x8x32xf32>
    %1 = vector.shape_cast %0 : vector<1x8x32xf32> to vector<8x32xf32>
    %c0_2 = arith.constant 0 : index
    %c0_3 = arith.constant 0 : index
    %c0_4 = arith.constant 0 : index
    %2 = vector.load %arg3[%c0_2, %c0_3, %c0_4] : memref<1x8x8xf32, #tpu.memory_space<vmem>>, vector<1x8x8xf32>
    %3 = vector.shape_cast %2 : vector<1x8x8xf32> to vector<8x8xf32>
    %cst = arith.constant 0.000000e+00 : f32
    %4 = vector.broadcast %cst : f32 to vector<8x8xf32>
    %5 = arith.cmpf oeq, %3, %4 : vector<8x8xf32>
    %cst_5 = arith.constant -1.000000e+09 : f32
    %cst_6 = arith.constant 0.000000e+00 : f32
    %6 = vector.broadcast %cst_5 : f32 to vector<8x8xf32>
    %7 = vector.broadcast %cst_6 : f32 to vector<8x8xf32>
    %8 = arith.select %5, %6, %7 : vector<8x8xi1>, vector<8x8xf32>
    %c0_7 = arith.constant 0 : index
    %c0_8 = arith.constant 0 : index
    %c0_9 = arith.constant 0 : index
    %9 = vector.load %arg4[%c0_7, %c0_8, %c0_9] : memref<1x8x16xf32, #tpu.memory_space<vmem>>, vector<1x8x16xf32>
    %10 = vector.shape_cast %9 : vector<1x8x16xf32> to vector<8x16xf32>
    %cst_10 = arith.constant 0.000000e+00 : f32
    %11 = vector.broadcast %cst_10 : f32 to vector<8x16xf32>
    %12 = arith.cmpf oeq, %10, %11 : vector<8x16xf32>
    %cst_11 = arith.constant -1.000000e+09 : f32
    %cst_12 = arith.constant 0.000000e+00 : f32
    %13 = vector.broadcast %cst_11 : f32 to vector<8x16xf32>
    %14 = vector.broadcast %cst_12 : f32 to vector<8x16xf32>
    %15 = arith.select %12, %13, %14 : vector<8x16xi1>, vector<8x16xf32>
    %c0_13 = arith.constant 0 : index
    %c0_14 = arith.constant 0 : index
    %16 = vector.load %arg5[%c0_13, %c0_14] : memref<1x32xf32, #tpu.memory_space<vmem>>, vector<1x32xf32>
    %c0_15 = arith.constant 0 : index
    %c0_16 = arith.constant 0 : index
    %17 = vector.load %arg6[%c0_15, %c0_16] : memref<1x32xf32, #tpu.memory_space<vmem>>, vector<1x32xf32>
    %cst_17 = arith.constant dense<0.000000e+00> : vector<8xf32>
    %18 = vector.multi_reduction <add>, %1, %cst_17 [1] : vector<8x32xf32> to vector<8xf32>
    %19 = vector.shape_cast %18 : vector<8xf32> to vector<8x1xf32>
    %cst_18 = arith.constant 3.200000e+01 : f32
    %20 = vector.broadcast %cst_18 : f32 to vector<8x1xf32>
    %21 = arith.divf %19, %20 : vector<8x1xf32>
    %22 = vector.broadcast %21 : vector<8x1xf32> to vector<8x32xf32>
    %23 = arith.subf %1, %22 : vector<8x32xf32>
    %24 = arith.mulf %23, %23 : vector<8x32xf32>
    %cst_19 = arith.constant dense<0.000000e+00> : vector<8xf32>
    %25 = vector.multi_reduction <add>, %24, %cst_19 [1] : vector<8x32xf32> to vector<8xf32>
    %26 = vector.shape_cast %25 : vector<8xf32> to vector<8x1xf32>
    %cst_20 = arith.constant 3.200000e+01 : f32
    %27 = vector.broadcast %cst_20 : f32 to vector<8x1xf32>
    %28 = arith.divf %26, %27 : vector<8x1xf32>
    %29 = vector.broadcast %21 : vector<8x1xf32> to vector<8x32xf32>
    %30 = arith.subf %1, %29 : vector<8x32xf32>
    %cst_21 = arith.constant 9.99999974E-6 : f32
    %31 = vector.broadcast %cst_21 : f32 to vector<8x1xf32>
    %32 = arith.addf %28, %31 : vector<8x1xf32>
    %33 = math.rsqrt %32 : vector<8x1xf32>
    %34 = vector.broadcast %33 : vector<8x1xf32> to vector<8x32xf32>
    %35 = arith.mulf %30, %34 : vector<8x32xf32>
    %36 = vector.broadcast %16 : vector<1x32xf32> to vector<8x32xf32>
    %37 = arith.mulf %35, %36 : vector<8x32xf32>
    %38 = vector.broadcast %17 : vector<1x32xf32> to vector<8x32xf32>
    %39 = arith.addf %37, %38 : vector<8x32xf32>
    %40 = arith.truncf %39 : vector<8x32xf32> to vector<8x32xbf16>
    %c0_22 = arith.constant 0 : index
    %c0_23 = arith.constant 0 : index
    %41 = vector.load %arg7[%c0_22, %c0_23] : memref<32x96xbf16, #tpu.memory_space<vmem>>, vector<32x96xbf16>
    %cst_24 = arith.constant dense<0.000000e+00> : vector<8x96xf32>
    %42 = tpu.matmul %40, %41, %cst_24 {dimension_numbers = #tpu.dot_dimension_numbers<[1], [0], [0], [1], [0, 0, 1, 1], [], []>} : vector<8x32xbf16>, vector<32x96xbf16>, vector<8x96xf32> -> vector<8x96xf32>
    %c0_25 = arith.constant 0 : index
    %c0_26 = arith.constant 0 : index
    %43 = vector.load %arg8[%c0_25, %c0_26] : memref<1x96xf32, #tpu.memory_space<vmem>>, vector<1x96xf32>
    %44 = vector.broadcast %43 : vector<1x96xf32> to vector<8x96xf32>
    %45 = arith.addf %42, %44 : vector<8x96xf32>
    %46 = vector.extract_strided_slice %45 {offsets = [0, 0], sizes = [8, 32], strides = [1, 1]} : vector<8x96xf32> to vector<8x32xf32>
    %47 = vector.extract_strided_slice %45 {offsets = [0, 32], sizes = [8, 32], strides = [1, 1]} : vector<8x96xf32> to vector<8x32xf32>
    %48 = vector.extract_strided_slice %45 {offsets = [0, 64], sizes = [8, 32], strides = [1, 1]} : vector<8x96xf32> to vector<8x32xf32>
    %49 = arith.truncf %46 : vector<8x32xf32> to vector<8x32xbf16>
    %50 = arith.truncf %47 : vector<8x32xf32> to vector<8x32xbf16>
    %51 = arith.truncf %48 : vector<8x32xf32> to vector<8x32xbf16>
    %52 = vector.extract_strided_slice %49 {offsets = [0, 0], sizes = [8, 8], strides = [1, 1]} : vector<8x32xbf16> to vector<8x8xbf16>
    %53 = vector.extract_strided_slice %50 {offsets = [0, 0], sizes = [8, 8], strides = [1, 1]} : vector<8x32xbf16> to vector<8x8xbf16>
    %cst_27 = arith.constant dense<0.000000e+00> : vector<8x8xf32>
    %54 = tpu.matmul %52, %53, %cst_27 {dimension_numbers = #tpu.dot_dimension_numbers<[1], [1], [0], [0], [0, 0, 1, 0], [], []>} : vector<8x8xbf16>, vector<8x8xbf16>, vector<8x8xf32> -> vector<8x8xf32>
    %cst_28 = arith.constant 0.353553385 : f32
    %55 = vector.broadcast %cst_28 : f32 to vector<8x8xf32>
    %56 = arith.mulf %54, %55 : vector<8x8xf32>
    %57 = arith.addf %56, %8 : vector<8x8xf32>
    %cst_29 = arith.constant dense<0xFF800000> : vector<8xf32>
    %58 = vector.multi_reduction <maximumf>, %57, %cst_29 [1] : vector<8x8xf32> to vector<8xf32>
    %59 = vector.shape_cast %58 : vector<8xf32> to vector<8x1xf32>
    %60 = vector.broadcast %59 : vector<8x1xf32> to vector<8x8xf32>
    %61 = arith.subf %57, %60 : vector<8x8xf32>
    %62 = math.exp %61 : vector<8x8xf32>
    %cst_30 = arith.constant dense<0.000000e+00> : vector<8xf32>
    %63 = vector.multi_reduction <add>, %62, %cst_30 [1] : vector<8x8xf32> to vector<8xf32>
    %64 = vector.shape_cast %63 : vector<8xf32> to vector<8x1xf32>
    %65 = vector.broadcast %64 : vector<8x1xf32> to vector<8x8xf32>
    %66 = arith.divf %62, %65 : vector<8x8xf32>
    %67 = arith.truncf %66 : vector<8x8xf32> to vector<8x8xbf16>
    %68 = vector.extract_strided_slice %51 {offsets = [0, 0], sizes = [8, 8], strides = [1, 1]} : vector<8x32xbf16> to vector<8x8xbf16>
    %cst_31 = arith.constant dense<0.000000e+00> : vector<8x8xf32>
    %69 = tpu.matmul %67, %68, %cst_31 {dimension_numbers = #tpu.dot_dimension_numbers<[1], [0], [0], [1], [0, 0, 1, 1], [], []>} : vector<8x8xbf16>, vector<8x8xbf16>, vector<8x8xf32> -> vector<8x8xf32>
    %c0_32 = arith.constant 0 : index
    %c0_33 = arith.constant 0 : index
    %70 = vector.load %arg26[%c0_32, %c0_33] : memref<8x32xf32, #tpu.memory_space<vmem>>, vector<8x8xf32>
    tpu.vector_store %arg26[%c0_32, %c0_33], %69 {strides = array<i32>} : memref<8x32xf32, #tpu.memory_space<vmem>>, vector<8x8xf32>,
    %71 = vector.extract_strided_slice %49 {offsets = [0, 8], sizes = [8, 8], strides = [1, 1]} : vector<8x32xbf16> to vector<8x8xbf16>
    %72 = vector.extract_strided_slice %50 {offsets = [0, 8], sizes = [8, 8], strides = [1, 1]} : vector<8x32xbf16> to vector<8x8xbf16>
    %cst_34 = arith.constant dense<0.000000e+00> : vector<8x8xf32>
    %73 = tpu.matmul %71, %72, %cst_34 {dimension_numbers = #tpu.dot_dimension_numbers<[1], [1], [0], [0], [0, 0, 1, 0], [], []>} : vector<8x8xbf16>, vector<8x8xbf16>, vector<8x8xf32> -> vector<8x8xf32>
    %cst_35 = arith.constant 0.353553385 : f32
    %74 = vector.broadcast %cst_35 : f32 to vector<8x8xf32>
    %75 = arith.mulf %73, %74 : vector<8x8xf32>
    %76 = arith.addf %75, %8 : vector<8x8xf32>
    %cst_36 = arith.constant dense<0xFF800000> : vector<8xf32>
    %77 = vector.multi_reduction <maximumf>, %76, %cst_36 [1] : vector<8x8xf32> to vector<8xf32>
    %78 = vector.shape_cast %77 : vector<8xf32> to vector<8x1xf32>
    %79 = vector.broadcast %78 : vector<8x1xf32> to vector<8x8xf32>
    %80 = arith.subf %76, %79 : vector<8x8xf32>
    %81 = math.exp %80 : vector<8x8xf32>
    %cst_37 = arith.constant dense<0.000000e+00> : vector<8xf32>
    %82 = vector.multi_reduction <add>, %81, %cst_37 [1] : vector<8x8xf32> to vector<8xf32>
    %83 = vector.shape_cast %82 : vector<8xf32> to vector<8x1xf32>
    %84 = vector.broadcast %83 : vector<8x1xf32> to vector<8x8xf32>
    %85 = arith.divf %81, %84 : vector<8x8xf32>
    %86 = arith.truncf %85 : vector<8x8xf32> to vector<8x8xbf16>
    %87 = vector.extract_strided_slice %51 {offsets = [0, 8], sizes = [8, 8], strides = [1, 1]} : vector<8x32xbf16> to vector<8x8xbf16>
    %cst_38 = arith.constant dense<0.000000e+00> : vector<8x8xf32>
    %88 = tpu.matmul %86, %87, %cst_38 {dimension_numbers = #tpu.dot_dimension_numbers<[1], [0], [0], [1], [0, 0, 1, 1], [], []>} : vector<8x8xbf16>, vector<8x8xbf16>, vector<8x8xf32> -> vector<8x8xf32>
    %c0_39 = arith.constant 0 : index
    %c8 = arith.constant 8 : index
    %89 = vector.load %arg26[%c0_39, %c8] : memref<8x32xf32, #tpu.memory_space<vmem>>, vector<8x8xf32>
    tpu.vector_store %arg26[%c0_39, %c8], %88 {strides = array<i32>} : memref<8x32xf32, #tpu.memory_space<vmem>>, vector<8x8xf32>,
    %90 = vector.extract_strided_slice %49 {offsets = [0, 16], sizes = [8, 8], strides = [1, 1]} : vector<8x32xbf16> to vector<8x8xbf16>
    %91 = vector.extract_strided_slice %50 {offsets = [0, 16], sizes = [8, 8], strides = [1, 1]} : vector<8x32xbf16> to vector<8x8xbf16>
    %cst_40 = arith.constant dense<0.000000e+00> : vector<8x8xf32>
    %92 = tpu.matmul %90, %91, %cst_40 {dimension_numbers = #tpu.dot_dimension_numbers<[1], [1], [0], [0], [0, 0, 1, 0], [], []>} : vector<8x8xbf16>, vector<8x8xbf16>, vector<8x8xf32> -> vector<8x8xf32>
    %cst_41 = arith.constant 0.353553385 : f32
    %93 = vector.broadcast %cst_41 : f32 to vector<8x8xf32>
    %94 = arith.mulf %92, %93 : vector<8x8xf32>
    %95 = arith.addf %94, %8 : vector<8x8xf32>
    %cst_42 = arith.constant dense<0xFF800000> : vector<8xf32>
    %96 = vector.multi_reduction <maximumf>, %95, %cst_42 [1] : vector<8x8xf32> to vector<8xf32>
    %97 = vector.shape_cast %96 : vector<8xf32> to vector<8x1xf32>
    %98 = vector.broadcast %97 : vector<8x1xf32> to vector<8x8xf32>
    %99 = arith.subf %95, %98 : vector<8x8xf32>
    %100 = math.exp %99 : vector<8x8xf32>
    %cst_43 = arith.constant dense<0.000000e+00> : vector<8xf32>
    %101 = vector.multi_reduction <add>, %100, %cst_43 [1] : vector<8x8xf32> to vector<8xf32>
    %102 = vector.shape_cast %101 : vector<8xf32> to vector<8x1xf32>
    %103 = vector.broadcast %102 : vector<8x1xf32> to vector<8x8xf32>
    %104 = arith.divf %100, %103 : vector<8x8xf32>
    %105 = arith.truncf %104 : vector<8x8xf32> to vector<8x8xbf16>
    %106 = vector.extract_strided_slice %51 {offsets = [0, 16], sizes = [8, 8], strides = [1, 1]} : vector<8x32xbf16> to vector<8x8xbf16>
    %cst_44 = arith.constant dense<0.000000e+00> : vector<8x8xf32>
    %107 = tpu.matmul %105, %106, %cst_44 {dimension_numbers = #tpu.dot_dimension_numbers<[1], [0], [0], [1], [0, 0, 1, 1], [], []>} : vector<8x8xbf16>, vector<8x8xbf16>, vector<8x8xf32> -> vector<8x8xf32>
    %c0_45 = arith.constant 0 : index
    %c16 = arith.constant 16 : index
    %108 = vector.load %arg26[%c0_45, %c16] : memref<8x32xf32, #tpu.memory_space<vmem>>, vector<8x8xf32>
    tpu.vector_store %arg26[%c0_45, %c16], %107 {strides = array<i32>} : memref<8x32xf32, #tpu.memory_space<vmem>>, vector<8x8xf32>,
    %109 = vector.extract_strided_slice %49 {offsets = [0, 24], sizes = [8, 8], strides = [1, 1]} : vector<8x32xbf16> to vector<8x8xbf16>
    %110 = vector.extract_strided_slice %50 {offsets = [0, 24], sizes = [8, 8], strides = [1, 1]} : vector<8x32xbf16> to vector<8x8xbf16>
    %cst_46 = arith.constant dense<0.000000e+00> : vector<8x8xf32>
    %111 = tpu.matmul %109, %110, %cst_46 {dimension_numbers = #tpu.dot_dimension_numbers<[1], [1], [0], [0], [0, 0, 1, 0], [], []>} : vector<8x8xbf16>, vector<8x8xbf16>, vector<8x8xf32> -> vector<8x8xf32>
    %cst_47 = arith.constant 0.353553385 : f32
    %112 = vector.broadcast %cst_47 : f32 to vector<8x8xf32>
    %113 = arith.mulf %111, %112 : vector<8x8xf32>
    %114 = arith.addf %113, %8 : vector<8x8xf32>
    %cst_48 = arith.constant dense<0xFF800000> : vector<8xf32>
    %115 = vector.multi_reduction <maximumf>, %114, %cst_48 [1] : vector<8x8xf32> to vector<8xf32>
    %116 = vector.shape_cast %115 : vector<8xf32> to vector<8x1xf32>
    %117 = vector.broadcast %116 : vector<8x1xf32> to vector<8x8xf32>
    %118 = arith.subf %114, %117 : vector<8x8xf32>
    %119 = math.exp %118 : vector<8x8xf32>
    %cst_49 = arith.constant dense<0.000000e+00> : vector<8xf32>
    %120 = vector.multi_reduction <add>, %119, %cst_49 [1] : vector<8x8xf32> to vector<8xf32>
    %121 = vector.shape_cast %120 : vector<8xf32> to vector<8x1xf32>
    %122 = vector.broadcast %121 : vector<8x1xf32> to vector<8x8xf32>
    %123 = arith.divf %119, %122 : vector<8x8xf32>
    %124 = arith.truncf %123 : vector<8x8xf32> to vector<8x8xbf16>
    %125 = vector.extract_strided_slice %51 {offsets = [0, 24], sizes = [8, 8], strides = [1, 1]} : vector<8x32xbf16> to vector<8x8xbf16>
    %cst_50 = arith.constant dense<0.000000e+00> : vector<8x8xf32>
    %126 = tpu.matmul %124, %125, %cst_50 {dimension_numbers = #tpu.dot_dimension_numbers<[1], [0], [0], [1], [0, 0, 1, 1], [], []>} : vector<8x8xbf16>, vector<8x8xbf16>, vector<8x8xf32> -> vector<8x8xf32>
    %c0_51 = arith.constant 0 : index
    %c24 = arith.constant 24 : index
    %127 = vector.load %arg26[%c0_51, %c24] : memref<8x32xf32, #tpu.memory_space<vmem>>, vector<8x8xf32>
    tpu.vector_store %arg26[%c0_51, %c24], %126 {strides = array<i32>} : memref<8x32xf32, #tpu.memory_space<vmem>>, vector<8x8xf32>,
    %c0_52 = arith.constant 0 : index
    %c0_53 = arith.constant 0 : index
    %128 = vector.load %arg26[%c0_52, %c0_53] : memref<8x32xf32, #tpu.memory_space<vmem>>, vector<8x32xf32>
    %129 = arith.truncf %128 : vector<8x32xf32> to vector<8x32xbf16>
    %c0_54 = arith.constant 0 : index
    %c0_55 = arith.constant 0 : index
    %130 = vector.load %arg9[%c0_54, %c0_55] : memref<32x32xbf16, #tpu.memory_space<vmem>>, vector<32x32xbf16>
    %cst_56 = arith.constant dense<0.000000e+00> : vector<8x32xf32>
    %131 = tpu.matmul %129, %130, %cst_56 {dimension_numbers = #tpu.dot_dimension_numbers<[1], [0], [0], [1], [0, 0, 1, 1], [], []>} : vector<8x32xbf16>, vector<32x32xbf16>, vector<8x32xf32> -> vector<8x32xf32>
    %132 = arith.addf %1, %131 : vector<8x32xf32>
    %c0_57 = arith.constant 0 : index
    %c0_58 = arith.constant 0 : index
    %133 = vector.load %arg10[%c0_57, %c0_58] : memref<1x32xf32, #tpu.memory_space<vmem>>, vector<1x32xf32>
    %134 = vector.broadcast %133 : vector<1x32xf32> to vector<8x32xf32>
    %135 = arith.addf %132, %134 : vector<8x32xf32>
    %c0_59 = arith.constant 0 : index
    %c0_60 = arith.constant 0 : index
    %136 = vector.load %arg11[%c0_59, %c0_60] : memref<1x32xf32, #tpu.memory_space<vmem>>, vector<1x32xf32>
    %c0_61 = arith.constant 0 : index
    %c0_62 = arith.constant 0 : index
    %137 = vector.load %arg12[%c0_61, %c0_62] : memref<1x32xf32, #tpu.memory_space<vmem>>, vector<1x32xf32>
    %cst_63 = arith.constant dense<0.000000e+00> : vector<8xf32>
    %138 = vector.multi_reduction <add>, %135, %cst_63 [1] : vector<8x32xf32> to vector<8xf32>
    %139 = vector.shape_cast %138 : vector<8xf32> to vector<8x1xf32>
    %cst_64 = arith.constant 3.200000e+01 : f32
    %140 = vector.broadcast %cst_64 : f32 to vector<8x1xf32>
    %141 = arith.divf %139, %140 : vector<8x1xf32>
    %142 = vector.broadcast %141 : vector<8x1xf32> to vector<8x32xf32>
    %143 = arith.subf %135, %142 : vector<8x32xf32>
    %144 = arith.mulf %143, %143 : vector<8x32xf32>
    %cst_65 = arith.constant dense<0.000000e+00> : vector<8xf32>
    %145 = vector.multi_reduction <add>, %144, %cst_65 [1] : vector<8x32xf32> to vector<8xf32>
    %146 = vector.shape_cast %145 : vector<8xf32> to vector<8x1xf32>
    %cst_66 = arith.constant 3.200000e+01 : f32
    %147 = vector.broadcast %cst_66 : f32 to vector<8x1xf32>
    %148 = arith.divf %146, %147 : vector<8x1xf32>
    %149 = vector.broadcast %141 : vector<8x1xf32> to vector<8x32xf32>
    %150 = arith.subf %135, %149 : vector<8x32xf32>
    %cst_67 = arith.constant 9.99999974E-6 : f32
    %151 = vector.broadcast %cst_67 : f32 to vector<8x1xf32>
    %152 = arith.addf %148, %151 : vector<8x1xf32>
    %153 = math.rsqrt %152 : vector<8x1xf32>
    %154 = vector.broadcast %153 : vector<8x1xf32> to vector<8x32xf32>
    %155 = arith.mulf %150, %154 : vector<8x32xf32>
    %156 = vector.broadcast %136 : vector<1x32xf32> to vector<8x32xf32>
    %157 = arith.mulf %155, %156 : vector<8x32xf32>
    %158 = vector.broadcast %137 : vector<1x32xf32> to vector<8x32xf32>
    %159 = arith.addf %157, %158 : vector<8x32xf32>
    %160 = arith.truncf %159 : vector<8x32xf32> to vector<8x32xbf16>
    %c0_68 = arith.constant 0 : index
    %c0_69 = arith.constant 0 : index
    %161 = vector.load %arg13[%c0_68, %c0_69] : memref<32x32xbf16, #tpu.memory_space<vmem>>, vector<32x32xbf16>
    %cst_70 = arith.constant dense<0.000000e+00> : vector<8x32xf32>
    %162 = tpu.matmul %160, %161, %cst_70 {dimension_numbers = #tpu.dot_dimension_numbers<[1], [0], [0], [1], [0, 0, 1, 1], [], []>} : vector<8x32xbf16>, vector<32x32xbf16>, vector<8x32xf32> -> vector<8x32xf32>
    %c0_71 = arith.constant 0 : index
    %c0_72 = arith.constant 0 : index
    %163 = vector.load %arg14[%c0_71, %c0_72] : memref<1x32xf32, #tpu.memory_space<vmem>>, vector<1x32xf32>
    %164 = vector.broadcast %163 : vector<1x32xf32> to vector<8x32xf32>
    %165 = arith.addf %162, %164 : vector<8x32xf32>
    %c0_73 = arith.constant 0 : index
    %c0_74 = arith.constant 0 : index
    %c0_75 = arith.constant 0 : index
    %166 = vector.load %arg2[%c0_73, %c0_74, %c0_75] : memref<1x16x32xf32, #tpu.memory_space<vmem>>, vector<1x16x32xf32>
    %167 = vector.shape_cast %166 : vector<1x16x32xf32> to vector<16x32xf32>
    %168 = arith.truncf %167 : vector<16x32xf32> to vector<16x32xbf16>
    %c0_76 = arith.constant 0 : index
    %c0_77 = arith.constant 0 : index
    %169 = vector.load %arg15[%c0_76, %c0_77] : memref<32x64xbf16, #tpu.memory_space<vmem>>, vector<32x64xbf16>
    %cst_78 = arith.constant dense<0.000000e+00> : vector<16x64xf32>
    %170 = tpu.matmul %168, %169, %cst_78 {dimension_numbers = #tpu.dot_dimension_numbers<[1], [0], [0], [1], [0, 0, 1, 1], [], []>} : vector<16x32xbf16>, vector<32x64xbf16>, vector<16x64xf32> -> vector<16x64xf32>
    %c0_79 = arith.constant 0 : index
    %c0_80 = arith.constant 0 : index
    %171 = vector.load %arg16[%c0_79, %c0_80] : memref<1x64xf32, #tpu.memory_space<vmem>>, vector<1x64xf32>
    %172 = vector.broadcast %171 : vector<1x64xf32> to vector<16x64xf32>
    %173 = arith.addf %170, %172 : vector<16x64xf32>
    %174 = vector.extract_strided_slice %173 {offsets = [0, 0], sizes = [16, 32], strides = [1, 1]} : vector<16x64xf32> to vector<16x32xf32>
    %175 = vector.extract_strided_slice %173 {offsets = [0, 32], sizes = [16, 32], strides = [1, 1]} : vector<16x64xf32> to vector<16x32xf32>
    %176 = arith.truncf %165 : vector<8x32xf32> to vector<8x32xbf16>
    %177 = arith.truncf %174 : vector<16x32xf32> to vector<16x32xbf16>
    %178 = arith.truncf %175 : vector<16x32xf32> to vector<16x32xbf16>
    %179 = vector.extract_strided_slice %176 {offsets = [0, 0], sizes = [8, 8], strides = [1, 1]} : vector<8x32xbf16> to vector<8x8xbf16>
    %180 = vector.extract_strided_slice %177 {offsets = [0, 0], sizes = [16, 8], strides = [1, 1]} : vector<16x32xbf16> to vector<16x8xbf16>
    %cst_81 = arith.constant dense<0.000000e+00> : vector<8x16xf32>
    %181 = tpu.matmul %179, %180, %cst_81 {dimension_numbers = #tpu.dot_dimension_numbers<[1], [1], [0], [0], [0, 0, 1, 0], [], []>} : vector<8x8xbf16>, vector<16x8xbf16>, vector<8x16xf32> -> vector<8x16xf32>
    %cst_82 = arith.constant 0.353553385 : f32
    %182 = vector.broadcast %cst_82 : f32 to vector<8x16xf32>
    %183 = arith.mulf %181, %182 : vector<8x16xf32>
    %184 = arith.addf %183, %15 : vector<8x16xf32>
    %cst_83 = arith.constant dense<0xFF800000> : vector<8xf32>
    %185 = vector.multi_reduction <maximumf>, %184, %cst_83 [1] : vector<8x16xf32> to vector<8xf32>
    %186 = vector.shape_cast %185 : vector<8xf32> to vector<8x1xf32>
    %187 = vector.broadcast %186 : vector<8x1xf32> to vector<8x16xf32>
    %188 = arith.subf %184, %187 : vector<8x16xf32>
    %189 = math.exp %188 : vector<8x16xf32>
    %cst_84 = arith.constant dense<0.000000e+00> : vector<8xf32>
    %190 = vector.multi_reduction <add>, %189, %cst_84 [1] : vector<8x16xf32> to vector<8xf32>
    %191 = vector.shape_cast %190 : vector<8xf32> to vector<8x1xf32>
    %192 = vector.broadcast %191 : vector<8x1xf32> to vector<8x16xf32>
    %193 = arith.divf %189, %192 : vector<8x16xf32>
    %194 = arith.truncf %193 : vector<8x16xf32> to vector<8x16xbf16>
    %195 = vector.extract_strided_slice %178 {offsets = [0, 0], sizes = [16, 8], strides = [1, 1]} : vector<16x32xbf16> to vector<16x8xbf16>
    %cst_85 = arith.constant dense<0.000000e+00> : vector<8x8xf32>
    %196 = tpu.matmul %194, %195, %cst_85 {dimension_numbers = #tpu.dot_dimension_numbers<[1], [0], [0], [1], [0, 0, 1, 1], [], []>} : vector<8x16xbf16>, vector<16x8xbf16>, vector<8x8xf32> -> vector<8x8xf32>
    %c0_86 = arith.constant 0 : index
    %c0_87 = arith.constant 0 : index
    %197 = vector.load %arg26[%c0_86, %c0_87] : memref<8x32xf32, #tpu.memory_space<vmem>>, vector<8x8xf32>
    tpu.vector_store %arg26[%c0_86, %c0_87], %196 {strides = array<i32>} : memref<8x32xf32, #tpu.memory_space<vmem>>, vector<8x8xf32>,
    %198 = vector.extract_strided_slice %176 {offsets = [0, 8], sizes = [8, 8], strides = [1, 1]} : vector<8x32xbf16> to vector<8x8xbf16>
    %199 = vector.extract_strided_slice %177 {offsets = [0, 8], sizes = [16, 8], strides = [1, 1]} : vector<16x32xbf16> to vector<16x8xbf16>
    %cst_88 = arith.constant dense<0.000000e+00> : vector<8x16xf32>
    %200 = tpu.matmul %198, %199, %cst_88 {dimension_numbers = #tpu.dot_dimension_numbers<[1], [1], [0], [0], [0, 0, 1, 0], [], []>} : vector<8x8xbf16>, vector<16x8xbf16>, vector<8x16xf32> -> vector<8x16xf32>
    %cst_89 = arith.constant 0.353553385 : f32
    %201 = vector.broadcast %cst_89 : f32 to vector<8x16xf32>
    %202 = arith.mulf %200, %201 : vector<8x16xf32>
    %203 = arith.addf %202, %15 : vector<8x16xf32>
    %cst_90 = arith.constant dense<0xFF800000> : vector<8xf32>
    %204 = vector.multi_reduction <maximumf>, %203, %cst_90 [1] : vector<8x16xf32> to vector<8xf32>
    %205 = vector.shape_cast %204 : vector<8xf32> to vector<8x1xf32>
    %206 = vector.broadcast %205 : vector<8x1xf32> to vector<8x16xf32>
    %207 = arith.subf %203, %206 : vector<8x16xf32>
    %208 = math.exp %207 : vector<8x16xf32>
    %cst_91 = arith.constant dense<0.000000e+00> : vector<8xf32>
    %209 = vector.multi_reduction <add>, %208, %cst_91 [1] : vector<8x16xf32> to vector<8xf32>
    %210 = vector.shape_cast %209 : vector<8xf32> to vector<8x1xf32>
    %211 = vector.broadcast %210 : vector<8x1xf32> to vector<8x16xf32>
    %212 = arith.divf %208, %211 : vector<8x16xf32>
    %213 = arith.truncf %212 : vector<8x16xf32> to vector<8x16xbf16>
    %214 = vector.extract_strided_slice %178 {offsets = [0, 8], sizes = [16, 8], strides = [1, 1]} : vector<16x32xbf16> to vector<16x8xbf16>
    %cst_92 = arith.constant dense<0.000000e+00> : vector<8x8xf32>
    %215 = tpu.matmul %213, %214, %cst_92 {dimension_numbers = #tpu.dot_dimension_numbers<[1], [0], [0], [1], [0, 0, 1, 1], [], []>} : vector<8x16xbf16>, vector<16x8xbf16>, vector<8x8xf32> -> vector<8x8xf32>
    %c0_93 = arith.constant 0 : index
    %c8_94 = arith.constant 8 : index
    %216 = vector.load %arg26[%c0_93, %c8_94] : memref<8x32xf32, #tpu.memory_space<vmem>>, vector<8x8xf32>
    tpu.vector_store %arg26[%c0_93, %c8_94], %215 {strides = array<i32>} : memref<8x32xf32, #tpu.memory_space<vmem>>, vector<8x8xf32>,
    %217 = vector.extract_strided_slice %176 {offsets = [0, 16], sizes = [8, 8], strides = [1, 1]} : vector<8x32xbf16> to vector<8x8xbf16>
    %218 = vector.extract_strided_slice %177 {offsets = [0, 16], sizes = [16, 8], strides = [1, 1]} : vector<16x32xbf16> to vector<16x8xbf16>
    %cst_95 = arith.constant dense<0.000000e+00> : vector<8x16xf32>
    %219 = tpu.matmul %217, %218, %cst_95 {dimension_numbers = #tpu.dot_dimension_numbers<[1], [1], [0], [0], [0, 0, 1, 0], [], []>} : vector<8x8xbf16>, vector<16x8xbf16>, vector<8x16xf32> -> vector<8x16xf32>
    %cst_96 = arith.constant 0.353553385 : f32
    %220 = vector.broadcast %cst_96 : f32 to vector<8x16xf32>
    %221 = arith.mulf %219, %220 : vector<8x16xf32>
    %222 = arith.addf %221, %15 : vector<8x16xf32>
    %cst_97 = arith.constant dense<0xFF800000> : vector<8xf32>
    %223 = vector.multi_reduction <maximumf>, %222, %cst_97 [1] : vector<8x16xf32> to vector<8xf32>
    %224 = vector.shape_cast %223 : vector<8xf32> to vector<8x1xf32>
    %225 = vector.broadcast %224 : vector<8x1xf32> to vector<8x16xf32>
    %226 = arith.subf %222, %225 : vector<8x16xf32>
    %227 = math.exp %226 : vector<8x16xf32>
    %cst_98 = arith.constant dense<0.000000e+00> : vector<8xf32>
    %228 = vector.multi_reduction <add>, %227, %cst_98 [1] : vector<8x16xf32> to vector<8xf32>
    %229 = vector.shape_cast %228 : vector<8xf32> to vector<8x1xf32>
    %230 = vector.broadcast %229 : vector<8x1xf32> to vector<8x16xf32>
    %231 = arith.divf %227, %230 : vector<8x16xf32>
    %232 = arith.truncf %231 : vector<8x16xf32> to vector<8x16xbf16>
    %233 = vector.extract_strided_slice %178 {offsets = [0, 16], sizes = [16, 8], strides = [1, 1]} : vector<16x32xbf16> to vector<16x8xbf16>
    %cst_99 = arith.constant dense<0.000000e+00> : vector<8x8xf32>
    %234 = tpu.matmul %232, %233, %cst_99 {dimension_numbers = #tpu.dot_dimension_numbers<[1], [0], [0], [1], [0, 0, 1, 1], [], []>} : vector<8x16xbf16>, vector<16x8xbf16>, vector<8x8xf32> -> vector<8x8xf32>
    %c0_100 = arith.constant 0 : index
    %c16_101 = arith.constant 16 : index
    %235 = vector.load %arg26[%c0_100, %c16_101] : memref<8x32xf32, #tpu.memory_space<vmem>>, vector<8x8xf32>
    tpu.vector_store %arg26[%c0_100, %c16_101], %234 {strides = array<i32>} : memref<8x32xf32, #tpu.memory_space<vmem>>, vector<8x8xf32>,
    %236 = vector.extract_strided_slice %176 {offsets = [0, 24], sizes = [8, 8], strides = [1, 1]} : vector<8x32xbf16> to vector<8x8xbf16>
    %237 = vector.extract_strided_slice %177 {offsets = [0, 24], sizes = [16, 8], strides = [1, 1]} : vector<16x32xbf16> to vector<16x8xbf16>
    %cst_102 = arith.constant dense<0.000000e+00> : vector<8x16xf32>
    %238 = tpu.matmul %236, %237, %cst_102 {dimension_numbers = #tpu.dot_dimension_numbers<[1], [1], [0], [0], [0, 0, 1, 0], [], []>} : vector<8x8xbf16>, vector<16x8xbf16>, vector<8x16xf32> -> vector<8x16xf32>
    %cst_103 = arith.constant 0.353553385 : f32
    %239 = vector.broadcast %cst_103 : f32 to vector<8x16xf32>
    %240 = arith.mulf %238, %239 : vector<8x16xf32>
    %241 = arith.addf %240, %15 : vector<8x16xf32>
    %cst_104 = arith.constant dense<0xFF800000> : vector<8xf32>
    %242 = vector.multi_reduction <maximumf>, %241, %cst_104 [1] : vector<8x16xf32> to vector<8xf32>
    %243 = vector.shape_cast %242 : vector<8xf32> to vector<8x1xf32>
    %244 = vector.broadcast %243 : vector<8x1xf32> to vector<8x16xf32>
    %245 = arith.subf %241, %244 : vector<8x16xf32>
    %246 = math.exp %245 : vector<8x16xf32>
    %cst_105 = arith.constant dense<0.000000e+00> : vector<8xf32>
    %247 = vector.multi_reduction <add>, %246, %cst_105 [1] : vector<8x16xf32> to vector<8xf32>
    %248 = vector.shape_cast %247 : vector<8xf32> to vector<8x1xf32>
    %249 = vector.broadcast %248 : vector<8x1xf32> to vector<8x16xf32>
    %250 = arith.divf %246, %249 : vector<8x16xf32>
    %251 = arith.truncf %250 : vector<8x16xf32> to vector<8x16xbf16>
    %252 = vector.extract_strided_slice %178 {offsets = [0, 24], sizes = [16, 8], strides = [1, 1]} : vector<16x32xbf16> to vector<16x8xbf16>
    %cst_106 = arith.constant dense<0.000000e+00> : vector<8x8xf32>
    %253 = tpu.matmul %251, %252, %cst_106 {dimension_numbers = #tpu.dot_dimension_numbers<[1], [0], [0], [1], [0, 0, 1, 1], [], []>} : vector<8x16xbf16>, vector<16x8xbf16>, vector<8x8xf32> -> vector<8x8xf32>
    %c0_107 = arith.constant 0 : index
    %c24_108 = arith.constant 24 : index
    %254 = vector.load %arg26[%c0_107, %c24_108] : memref<8x32xf32, #tpu.memory_space<vmem>>, vector<8x8xf32>
    tpu.vector_store %arg26[%c0_107, %c24_108], %253 {strides = array<i32>} : memref<8x32xf32, #tpu.memory_space<vmem>>, vector<8x8xf32>,
    %c0_109 = arith.constant 0 : index
    %c0_110 = arith.constant 0 : index
    %255 = vector.load %arg26[%c0_109, %c0_110] : memref<8x32xf32, #tpu.memory_space<vmem>>, vector<8x32xf32>
    %256 = arith.truncf %255 : vector<8x32xf32> to vector<8x32xbf16>
    %c0_111 = arith.constant 0 : index
    %c0_112 = arith.constant 0 : index
    %257 = vector.load %arg17[%c0_111, %c0_112] : memref<32x32xbf16, #tpu.memory_space<vmem>>, vector<32x32xbf16>
    %cst_113 = arith.constant dense<0.000000e+00> : vector<8x32xf32>
    %258 = tpu.matmul %256, %257, %cst_113 {dimension_numbers = #tpu.dot_dimension_numbers<[1], [0], [0], [1], [0, 0, 1, 1], [], []>} : vector<8x32xbf16>, vector<32x32xbf16>, vector<8x32xf32> -> vector<8x32xf32>
    %259 = arith.addf %135, %258 : vector<8x32xf32>
    %c0_114 = arith.constant 0 : index
    %c0_115 = arith.constant 0 : index
    %260 = vector.load %arg18[%c0_114, %c0_115] : memref<1x32xf32, #tpu.memory_space<vmem>>, vector<1x32xf32>
    %261 = vector.broadcast %260 : vector<1x32xf32> to vector<8x32xf32>
    %262 = arith.addf %259, %261 : vector<8x32xf32>
    %c0_116 = arith.constant 0 : index
    %c0_117 = arith.constant 0 : index
    %263 = vector.load %arg19[%c0_116, %c0_117] : memref<1x32xf32, #tpu.memory_space<vmem>>, vector<1x32xf32>
    %c0_118 = arith.constant 0 : index
    %c0_119 = arith.constant 0 : index
    %264 = vector.load %arg20[%c0_118, %c0_119] : memref<1x32xf32, #tpu.memory_space<vmem>>, vector<1x32xf32>
    %cst_120 = arith.constant dense<0.000000e+00> : vector<8xf32>
    %265 = vector.multi_reduction <add>, %262, %cst_120 [1] : vector<8x32xf32> to vector<8xf32>
    %266 = vector.shape_cast %265 : vector<8xf32> to vector<8x1xf32>
    %cst_121 = arith.constant 3.200000e+01 : f32
    %267 = vector.broadcast %cst_121 : f32 to vector<8x1xf32>
    %268 = arith.divf %266, %267 : vector<8x1xf32>
    %269 = vector.broadcast %268 : vector<8x1xf32> to vector<8x32xf32>
    %270 = arith.subf %262, %269 : vector<8x32xf32>
    %271 = arith.mulf %270, %270 : vector<8x32xf32>
    %cst_122 = arith.constant dense<0.000000e+00> : vector<8xf32>
    %272 = vector.multi_reduction <add>, %271, %cst_122 [1] : vector<8x32xf32> to vector<8xf32>
    %273 = vector.shape_cast %272 : vector<8xf32> to vector<8x1xf32>
    %cst_123 = arith.constant 3.200000e+01 : f32
    %274 = vector.broadcast %cst_123 : f32 to vector<8x1xf32>
    %275 = arith.divf %273, %274 : vector<8x1xf32>
    %276 = vector.broadcast %268 : vector<8x1xf32> to vector<8x32xf32>
    %277 = arith.subf %262, %276 : vector<8x32xf32>
    %cst_124 = arith.constant 9.99999974E-6 : f32
    %278 = vector.broadcast %cst_124 : f32 to vector<8x1xf32>
    %279 = arith.addf %275, %278 : vector<8x1xf32>
    %280 = math.rsqrt %279 : vector<8x1xf32>
    %281 = vector.broadcast %280 : vector<8x1xf32> to vector<8x32xf32>
    %282 = arith.mulf %277, %281 : vector<8x32xf32>
    %283 = vector.broadcast %263 : vector<1x32xf32> to vector<8x32xf32>
    %284 = arith.mulf %282, %283 : vector<8x32xf32>
    %285 = vector.broadcast %264 : vector<1x32xf32> to vector<8x32xf32>
    %286 = arith.addf %284, %285 : vector<8x32xf32>
    %287 = arith.truncf %286 : vector<8x32xf32> to vector<8x32xbf16>
    %c0_125 = arith.constant 0 : index
    %c0_126 = arith.constant 0 : index
    %288 = vector.load %arg21[%c0_125, %c0_126] : memref<32x64xbf16, #tpu.memory_space<vmem>>, vector<32x64xbf16>
    %cst_127 = arith.constant dense<0.000000e+00> : vector<8x64xf32>
    %289 = tpu.matmul %287, %288, %cst_127 {dimension_numbers = #tpu.dot_dimension_numbers<[1], [0], [0], [1], [0, 0, 1, 1], [], []>} : vector<8x32xbf16>, vector<32x64xbf16>, vector<8x64xf32> -> vector<8x64xf32>
    %c0_128 = arith.constant 0 : index
    %c0_129 = arith.constant 0 : index
    %290 = vector.load %arg22[%c0_128, %c0_129] : memref<1x64xf32, #tpu.memory_space<vmem>>, vector<1x64xf32>
    %291 = vector.broadcast %290 : vector<1x64xf32> to vector<8x64xf32>
    %292 = arith.addf %289, %291 : vector<8x64xf32>
    %cst_130 = arith.constant 0.000000e+00 : f32
    %293 = vector.broadcast %cst_130 : f32 to vector<8x64xf32>
    %294 = arith.maximumf %292, %293 : vector<8x64xf32>
    %295 = arith.truncf %294 : vector<8x64xf32> to vector<8x64xbf16>
    %c0_131 = arith.constant 0 : index
    %c0_132 = arith.constant 0 : index
    %296 = vector.load %arg23[%c0_131, %c0_132] : memref<64x32xbf16, #tpu.memory_space<vmem>>, vector<64x32xbf16>
    %cst_133 = arith.constant dense<0.000000e+00> : vector<8x32xf32>
    %297 = tpu.matmul %295, %296, %cst_133 {dimension_numbers = #tpu.dot_dimension_numbers<[1], [0], [0], [1], [0, 0, 1, 1], [], []>} : vector<8x64xbf16>, vector<64x32xbf16>, vector<8x32xf32> -> vector<8x32xf32>
    %298 = arith.addf %262, %297 : vector<8x32xf32>
    %c0_134 = arith.constant 0 : index
    %c0_135 = arith.constant 0 : index
    %299 = vector.load %arg24[%c0_134, %c0_135] : memref<1x32xf32, #tpu.memory_space<vmem>>, vector<1x32xf32>
    %300 = vector.broadcast %299 : vector<1x32xf32> to vector<8x32xf32>
    %301 = arith.addf %298, %300 : vector<8x32xf32>
    %c0_136 = arith.constant 0 : index
    %c0_137 = arith.constant 0 : index
    %c0_138 = arith.constant 0 : index
    %302 = vector.load %arg25[%c0_136, %c0_137, %c0_138] : memref<1x8x32xf32, #tpu.memory_space<vmem>>, vector<1x8x32xf32>
    %303 = vector.shape_cast %302 : vector<1x8x32xf32> to vector<8x32xf32>
    %304 = vector.shape_cast %301 : vector<8x32xf32> to vector<1x8x32xf32>
    tpu.vector_store %arg25[%c0_136, %c0_137, %c0_138], %304 {strides = array<i32>} : memref<1x8x32xf32, #tpu.memory_space<vmem>>, vector<1x8x32xf32>,
    return
  }
  func.func @transform_0(%arg0: i32) -> (i32, i32, i32) {
    %c0_i32 = arith.constant 0 : i32
    %c0_i32_0 = arith.constant 0 : i32
    %c0_i32_1 = arith.constant 0 : i32
    return %arg0, %c0_i32, %c0_i32_0 : i32, i32, i32
  }
  func.func @transform_1(%arg0: i32) -> (i32, i32, i32) {
    %c0_i32 = arith.constant 0 : i32
    %c0_i32_0 = arith.constant 0 : i32
    %c0_i32_1 = arith.constant 0 : i32
    return %arg0, %c0_i32, %c0_i32_0 : i32, i32, i32
  }
  func.func @transform_2(%arg0: i32) -> (i32, i32, i32) {
    %c0_i32 = arith.constant 0 : i32
    %c0_i32_0 = arith.constant 0 : i32
    %c0_i32_1 = arith.constant 0 : i32
    return %arg0, %c0_i32, %c0_i32_0 : i32, i32, i32
  }
  func.func @transform_3(%arg0: i32) -> (i32, i32, i32) {
    %c0_i32 = arith.constant 0 : i32
    %c0_i32_0 = arith.constant 0 : i32
    %c0_i32_1 = arith.constant 0 : i32
    return %arg0, %c0_i32, %c0_i32_0 : i32, i32, i32
  }
  func.func @transform_4(%arg0: i32) -> (i32, i32) {
    %c0_i32 = arith.constant 0 : i32
    %c0_i32_0 = arith.constant 0 : i32
    %c0_i32_1 = arith.constant 0 : i32
    return %c0_i32, %c0_i32_0 : i32, i32
  }
  func.func @transform_5(%arg0: i32) -> (i32, i32) {
    %c0_i32 = arith.constant 0 : i32
    %c0_i32_0 = arith.constant 0 : i32
    %c0_i32_1 = arith.constant 0 : i32
    return %c0_i32, %c0_i32_0 : i32, i32
  }
  func.func @transform_6(%arg0: i32) -> (i32, i32) {
    %c0_i32 = arith.constant 0 : i32
    %c0_i32_0 = arith.constant 0 : i32
    %c0_i32_1 = arith.constant 0 : i32
    return %c0_i32, %c0_i32_0 : i32, i32
  }
  func.func @transform_7(%arg0: i32) -> (i32, i32) {
    %c0_i32 = arith.constant 0 : i32
    %c0_i32_0 = arith.constant 0 : i32
    %c0_i32_1 = arith.constant 0 : i32
    return %c0_i32, %c0_i32_0 : i32, i32
  }
  func.func @transform_8(%arg0: i32) -> (i32, i32) {
    %c0_i32 = arith.constant 0 : i32
    %c0_i32_0 = arith.constant 0 : i32
    %c0_i32_1 = arith.constant 0 : i32
    return %c0_i32, %c0_i32_0 : i32, i32
  }
  func.func @transform_9(%arg0: i32) -> (i32, i32) {
    %c0_i32 = arith.constant 0 : i32
    %c0_i32_0 = arith.constant 0 : i32
    %c0_i32_1 = arith.constant 0 : i32
    return %c0_i32, %c0_i32_0 : i32, i32
  }
  func.func @transform_10(%arg0: i32) -> (i32, i32) {
    %c0_i32 = arith.constant 0 : i32
    %c0_i32_0 = arith.constant 0 : i32
    %c0_i32_1 = arith.constant 0 : i32
    return %c0_i32, %c0_i32_0 : i32, i32
  }
  func.func @transform_11(%arg0: i32) -> (i32, i32) {
    %c0_i32 = arith.constant 0 : i32
    %c0_i32_0 = arith.constant 0 : i32
    %c0_i32_1 = arith.constant 0 : i32
    return %c0_i32, %c0_i32_0 : i32, i32
  }
  func.func @transform_12(%arg0: i32) -> (i32, i32) {
    %c0_i32 = arith.constant 0 : i32
    %c0_i32_0 = arith.constant 0 : i32
    %c0_i32_1 = arith.constant 0 : i32
    return %c0_i32, %c0_i32_0 : i32, i32
  }
  func.func @transform_13(%arg0: i32) -> (i32, i32) {
    %c0_i32 = arith.constant 0 : i32
    %c0_i32_0 = arith.constant 0 : i32
    %c0_i32_1 = arith.constant 0 : i32
    return %c0_i32, %c0_i32_0 : i32, i32
  }
  func.func @transform_14(%arg0: i32) -> (i32, i32) {
    %c0_i32 = arith.constant 0 : i32
    %c0_i32_0 = arith.constant 0 : i32
    %c0_i32_1 = arith.constant 0 : i32
    return %c0_i32, %c0_i32_0 : i32, i32
  }
  func.func @transform_15(%arg0: i32) -> (i32, i32) {
    %c0_i32 = arith.constant 0 : i32
    %c0_i32_0 = arith.constant 0 : i32
    %c0_i32_1 = arith.constant 0 : i32
    return %c0_i32, %c0_i32_0 : i32, i32
  }
  func.func @transform_16(%arg0: i32) -> (i32, i32) {
    %c0_i32 = arith.constant 0 : i32
    %c0_i32_0 = arith.constant 0 : i32
    %c0_i32_1 = arith.constant 0 : i32
    return %c0_i32, %c0_i32_0 : i32, i32
  }
  func.func @transform_17(%arg0: i32) -> (i32, i32) {
    %c0_i32 = arith.constant 0 : i32
    %c0_i32_0 = arith.constant 0 : i32
    %c0_i32_1 = arith.constant 0 : i32
    return %c0_i32, %c0_i32_0 : i32, i32
  }
  func.func @transform_18(%arg0: i32) -> (i32, i32) {
    %c0_i32 = arith.constant 0 : i32
    %c0_i32_0 = arith.constant 0 : i32
    %c0_i32_1 = arith.constant 0 : i32
    return %c0_i32, %c0_i32_0 : i32, i32
  }
  func.func @transform_19(%arg0: i32) -> (i32, i32) {
    %c0_i32 = arith.constant 0 : i32
    %c0_i32_0 = arith.constant 0 : i32
    %c0_i32_1 = arith.constant 0 : i32
    return %c0_i32, %c0_i32_0 : i32, i32
  }
  func.func @transform_20(%arg0: i32) -> (i32, i32) {
    %c0_i32 = arith.constant 0 : i32
    %c0_i32_0 = arith.constant 0 : i32
    %c0_i32_1 = arith.constant 0 : i32
    return %c0_i32, %c0_i32_0 : i32, i32
  }
  func.func @transform_21(%arg0: i32) -> (i32, i32) {
    %c0_i32 = arith.constant 0 : i32
    %c0_i32_0 = arith.constant 0 : i32
    %c0_i32_1 = arith.constant 0 : i32
    return %c0_i32, %c0_i32_0 : i32, i32
  }
  func.func @transform_22(%arg0: i32) -> (i32, i32) {
    %c0_i32 = arith.constant 0 : i32
    %c0_i32_0 = arith.constant 0 : i32
    %c0_i32_1 = arith.constant 0 : i32
    return %c0_i32, %c0_i32_0 : i32, i32
  }
  func.func @transform_23(%arg0: i32) -> (i32, i32) {
    %c0_i32 = arith.constant 0 : i32
    %c0_i32_0 = arith.constant 0 : i32
    %c0_i32_1 = arith.constant 0 : i32
    return %c0_i32, %c0_i32_0 : i32, i32
  }
  func.func @transform_24(%arg0: i32) -> (i32, i32, i32) {
    %c0_i32 = arith.constant 0 : i32
    %c0_i32_0 = arith.constant 0 : i32
    %c0_i32_1 = arith.constant 0 : i32
    return %arg0, %c0_i32, %c0_i32_0 : i32, i32, i32
  }
}

</mosaic_0001>

<llo_original>
// kernel: decoder_block.1
$region0: #{decoder_block.1}
  #allocation0 [shape = 'u32[]', space=smem, size = 0x4, offset = 0x4, fixed_abs, tag = 'smem constant byte address 0x4 - core index']
  #allocation1 [shape = 'u32[144,128]{1,0:T(1,128)}', space=vmem, size = 0x12000, scoped, tag = 'internal scratch']
  #allocation2 [shape = 'f32[8,32]{1,0:T(8,128)}', space=vmem, size = 0x1000, scoped, tag = 'scratch operand']
  %s0 = inlined_call_operand.vmem [shape: f32[2,8,32], index: 0, kind: input, shape index: {}]
  %s1 = inlined_call_operand.vmem [shape: f32[2,16,32], index: 1, kind: input, shape index: {}]
  %s2 = inlined_call_operand.hbm [shape: f32[2,8,8], index: 2, kind: input, shape index: {}]
  %s3 = inlined_call_operand.hbm [shape: f32[2,8,16], index: 3, kind: input, shape index: {}]
  %s4 = inlined_call_operand.hbm [shape: f32[1,32], index: 4, kind: input, shape index: {}]
  %s5 = inlined_call_operand.hbm [shape: f32[1,32], index: 5, kind: input, shape index: {}]
  %s6 = inlined_call_operand.vmem [shape: bf16[32,96], index: 6, kind: input, shape index: {}]
  %s7 = inlined_call_operand.hbm [shape: f32[1,96], index: 7, kind: input, shape index: {}]
  %s8 = inlined_call_operand.vmem [shape: bf16[32,32], index: 8, kind: input, shape index: {}]
  %s9 = inlined_call_operand.hbm [shape: f32[1,32], index: 9, kind: input, shape index: {}]
  %s10 = inlined_call_operand.hbm [shape: f32[1,32], index: 10, kind: input, shape index: {}]
  %s11 = inlined_call_operand.hbm [shape: f32[1,32], index: 11, kind: input, shape index: {}]
  %s12 = inlined_call_operand.hbm [shape: bf16[32,32], index: 12, kind: input, shape index: {}]
  %s13 = inlined_call_operand.hbm [shape: f32[1,32], index: 13, kind: input, shape index: {}]
  %s14 = inlined_call_operand.hbm [shape: bf16[32,64], index: 14, kind: input, shape index: {}]
  %s15 = inlined_call_operand.hbm [shape: f32[1,64], index: 15, kind: input, shape index: {}]
  %s16 = inlined_call_operand.hbm [shape: bf16[32,32], index: 16, kind: input, shape index: {}]
  %s17 = inlined_call_operand.hbm [shape: f32[1,32], index: 17, kind: input, shape index: {}]
  %s18 = inlined_call_operand.hbm [shape: f32[1,32], index: 18, kind: input, shape index: {}]
  %s19 = inlined_call_operand.hbm [shape: f32[1,32], index: 19, kind: input, shape index: {}]
  %s20 = inlined_call_operand.hbm [shape: bf16[32,64], index: 20, kind: input, shape index: {}]
  %s21 = inlined_call_operand.hbm [shape: f32[1,64], index: 21, kind: input, shape index: {}]
  %s22 = inlined_call_operand.vmem [shape: bf16[64,32], index: 22, kind: input, shape index: {}]
  %s23 = inlined_call_operand.hbm [shape: f32[1,32], index: 23, kind: input, shape index: {}]
  %s24 = inlined_call_operand.hbm [shape: f32[2,8,32], index: 24, kind: output, shape index: {}]
  %s25 = sld [smem:[#allocation0]]
  $region205: #{decoder_block.1} parent=0
    _
  %s27 = ssub.s32 1, %s25
  %s28 = scalar_select 0, %s27, %s25
  $region1: #{decoder_block.1} parent=0
    #allocation3 [shape = 'u8[8192]{0}', space=vmem, size = 0x2000, scoped, tag = 'input window, operand 2']
    #allocation4 [shape = 's32[2]{0}', space=sflag, size = 0x8, scoped, tag = 'scoped memory for decoder_block.1']
    #allocation5 [shape = 's32[2]{0}', space=sflag, size = 0x8, scoped, tag = 'scoped memory for decoder_block.1']
    #allocation6 [shape = 'u8[8192]{0}', space=vmem, size = 0x2000, scoped, tag = 'input window, operand 3']
    #allocation7 [shape = 's32[2]{0}', space=sflag, size = 0x8, scoped, tag = 'scoped memory for decoder_block.1']
    #allocation8 [shape = 'u8[512]{0}', space=vmem, size = 0x400, scoped, tag = 'input window, operand 4, single buffered']
    #allocation9 [shape = 'u8[512]{0}', space=vmem, size = 0x400, scoped, tag = 'input window, operand 5, single buffered']
    #allocation10 [shape = 's32[1]{0}', space=sflag, size = 0x4, scoped, tag = 'scoped memory for decoder_block.1']
    #allocation11 [shape = 'u8[512]{0}', space=vmem, size = 0x400, scoped, tag = 'input window, operand 7, single buffered']
    #allocation12 [shape = 'u8[512]{0}', space=vmem, size = 0x400, scoped, tag = 'input window, operand 9, single buffered']
    #allocation13 [shape = 's32[1]{0}', space=sflag, size = 0x4, scoped, tag = 'scoped memory for decoder_block.1']
    #allocation14 [shape = 'u8[512]{0}', space=vmem, size = 0x400, scoped, tag = 'input window, operand 10, single buffered']
    #allocation15 [shape = 'u8[512]{0}', space=vmem, size = 0x400, scoped, tag = 'input window, operand 11, single buffered']
    #allocation16 [shape = 's32[1]{0}', space=sflag, size = 0x4, scoped, tag = 'scoped memory for decoder_block.1']
    #allocation17 [shape = 'u8[8192]{0}', space=vmem, size = 0x2000, scoped, tag = 'input window, operand 12, single buffered']
    #allocation18 [shape = 'u8[512]{0}', space=vmem, size = 0x400, scoped, tag = 'input window, operand 13, single buffered']
    #allocation19 [shape = 's32[1]{0}', space=sflag, size = 0x4, scoped, tag = 'scoped memory for decoder_block.1']
    #allocation20 [shape = 'u8[8192]{0}', space=vmem, size = 0x2000, scoped, tag = 'input window, operand 14, single buffered']
    #allocation21 [shape = 'u8[512]{0}', space=vmem, size = 0x400, scoped, tag = 'input window, operand 15, single buffered']
    #allocation22 [shape = 's32[1]{0}', space=sflag, size = 0x4, scoped, tag = 'scoped memory for decoder_block.1']
    #allocation23 [shape = 'u8[8192]{0}', space=vmem, size = 0x2000, scoped, tag = 'input window, operand 16, single buffered']
    #allocation24 [shape = 'u8[512]{0}', space=vmem, size = 0x400, scoped, tag = 'input window, operand 17, single buffered']
    #allocation25 [shape = 's32[1]{0}', space=sflag, size = 0x4, scoped, tag = 'scoped memory for decoder_block.1']
    #allocation26 [shape = 'u8[512]{0}', space=vmem, size = 0x400, scoped, tag = 'input window, operand 18, single buffered']
    #allocation27 [shape = 'u8[512]{0}', space=vmem, size = 0x400, scoped, tag = 'input window, operand 19, single buffered']
    #allocation28 [shape = 's32[1]{0}', space=sflag, size = 0x4, scoped, tag = 'scoped memory for decoder_block.1']
    #allocation29 [shape = 'u8[8192]{0}', space=vmem, size = 0x2000, scoped, tag = 'input window, operand 20, single buffered']
    #allocation30 [shape = 'u8[512]{0}', space=vmem, size = 0x400, scoped, tag = 'input window, operand 21, single buffered']
    #allocation31 [shape = 's32[1]{0}', space=sflag, size = 0x4, scoped, tag = 'scoped memory for decoder_block.1']
    #allocation32 [shape = 'u8[512]{0}', space=vmem, size = 0x400, scoped, tag = 'input window, operand 23, single buffered']
    #allocation33 [shape = 'u8[8192]{0}', space=vmem, size = 0x2000, scoped, tag = 'output window, operand 0']
    %29 = vsyncpa [#allocation4], 0
    %s30 = scalar_lea.sflag [#allocation4], 1
    %31 = vsyncpa %s30, 0
    %32 = vsyncpa [#allocation7], 0
    %s33 = scalar_lea.sflag [#allocation7], 1
    %34 = vsyncpa %s33, 0
    %35 = vsyncpa [#allocation10], 0
    %36 = vsyncpa [#allocation13], 0
    %37 = vsyncpa [#allocation16], 0
    %38 = vsyncpa [#allocation19], 0
    %39 = vsyncpa [#allocation22], 0
    %40 = vsyncpa [#allocation25], 0
    %41 = vsyncpa [#allocation28], 0
    %42 = vsyncpa [#allocation31], 0
    %43 = vsyncpa [#allocation5], 0
    %s44 = scalar_lea.sflag [#allocation5], 1
    %45 = vsyncpa %s44, 0
    loop: start=0, step=1, limit=4
    $region2: #{decoder_block.1} parent=1 // loop_pre_header
      _
    $region3: #{decoder_block.1} parent=1 // loop_header
      %s47 = sphi 0, %s51
      %p48 = scmp.ge.s32.totalorder %s47, 4
      %s57 = sphi 0, %s59
      %s60 = sphi 0, %s57
      %s61 = sphi 0, %s60
      %s77 = sphi 0, %s61
      %s83 = sphi 0, %s85
      %s86 = sphi 0, %s83
      %s87 = sphi 0, %s86
      %s103 = sphi 0, %s87
      %s109 = sphi 0, %s111
      %s112 = sphi 0, %s109
      %s113 = sphi 0, %s112
      %s129 = sphi 0, %s113
      %s135 = sphi 0, %s137
      %s138 = sphi 0, %s135
      %s139 = sphi 0, %s138
      %s155 = sphi 0, %s139
      %s159 = sphi 0, %s159
      %s161 = sphi 0, %s159
      %s162 = sphi 0, %s161
      %s176 = sphi 0, %s162
      %s180 = sphi 0, %s180
      %s182 = sphi 0, %s180
      %s183 = sphi 0, %s182
      %s197 = sphi 0, %s183
      %s201 = sphi 0, %s201
      %s203 = sphi 0, %s201
      %s204 = sphi 0, %s203
      %s218 = sphi 0, %s204
      %s222 = sphi 0, %s222
      %s224 = sphi 0, %s222
      %s225 = sphi 0, %s224
      %s239 = sphi 0, %s225
      %s243 = sphi 0, %s243
      %s245 = sphi 0, %s243
      %s246 = sphi 0, %s245
      %s260 = sphi 0, %s246
      %s264 = sphi 0, %s264
      %s266 = sphi 0, %s264
      %s267 = sphi 0, %s266
      %s281 = sphi 0, %s267
      %s285 = sphi 0, %s285
      %s287 = sphi 0, %s285
      %s288 = sphi 0, %s287
      %s302 = sphi 0, %s288
      %s306 = sphi 0, %s306
      %s308 = sphi 0, %s306
      %s309 = sphi 0, %s308
      %s323 = sphi 0, %s309
      %s327 = sphi 0, %s327
      %s329 = sphi 0, %s327
      %s330 = sphi 0, %s329
      %s344 = sphi 0, %s330
      %s348 = sphi 0, %s348
      %s350 = sphi 0, %s348
      %s351 = sphi 0, %s350
      %s365 = sphi 0, %s351
      %s369 = sphi 0, %s369
      %s371 = sphi 0, %s369
      %s372 = sphi 0, %s371
      %s386 = sphi 0, %s372
      %s390 = sphi 0, %s390
      %s392 = sphi 0, %s390
      %s393 = sphi 0, %s392
      %s407 = sphi 0, %s393
      %s411 = sphi 0, %s411
      %s413 = sphi 0, %s411
      %s414 = sphi 0, %s413
      %s428 = sphi 0, %s414
      %s432 = sphi 0, %s432
      %s434 = sphi 0, %s432
      %s435 = sphi 0, %s434
      %s449 = sphi 0, %s435
      %s453 = sphi 0, %s453
      %s455 = sphi 0, %s453
      %s456 = sphi 0, %s455
      %s470 = sphi 0, %s456
      %s474 = sphi 0, %s474
      %s476 = sphi 0, %s474
      %s477 = sphi 0, %s476
      %s491 = sphi 0, %s477
      %s495 = sphi 0, %s495
      %s497 = sphi 0, %s495
      %s498 = sphi 0, %s497
      %s512 = sphi 0, %s498
      %s516 = sphi 0, %s516
      %s518 = sphi 0, %s516
      %s519 = sphi 0, %s518
      %s533 = sphi 0, %s519
      %s537 = sphi 0, %s537
      %s539 = sphi 0, %s537
      %s540 = sphi 0, %s539
      %s554 = sphi 0, %s540
      %s558 = sphi 0, %s558
      %s560 = sphi 0, %s558
      %s561 = sphi 0, %s560
      %s575 = sphi 0, %s561
      %s581 = sphi 0, %s583
      %s584 = sphi 0, %s581
      %s585 = sphi 0, %s584
      %s601 = sphi 0, %s585
    $region4: #{decoder_block.1} parent=1 // loop_header_branch
      %50 = sbr.rel (%p48) target = $region8
    $region5: #{decoder_block.1} parent=1 // loop_body
      %s52 = ssub.s32 %s47, 1
      %s53 = ssub.s32 %s47, 2
      %s54 = sadd.s32 %s47, 1
      %s55 = ssub.s32 %s47, %s54
      %p56 = scmp.eq.s32.totalorder %s55, 0
      %s58 = sadd.s32 %s57, 1
      %s59 = scalar_select %p56, %s57, %s58
      %p62 = pneg %p56
      %p63 = scmp.eq.s32.totalorder %s47, 1
      %p64 = por %p62, %p63
      %p65 = scmp.ne.s32.totalorder %s57, %s60
      %p66 = scmp.eq.s32.totalorder %s47, 0
      %p67 = por %p65, %p66
      %p68 = scmp.ne.s32.totalorder %s57, %s60
      %p69 = scmp.eq.s32.totalorder %s52, 1
      %p70 = por %p68, %p69
      %p71 = scmp.ne.s32.totalorder %s60, %s61
      %p72 = scmp.eq.s32.totalorder %s52, 0
      %p73 = por %p71, %p72
      %p74 = scmp.ne.s32.totalorder %s60, %s61
      %p75 = scmp.eq.s32.totalorder %s53, 1
      %p76 = por %p74, %p75
      %p78 = scmp.ne.s32.totalorder %s61, %s77
      %p79 = scmp.eq.s32.totalorder %s53, 0
      %p80 = por %p78, %p79
      %s81 = ssub.s32 %s47, %s54
      %p82 = scmp.eq.s32.totalorder %s81, 0
      %s84 = sadd.s32 %s83, 1
      %s85 = scalar_select %p82, %s83, %s84
      %p88 = pneg %p82
      %p89 = scmp.eq.s32.totalorder %s47, 1
      %p90 = por %p88, %p89
      %p91 = scmp.ne.s32.totalorder %s83, %s86
      %p92 = scmp.eq.s32.totalorder %s47, 0
      %p93 = por %p91, %p92
      %p94 = scmp.ne.s32.totalorder %s83, %s86
      %p95 = scmp.eq.s32.totalorder %s52, 1
      %p96 = por %p94, %p95
      %p97 = scmp.ne.s32.totalorder %s86, %s87
      %p98 = scmp.eq.s32.totalorder %s52, 0
      %p99 = por %p97, %p98
      %p100 = scmp.ne.s32.totalorder %s86, %s87
      %p101 = scmp.eq.s32.totalorder %s53, 1
      %p102 = por %p100, %p101
      %p104 = scmp.ne.s32.totalorder %s87, %s103
      %p105 = scmp.eq.s32.totalorder %s53, 0
      %p106 = por %p104, %p105
      %s107 = ssub.s32 %s47, %s54
      %p108 = scmp.eq.s32.totalorder %s107, 0
      %s110 = sadd.s32 %s109, 1
      %s111 = scalar_select %p108, %s109, %s110
      %p114 = pneg %p108
      %p115 = scmp.eq.s32.totalorder %s47, 1
      %p116 = por %p114, %p115
      %p117 = scmp.ne.s32.totalorder %s109, %s112
      %p118 = scmp.eq.s32.totalorder %s47, 0
      %p119 = por %p117, %p118
      %p120 = scmp.ne.s32.totalorder %s109, %s112
      %p121 = scmp.eq.s32.totalorder %s52, 1
      %p122 = por %p120, %p121
      %p123 = scmp.ne.s32.totalorder %s112, %s113
      %p124 = scmp.eq.s32.totalorder %s52, 0
      %p125 = por %p123, %p124
      %p126 = scmp.ne.s32.totalorder %s112, %s113
      %p127 = scmp.eq.s32.totalorder %s53, 1
      %p128 = por %p126, %p127
      %p130 = scmp.ne.s32.totalorder %s113, %s129
      %p131 = scmp.eq.s32.totalorder %s53, 0
      %p132 = por %p130, %p131
      %s133 = ssub.s32 %s47, %s54
      %p134 = scmp.eq.s32.totalorder %s133, 0
      %s136 = sadd.s32 %s135, 1
      %s137 = scalar_select %p134, %s135, %s136
      %p140 = pneg %p134
      %p141 = scmp.eq.s32.totalorder %s47, 1
      %p142 = por %p140, %p141
      %p143 = scmp.ne.s32.totalorder %s135, %s138
      %p144 = scmp.eq.s32.totalorder %s47, 0
      %p145 = por %p143, %p144
      %p146 = scmp.ne.s32.totalorder %s135, %s138
      %p147 = scmp.eq.s32.totalorder %s52, 1
      %p148 = por %p146, %p147
      %p149 = scmp.ne.s32.totalorder %s138, %s139
      %p150 = scmp.eq.s32.totalorder %s52, 0
      %p151 = por %p149, %p150
      %p152 = scmp.ne.s32.totalorder %s138, %s139
      %p153 = scmp.eq.s32.totalorder %s53, 1
      %p154 = por %p152, %p153
      %p156 = scmp.ne.s32.totalorder %s139, %s155
      %p157 = scmp.eq.s32.totalorder %s53, 0
      %p158 = por %p156, %p157
      %s160 = sadd.s32 %s159, 1
      %p163 = scmp.eq.s32.totalorder %s47, 1
      %p164 = scmp.ne.s32.totalorder %s159, %s161
      %p165 = scmp.eq.s32.totalorder %s47, 0
      %p166 = por %p164, %p165
      %p167 = scmp.ne.s32.totalorder %s159, %s161
      %p168 = scmp.eq.s32.totalorder %s52, 1
      %p169 = por %p167, %p168
      %p170 = scmp.ne.s32.totalorder %s161, %s162
      %p171 = scmp.eq.s32.totalorder %s52, 0
      %p172 = por %p170, %p171
      %p173 = scmp.ne.s32.totalorder %s161, %s162
      %p174 = scmp.eq.s32.totalorder %s53, 1
      %p175 = por %p173, %p174
      %p177 = scmp.ne.s32.totalorder %s162, %s176
      %p178 = scmp.eq.s32.totalorder %s53, 0
      %p179 = por %p177, %p178
      %s181 = sadd.s32 %s180, 1
      %p184 = scmp.eq.s32.totalorder %s47, 1
      %p185 = scmp.ne.s32.totalorder %s180, %s182
      %p186 = scmp.eq.s32.totalorder %s47, 0
      %p187 = por %p185, %p186
      %p188 = scmp.ne.s32.totalorder %s180, %s182
      %p189 = scmp.eq.s32.totalorder %s52, 1
      %p190 = por %p188, %p189
      %p191 = scmp.ne.s32.totalorder %s182, %s183
      %p192 = scmp.eq.s32.totalorder %s52, 0
      %p193 = por %p191, %p192
      %p194 = scmp.ne.s32.totalorder %s182, %s183
      %p195 = scmp.eq.s32.totalorder %s53, 1
      %p196 = por %p194, %p195
      %p198 = scmp.ne.s32.totalorder %s183, %s197
      %p199 = scmp.eq.s32.totalorder %s53, 0
      %p200 = por %p198, %p199
      %s202 = sadd.s32 %s201, 1
      %p205 = scmp.eq.s32.totalorder %s47, 1
      %p206 = scmp.ne.s32.totalorder %s201, %s203
      %p207 = scmp.eq.s32.totalorder %s47, 0
      %p208 = por %p206, %p207
      %p209 = scmp.ne.s32.totalorder %s201, %s203
      %p210 = scmp.eq.s32.totalorder %s52, 1
      %p211 = por %p209, %p210
      %p212 = scmp.ne.s32.totalorder %s203, %s204
      %p213 = scmp.eq.s32.totalorder %s52, 0
      %p214 = por %p212, %p213
      %p215 = scmp.ne.s32.totalorder %s203, %s204
      %p216 = scmp.eq.s32.totalorder %s53, 1
      %p217 = por %p215, %p216
      %p219 = scmp.ne.s32.totalorder %s204, %s218
      %p220 = scmp.eq.s32.totalorder %s53, 0
      %p221 = por %p219, %p220
      %s223 = sadd.s32 %s222, 1
      %p226 = scmp.eq.s32.totalorder %s47, 1
      %p227 = scmp.ne.s32.totalorder %s222, %s224
      %p228 = scmp.eq.s32.totalorder %s47, 0
      %p229 = por %p227, %p228
      %p230 = scmp.ne.s32.totalorder %s222, %s224
      %p231 = scmp.eq.s32.totalorder %s52, 1
      %p232 = por %p230, %p231
      %p233 = scmp.ne.s32.totalorder %s224, %s225
      %p234 = scmp.eq.s32.totalorder %s52, 0
      %p235 = por %p233, %p234
      %p236 = scmp.ne.s32.totalorder %s224, %s225
      %p237 = scmp.eq.s32.totalorder %s53, 1
      %p238 = por %p236, %p237
      %p240 = scmp.ne.s32.totalorder %s225, %s239
      %p241 = scmp.eq.s32.totalorder %s53, 0
      %p242 = por %p240, %p241
      %s244 = sadd.s32 %s243, 1
      %p247 = scmp.eq.s32.totalorder %s47, 1
      %p248 = scmp.ne.s32.totalorder %s243, %s245
      %p249 = scmp.eq.s32.totalorder %s47, 0
      %p250 = por %p248, %p249
      %p251 = scmp.ne.s32.totalorder %s243, %s245
      %p252 = scmp.eq.s32.totalorder %s52, 1
      %p253 = por %p251, %p252
      %p254 = scmp.ne.s32.totalorder %s245, %s246
      %p255 = scmp.eq.s32.totalorder %s52, 0
      %p256 = por %p254, %p255
      %p257 = scmp.ne.s32.totalorder %s245, %s246
      %p258 = scmp.eq.s32.totalorder %s53, 1
      %p259 = por %p257, %p258
      %p261 = scmp.ne.s32.totalorder %s246, %s260
      %p262 = scmp.eq.s32.totalorder %s53, 0
      %p263 = por %p261, %p262
      %s265 = sadd.s32 %s264, 1
      %p268 = scmp.eq.s32.totalorder %s47, 1
      %p269 = scmp.ne.s32.totalorder %s264, %s266
      %p270 = scmp.eq.s32.totalorder %s47, 0
      %p271 = por %p269, %p270
      %p272 = scmp.ne.s32.totalorder %s264, %s266
      %p273 = scmp.eq.s32.totalorder %s52, 1
      %p274 = por %p272, %p273
      %p275 = scmp.ne.s32.totalorder %s266, %s267
      %p276 = scmp.eq.s32.totalorder %s52, 0
      %p277 = por %p275, %p276
      %p278 = scmp.ne.s32.totalorder %s266, %s267
      %p279 = scmp.eq.s32.totalorder %s53, 1
      %p280 = por %p278, %p279
      %p282 = scmp.ne.s32.totalorder %s267, %s281
      %p283 = scmp.eq.s32.totalorder %s53, 0
      %p284 = por %p282, %p283
      %s286 = sadd.s32 %s285, 1
      %p289 = scmp.eq.s32.totalorder %s47, 1
      %p290 = scmp.ne.s32.totalorder %s285, %s287
      %p291 = scmp.eq.s32.totalorder %s47, 0
      %p292 = por %p290, %p291
      %p293 = scmp.ne.s32.totalorder %s285, %s287
      %p294 = scmp.eq.s32.totalorder %s52, 1
      %p295 = por %p293, %p294
      %p296 = scmp.ne.s32.totalorder %s287, %s288
      %p297 = scmp.eq.s32.totalorder %s52, 0
      %p298 = por %p296, %p297
      %p299 = scmp.ne.s32.totalorder %s287, %s288
      %p300 = scmp.eq.s32.totalorder %s53, 1
      %p301 = por %p299, %p300
      %p303 = scmp.ne.s32.totalorder %s288, %s302
      %p304 = scmp.eq.s32.totalorder %s53, 0
      %p305 = por %p303, %p304
      %s307 = sadd.s32 %s306, 1
      %p310 = scmp.eq.s32.totalorder %s47, 1
      %p311 = scmp.ne.s32.totalorder %s306, %s308
      %p312 = scmp.eq.s32.totalorder %s47, 0
      %p313 = por %p311, %p312
      %p314 = scmp.ne.s32.totalorder %s306, %s308
      %p315 = scmp.eq.s32.totalorder %s52, 1
      %p316 = por %p314, %p315
      %p317 = scmp.ne.s32.totalorder %s308, %s309
      %p318 = scmp.eq.s32.totalorder %s52, 0
      %p319 = por %p317, %p318
      %p320 = scmp.ne.s32.totalorder %s308, %s309
      %p321 = scmp.eq.s32.totalorder %s53, 1
      %p322 = por %p320, %p321
      %p324 = scmp.ne.s32.totalorder %s309, %s323
      %p325 = scmp.eq.s32.totalorder %s53, 0
      %p326 = por %p324, %p325
      %s328 = sadd.s32 %s327, 1
      %p331 = scmp.eq.s32.totalorder %s47, 1
      %p332 = scmp.ne.s32.totalorder %s327, %s329
      %p333 = scmp.eq.s32.totalorder %s47, 0
      %p334 = por %p332, %p333
      %p335 = scmp.ne.s32.totalorder %s327, %s329
      %p336 = scmp.eq.s32.totalorder %s52, 1
      %p337 = por %p335, %p336
      %p338 = scmp.ne.s32.totalorder %s329, %s330
      %p339 = scmp.eq.s32.totalorder %s52, 0
      %p340 = por %p338, %p339
      %p341 = scmp.ne.s32.totalorder %s329, %s330
      %p342 = scmp.eq.s32.totalorder %s53, 1
      %p343 = por %p341, %p342
      %p345 = scmp.ne.s32.totalorder %s330, %s344
      %p346 = scmp.eq.s32.totalorder %s53, 0
      %p347 = por %p345, %p346
      %s349 = sadd.s32 %s348, 1
      %p352 = scmp.eq.s32.totalorder %s47, 1
      %p353 = scmp.ne.s32.totalorder %s348, %s350
      %p354 = scmp.eq.s32.totalorder %s47, 0
      %p355 = por %p353, %p354
      %p356 = scmp.ne.s32.totalorder %s348, %s350
      %p357 = scmp.eq.s32.totalorder %s52, 1
      %p358 = por %p356, %p357
      %p359 = scmp.ne.s32.totalorder %s350, %s351
      %p360 = scmp.eq.s32.totalorder %s52, 0
      %p361 = por %p359, %p360
      %p362 = scmp.ne.s32.totalorder %s350, %s351
      %p363 = scmp.eq.s32.totalorder %s53, 1
      %p364 = por %p362, %p363
      %p366 = scmp.ne.s32.totalorder %s351, %s365
      %p367 = scmp.eq.s32.totalorder %s53, 0
      %p368 = por %p366, %p367
      %s370 = sadd.s32 %s369, 1
      %p373 = scmp.eq.s32.totalorder %s47, 1
      %p374 = scmp.ne.s32.totalorder %s369, %s371
      %p375 = scmp.eq.s32.totalorder %s47, 0
      %p376 = por %p374, %p375
      %p377 = scmp.ne.s32.totalorder %s369, %s371
      %p378 = scmp.eq.s32.totalorder %s52, 1
      %p379 = por %p377, %p378
      %p380 = scmp.ne.s32.totalorder %s371, %s372
      %p381 = scmp.eq.s32.totalorder %s52, 0
      %p382 = por %p380, %p381
      %p383 = scmp.ne.s32.totalorder %s371, %s372
      %p384 = scmp.eq.s32.totalorder %s53, 1
      %p385 = por %p383, %p384
      %p387 = scmp.ne.s32.totalorder %s372, %s386
      %p388 = scmp.eq.s32.totalorder %s53, 0
      %p389 = por %p387, %p388
      %s391 = sadd.s32 %s390, 1
      %p394 = scmp.eq.s32.totalorder %s47, 1
      %p395 = scmp.ne.s32.totalorder %s390, %s392
      %p396 = scmp.eq.s32.totalorder %s47, 0
      %p397 = por %p395, %p396
      %p398 = scmp.ne.s32.totalorder %s390, %s392
      %p399 = scmp.eq.s32.totalorder %s52, 1
      %p400 = por %p398, %p399
      %p401 = scmp.ne.s32.totalorder %s392, %s393
      %p402 = scmp.eq.s32.totalorder %s52, 0
      %p403 = por %p401, %p402
      %p404 = scmp.ne.s32.totalorder %s392, %s393
      %p405 = scmp.eq.s32.totalorder %s53, 1
      %p406 = por %p404, %p405
      %p408 = scmp.ne.s32.totalorder %s393, %s407
      %p409 = scmp.eq.s32.totalorder %s53, 0
      %p410 = por %p408, %p409
      %s412 = sadd.s32 %s411, 1
      %p415 = scmp.eq.s32.totalorder %s47, 1
      %p416 = scmp.ne.s32.totalorder %s411, %s413
      %p417 = scmp.eq.s32.totalorder %s47, 0
      %p418 = por %p416, %p417
      %p419 = scmp.ne.s32.totalorder %s411, %s413
      %p420 = scmp.eq.s32.totalorder %s52, 1
      %p421 = por %p419, %p420
      %p422 = scmp.ne.s32.totalorder %s413, %s414
      %p423 = scmp.eq.s32.totalorder %s52, 0
      %p424 = por %p422, %p423
      %p425 = scmp.ne.s32.totalorder %s413, %s414
      %p426 = scmp.eq.s32.totalorder %s53, 1
      %p427 = por %p425, %p426
      %p429 = scmp.ne.s32.totalorder %s414, %s428
      %p430 = scmp.eq.s32.totalorder %s53, 0
      %p431 = por %p429, %p430
      %s433 = sadd.s32 %s432, 1
      %p436 = scmp.eq.s32.totalorder %s47, 1
      %p437 = scmp.ne.s32.totalorder %s432, %s434
      %p438 = scmp.eq.s32.totalorder %s47, 0
      %p439 = por %p437, %p438
      %p440 = scmp.ne.s32.totalorder %s432, %s434
      %p441 = scmp.eq.s32.totalorder %s52, 1
      %p442 = por %p440, %p441
      %p443 = scmp.ne.s32.totalorder %s434, %s435
      %p444 = scmp.eq.s32.totalorder %s52, 0
      %p445 = por %p443, %p444
      %p446 = scmp.ne.s32.totalorder %s434, %s435
      %p447 = scmp.eq.s32.totalorder %s53, 1
      %p448 = por %p446, %p447
      %p450 = scmp.ne.s32.totalorder %s435, %s449
      %p451 = scmp.eq.s32.totalorder %s53, 0
      %p452 = por %p450, %p451
      %s454 = sadd.s32 %s453, 1
      %p457 = scmp.eq.s32.totalorder %s47, 1
      %p458 = scmp.ne.s32.totalorder %s453, %s455
      %p459 = scmp.eq.s32.totalorder %s47, 0
      %p460 = por %p458, %p459
      %p461 = scmp.ne.s32.totalorder %s453, %s455
      %p462 = scmp.eq.s32.totalorder %s52, 1
      %p463 = por %p461, %p462
      %p464 = scmp.ne.s32.totalorder %s455, %s456
      %p465 = scmp.eq.s32.totalorder %s52, 0
      %p466 = por %p464, %p465
      %p467 = scmp.ne.s32.totalorder %s455, %s456
      %p468 = scmp.eq.s32.totalorder %s53, 1
      %p469 = por %p467, %p468
      %p471 = scmp.ne.s32.totalorder %s456, %s470
      %p472 = scmp.eq.s32.totalorder %s53, 0
      %p473 = por %p471, %p472
      %s475 = sadd.s32 %s474, 1
      %p478 = scmp.eq.s32.totalorder %s47, 1
      %p479 = scmp.ne.s32.totalorder %s474, %s476
      %p480 = scmp.eq.s32.totalorder %s47, 0
      %p481 = por %p479, %p480
      %p482 = scmp.ne.s32.totalorder %s474, %s476
      %p483 = scmp.eq.s32.totalorder %s52, 1
      %p484 = por %p482, %p483
      %p485 = scmp.ne.s32.totalorder %s476, %s477
      %p486 = scmp.eq.s32.totalorder %s52, 0
      %p487 = por %p485, %p486
      %p488 = scmp.ne.s32.totalorder %s476, %s477
      %p489 = scmp.eq.s32.totalorder %s53, 1
      %p490 = por %p488, %p489
      %p492 = scmp.ne.s32.totalorder %s477, %s491
      %p493 = scmp.eq.s32.totalorder %s53, 0
      %p494 = por %p492, %p493
      %s496 = sadd.s32 %s495, 1
      %p499 = scmp.eq.s32.totalorder %s47, 1
      %p500 = scmp.ne.s32.totalorder %s495, %s497
      %p501 = scmp.eq.s32.totalorder %s47, 0
      %p502 = por %p500, %p501
      %p503 = scmp.ne.s32.totalorder %s495, %s497
      %p504 = scmp.eq.s32.totalorder %s52, 1
      %p505 = por %p503, %p504
      %p506 = scmp.ne.s32.totalorder %s497, %s498
      %p507 = scmp.eq.s32.totalorder %s52, 0
      %p508 = por %p506, %p507
      %p509 = scmp.ne.s32.totalorder %s497, %s498
      %p510 = scmp.eq.s32.totalorder %s53, 1
      %p511 = por %p509, %p510
      %p513 = scmp.ne.s32.totalorder %s498, %s512
      %p514 = scmp.eq.s32.totalorder %s53, 0
      %p515 = por %p513, %p514
      %s517 = sadd.s32 %s516, 1
      %p520 = scmp.eq.s32.totalorder %s47, 1
      %p521 = scmp.ne.s32.totalorder %s516, %s518
      %p522 = scmp.eq.s32.totalorder %s47, 0
      %p523 = por %p521, %p522
      %p524 = scmp.ne.s32.totalorder %s516, %s518
      %p525 = scmp.eq.s32.totalorder %s52, 1
      %p526 = por %p524, %p525
      %p527 = scmp.ne.s32.totalorder %s518, %s519
      %p528 = scmp.eq.s32.totalorder %s52, 0
      %p529 = por %p527, %p528
      %p530 = scmp.ne.s32.totalorder %s518, %s519
      %p531 = scmp.eq.s32.totalorder %s53, 1
      %p532 = por %p530, %p531
      %p534 = scmp.ne.s32.totalorder %s519, %s533
      %p535 = scmp.eq.s32.totalorder %s53, 0
      %p536 = por %p534, %p535
      %s538 = sadd.s32 %s537, 1
      %p541 = scmp.eq.s32.totalorder %s47, 1
      %p542 = scmp.ne.s32.totalorder %s537, %s539
      %p543 = scmp.eq.s32.totalorder %s47, 0
      %p544 = por %p542, %p543
      %p545 = scmp.ne.s32.totalorder %s537, %s539
      %p546 = scmp.eq.s32.totalorder %s52, 1
      %p547 = por %p545, %p546
      %p548 = scmp.ne.s32.totalorder %s539, %s540
      %p549 = scmp.eq.s32.totalorder %s52, 0
      %p550 = por %p548, %p549
      %p551 = scmp.ne.s32.totalorder %s539, %s540
      %p552 = scmp.eq.s32.totalorder %s53, 1
      %p553 = por %p551, %p552
      %p555 = scmp.ne.s32.totalorder %s540, %s554
      %p556 = scmp.eq.s32.totalorder %s53, 0
      %p557 = por %p555, %p556
      %s559 = sadd.s32 %s558, 1
      %p562 = scmp.eq.s32.totalorder %s47, 1
      %p563 = scmp.ne.s32.totalorder %s558, %s560
      %p564 = scmp.eq.s32.totalorder %s47, 0
      %p565 = por %p563, %p564
      %p566 = scmp.ne.s32.totalorder %s558, %s560
      %p567 = scmp.eq.s32.totalorder %s52, 1
      %p568 = por %p566, %p567
      %p569 = scmp.ne.s32.totalorder %s560, %s561
      %p570 = scmp.eq.s32.totalorder %s52, 0
      %p571 = por %p569, %p570
      %p572 = scmp.ne.s32.totalorder %s560, %s561
      %p573 = scmp.eq.s32.totalorder %s53, 1
      %p574 = por %p572, %p573
      %p576 = scmp.ne.s32.totalorder %s561, %s575
      %p577 = scmp.eq.s32.totalorder %s53, 0
      %p578 = por %p576, %p577
      %s579 = ssub.s32 %s47, %s54
      %p580 = scmp.eq.s32.totalorder %s579, 0
      %s582 = sadd.s32 %s581, 1
      %s583 = scalar_select %p580, %s581, %s582
      %p586 = pneg %p580
      %p587 = scmp.eq.s32.totalorder %s47, 1
      %p588 = por %p586, %p587
      %p589 = scmp.ne.s32.totalorder %s581, %s584
      %p590 = scmp.eq.s32.totalorder %s47, 0
      %p591 = por %p589, %p590
      %p592 = scmp.ne.s32.totalorder %s581, %s584
      %p593 = scmp.eq.s32.totalorder %s52, 1
      %p594 = por %p592, %p593
      %p595 = scmp.ne.s32.totalorder %s584, %s585
      %p596 = scmp.eq.s32.totalorder %s52, 0
      %p597 = por %p595, %p596
      %p598 = scmp.ne.s32.totalorder %s584, %s585
      %p599 = scmp.eq.s32.totalorder %s53, 1
      %p600 = por %p598, %p599
      %p602 = scmp.ne.s32.totalorder %s585, %s601
      %p603 = scmp.eq.s32.totalorder %s53, 0
      %p604 = por %p602, %p603
      %p605 = scmp.le.s32.totalorder 1, %s47
      %p606 = scmp.lt.s32.totalorder %s47, 3
      %p607 = pnand %p605, %p606
      %p608 = pneg %p607
      // Predicated region
      $region9: #{decoder_block.1} parent=5 // pred_check
        _
      $region10: #{decoder_block.1} parent=5 // pred_check_branch
        %610 = sbr.rel (%p607) target = $region12
      $region11: #{decoder_block.1} parent=5 // pred_region
        %s611 = ssub.s32 %s47, 1
        // Predicated region
        $region13: #{decoder_block.1} parent=11 // pred_check
          %p612 = pneg %p172
        $region14: #{decoder_block.1} parent=11 // pred_check_branch
          %614 = sbr.rel (%p612) target = $region16
        $region15: #{decoder_block.1} parent=11 // pred_region
          %s616 = ssub.s32 16, 16
          %617 = vsyncadd [#allocation7], %s616
          %s619 = sshll.u32 [#allocation8], 4
          %s620 = int_to_ptr.vmem [resolvable:$true] %s619
          %622 = dma.hbm_to_vmem [thread:$0]  %s4, 16, %s620, [#allocation7]
        $region16: #{decoder_block.1} parent=11 // pred_fallthru
          _
        // Predicated region
        $region17: #{decoder_block.1} parent=11 // pred_check
          %p623 = pneg %p193
        $region18: #{decoder_block.1} parent=11 // pred_check_branch
          %625 = sbr.rel (%p623) target = $region20
        $region19: #{decoder_block.1} parent=11 // pred_region
          %s627 = ssub.s32 16, 16
          %628 = vsyncadd [#allocation10], %s627
          %s630 = sshll.u32 [#allocation9], 4
          %s631 = int_to_ptr.vmem [resolvable:$true] %s630
          %633 = dma.hbm_to_vmem [thread:$0]  %s5, 16, %s631, [#allocation10]
        $region20: #{decoder_block.1} parent=11 // pred_fallthru
          _
        // Predicated region
        $region21: #{decoder_block.1} parent=11 // pred_check
          %p634 = pneg %p214
        $region22: #{decoder_block.1} parent=11 // pred_check_branch
          %636 = sbr.rel (%p634) target = $region24
        $region23: #{decoder_block.1} parent=11 // pred_region
          _
        $region24: #{decoder_block.1} parent=11 // pred_fallthru
          _
        // Predicated region
        $region25: #{decoder_block.1} parent=11 // pred_check
          %p637 = pneg %p235
        $region26: #{decoder_block.1} parent=11 // pred_check_branch
          %639 = sbr.rel (%p637) target = $region28
        $region27: #{decoder_block.1} parent=11 // pred_region
          %s641 = ssub.s32 16, 16
          %642 = vsyncadd [#allocation10], %s641
          %s644 = sshll.u32 [#allocation11], 4
          %s645 = int_to_ptr.vmem [resolvable:$true] %s644
          %647 = dma.hbm_to_vmem [thread:$0]  %s7, 16, %s645, [#allocation10]
        $region28: #{decoder_block.1} parent=11 // pred_fallthru
          _
        // Predicated region
        $region29: #{decoder_block.1} parent=11 // pred_check
          %p648 = pneg %p256
        $region30: #{decoder_block.1} parent=11 // pred_check_branch
          %650 = sbr.rel (%p648) target = $region32
        $region31: #{decoder_block.1} parent=11 // pred_region
          _
        $region32: #{decoder_block.1} parent=11 // pred_fallthru
          _
        // Predicated region
        $region33: #{decoder_block.1} parent=11 // pred_check
          %p651 = pneg %p277
        $region34: #{decoder_block.1} parent=11 // pred_check_branch
          %653 = sbr.rel (%p651) target = $region36
        $region35: #{decoder_block.1} parent=11 // pred_region
          %s655 = ssub.s32 16, 16
          %656 = vsyncadd [#allocation13], %s655
          %s658 = sshll.u32 [#allocation12], 4
          %s659 = int_to_ptr.vmem [resolvable:$true] %s658
          %661 = dma.hbm_to_vmem [thread:$0]  %s9, 16, %s659, [#allocation13]
        $region36: #{decoder_block.1} parent=11 // pred_fallthru
          _
        // Predicated region
        $region37: #{decoder_block.1} parent=11 // pred_check
          %p662 = pneg %p298
        $region38: #{decoder_block.1} parent=11 // pred_check_branch
          %664 = sbr.rel (%p662) target = $region40
        $region39: #{decoder_block.1} parent=11 // pred_region
          %s666 = ssub.s32 16, 16
          %667 = vsyncadd [#allocation13], %s666
          %s669 = sshll.u32 [#allocation14], 4
          %s670 = int_to_ptr.vmem [resolvable:$true] %s669
          %672 = dma.hbm_to_vmem [thread:$0]  %s10, 16, %s670, [#allocation13]
        $region40: #{decoder_block.1} parent=11 // pred_fallthru
          _
        // Predicated region
        $region41: #{decoder_block.1} parent=11 // pred_check
          %p673 = pneg %p319
        $region42: #{decoder_block.1} parent=11 // pred_check_branch
          %675 = sbr.rel (%p673) target = $region44
        $region43: #{decoder_block.1} parent=11 // pred_region
          %s677 = ssub.s32 16, 16
          %678 = vsyncadd [#allocation16], %s677
          %s680 = sshll.u32 [#allocation15], 4
          %s681 = int_to_ptr.vmem [resolvable:$true] %s680
          %683 = dma.hbm_to_vmem [thread:$0]  %s11, 16, %s681, [#allocation16]
        $region44: #{decoder_block.1} parent=11 // pred_fallthru
          _
        // Predicated region
        $region45: #{decoder_block.1} parent=11 // pred_check
          %p684 = pneg %p340
        $region46: #{decoder_block.1} parent=11 // pred_check_branch
          %686 = sbr.rel (%p684) target = $region48
        $region47: #{decoder_block.1} parent=11 // pred_region
          %s688 = ssub.s32 256, 256
          %689 = vsyncadd [#allocation16], %s688
          %s690 = sshll.u32 [#allocation17], 4
          %s691 = int_to_ptr.vmem [resolvable:$true] %s690
          %696 = dma.hbm_to_vmem [thread:$0]  %s12, 256, %s691, [#allocation16], 64, 64, 4
        $region48: #{decoder_block.1} parent=11 // pred_fallthru
          _
        // Predicated region
        $region49: #{decoder_block.1} parent=11 // pred_check
          %p697 = pneg %p361
        $region50: #{decoder_block.1} parent=11 // pred_check_branch
          %699 = sbr.rel (%p697) target = $region52
        $region51: #{decoder_block.1} parent=11 // pred_region
          %s701 = ssub.s32 16, 16
          %702 = vsyncadd [#allocation19], %s701
          %s704 = sshll.u32 [#allocation18], 4
          %s705 = int_to_ptr.vmem [resolvable:$true] %s704
          %707 = dma.hbm_to_vmem [thread:$0]  %s13, 16, %s705, [#allocation19]
        $region52: #{decoder_block.1} parent=11 // pred_fallthru
          _
        // Predicated region
        $region53: #{decoder_block.1} parent=11 // pred_check
          %p708 = pneg %p382
        $region54: #{decoder_block.1} parent=11 // pred_check_branch
          %710 = sbr.rel (%p708) target = $region56
        $region55: #{decoder_block.1} parent=11 // pred_region
          %s712 = ssub.s32 256, 256
          %713 = vsyncadd [#allocation19], %s712
          %s714 = sshll.u32 [#allocation20], 4
          %s715 = int_to_ptr.vmem [resolvable:$true] %s714
          %720 = dma.hbm_to_vmem [thread:$0]  %s14, 256, %s715, [#allocation19], 64, 64, 4
        $region56: #{decoder_block.1} parent=11 // pred_fallthru
          _
        // Predicated region
        $region57: #{decoder_block.1} parent=11 // pred_check
          %p721 = pneg %p403
        $region58: #{decoder_block.1} parent=11 // pred_check_branch
          %723 = sbr.rel (%p721) target = $region60
        $region59: #{decoder_block.1} parent=11 // pred_region
          %s725 = ssub.s32 16, 16
          %726 = vsyncadd [#allocation22], %s725
          %s728 = sshll.u32 [#allocation21], 4
          %s729 = int_to_ptr.vmem [resolvable:$true] %s728
          %731 = dma.hbm_to_vmem [thread:$0]  %s15, 16, %s729, [#allocation22]
        $region60: #{decoder_block.1} parent=11 // pred_fallthru
          _
        // Predicated region
        $region61: #{decoder_block.1} parent=11 // pred_check
          %p732 = pneg %p424
        $region62: #{decoder_block.1} parent=11 // pred_check_branch
          %734 = sbr.rel (%p732) target = $region64
        $region63: #{decoder_block.1} parent=11 // pred_region
          %s736 = ssub.s32 256, 256
          %737 = vsyncadd [#allocation22], %s736
          %s738 = sshll.u32 [#allocation23], 4
          %s739 = int_to_ptr.vmem [resolvable:$true] %s738
          %744 = dma.hbm_to_vmem [thread:$0]  %s16, 256, %s739, [#allocation22], 64, 64, 4
        $region64: #{decoder_block.1} parent=11 // pred_fallthru
          _
        // Predicated region
        $region65: #{decoder_block.1} parent=11 // pred_check
          %p745 = pneg %p445
        $region66: #{decoder_block.1} parent=11 // pred_check_branch
          %747 = sbr.rel (%p745) target = $region68
        $region67: #{decoder_block.1} parent=11 // pred_region
          %s749 = ssub.s32 16, 16
          %750 = vsyncadd [#allocation25], %s749
          %s752 = sshll.u32 [#allocation24], 4
          %s753 = int_to_ptr.vmem [resolvable:$true] %s752
          %755 = dma.hbm_to_vmem [thread:$0]  %s17, 16, %s753, [#allocation25]
        $region68: #{decoder_block.1} parent=11 // pred_fallthru
          _
        // Predicated region
        $region69: #{decoder_block.1} parent=11 // pred_check
          %p756 = pneg %p466
        $region70: #{decoder_block.1} parent=11 // pred_check_branch
          %758 = sbr.rel (%p756) target = $region72
        $region71: #{decoder_block.1} parent=11 // pred_region
          %s760 = ssub.s32 16, 16
          %761 = vsyncadd [#allocation25], %s760
          %s763 = sshll.u32 [#allocation26], 4
          %s764 = int_to_ptr.vmem [resolvable:$true] %s763
          %766 = dma.hbm_to_vmem [thread:$0]  %s18, 16, %s764, [#allocation25]
        $region72: #{decoder_block.1} parent=11 // pred_fallthru
          _
        // Predicated region
        $region73: #{decoder_block.1} parent=11 // pred_check
          %p767 = pneg %p487
        $region74: #{decoder_block.1} parent=11 // pred_check_branch
          %769 = sbr.rel (%p767) target = $region76
        $region75: #{decoder_block.1} parent=11 // pred_region
          %s771 = ssub.s32 16, 16
          %772 = vsyncadd [#allocation28], %s771
          %s774 = sshll.u32 [#allocation27], 4
          %s775 = int_to_ptr.vmem [resolvable:$true] %s774
          %777 = dma.hbm_to_vmem [thread:$0]  %s19, 16, %s775, [#allocation28]
        $region76: #{decoder_block.1} parent=11 // pred_fallthru
          _
        // Predicated region
        $region77: #{decoder_block.1} parent=11 // pred_check
          %p778 = pneg %p508
        $region78: #{decoder_block.1} parent=11 // pred_check_branch
          %780 = sbr.rel (%p778) target = $region80
        $region79: #{decoder_block.1} parent=11 // pred_region
          %s782 = ssub.s32 256, 256
          %783 = vsyncadd [#allocation28], %s782
          %s784 = sshll.u32 [#allocation29], 4
          %s785 = int_to_ptr.vmem [resolvable:$true] %s784
          %790 = dma.hbm_to_vmem [thread:$0]  %s20, 256, %s785, [#allocation28], 64, 64, 4
        $region80: #{decoder_block.1} parent=11 // pred_fallthru
          _
        // Predicated region
        $region81: #{decoder_block.1} parent=11 // pred_check
          %p791 = pneg %p529
        $region82: #{decoder_block.1} parent=11 // pred_check_branch
          %793 = sbr.rel (%p791) target = $region84
        $region83: #{decoder_block.1} parent=11 // pred_region
          %s795 = ssub.s32 16, 16
          %796 = vsyncadd [#allocation31], %s795
          %s798 = sshll.u32 [#allocation30], 4
          %s799 = int_to_ptr.vmem [resolvable:$true] %s798
          %801 = dma.hbm_to_vmem [thread:$0]  %s21, 16, %s799, [#allocation31]
        $region84: #{decoder_block.1} parent=11 // pred_fallthru
          _
        // Predicated region
        $region85: #{decoder_block.1} parent=11 // pred_check
          %p802 = pneg %p550
        $region86: #{decoder_block.1} parent=11 // pred_check_branch
          %804 = sbr.rel (%p802) target = $region88
        $region87: #{decoder_block.1} parent=11 // pred_region
          _
        $region88: #{decoder_block.1} parent=11 // pred_fallthru
          _
        // Predicated region
        $region89: #{decoder_block.1} parent=11 // pred_check
          %p805 = pneg %p571
        $region90: #{decoder_block.1} parent=11 // pred_check_branch
          %807 = sbr.rel (%p805) target = $region92
        $region91: #{decoder_block.1} parent=11 // pred_region
          %s809 = ssub.s32 16, 16
          %810 = vsyncadd [#allocation31], %s809
          %s812 = sshll.u32 [#allocation32], 4
          %s813 = int_to_ptr.vmem [resolvable:$true] %s812
          %815 = dma.hbm_to_vmem [thread:$0]  %s23, 16, %s813, [#allocation31]
        $region92: #{decoder_block.1} parent=11 // pred_fallthru
          _
      $region12: #{decoder_block.1} parent=5 // pred_fallthru
        _
      %p816 = scmp.lt.s32.totalorder %s47, 2
      // Predicated region
      $region93: #{decoder_block.1} parent=5 // pred_check
        %p817 = pneg %p816
      $region94: #{decoder_block.1} parent=5 // pred_check_branch
        %819 = sbr.rel (%p817) target = $region96
      $region95: #{decoder_block.1} parent=5 // pred_region
        // Predicated region
        $region97: #{decoder_block.1} parent=95 // pred_check
          %p820 = pneg %p67
        $region98: #{decoder_block.1} parent=95 // pred_check_branch
          %822 = sbr.rel (%p820) target = $region100
        $region99: #{decoder_block.1} parent=95 // pred_region
          %p823 = scmp.lt.s32.totalorder %s47, 1
          %s824 = scalar_select %p823, %s47, 1
          %s825 = smul.addr %s824, 8
          %s826 = scalar_lea.vmem %s0, %s825
        $region100: #{decoder_block.1} parent=95 // pred_fallthru
          _
        // Predicated region
        $region101: #{decoder_block.1} parent=95 // pred_check
          %p827 = pneg %p93
        $region102: #{decoder_block.1} parent=95 // pred_check_branch
          %829 = sbr.rel (%p827) target = $region104
        $region103: #{decoder_block.1} parent=95 // pred_region
          %p830 = scmp.lt.s32.totalorder %s47, 1
          %s831 = scalar_select %p830, %s47, 1
          %s832 = smul.addr %s831, 2
          %s833 = smul.addr %s832, 8
          %s834 = scalar_lea.vmem %s1, %s833
        $region104: #{decoder_block.1} parent=95 // pred_fallthru
          _
        // Predicated region
        $region105: #{decoder_block.1} parent=95 // pred_check
          %p835 = pneg %p119
        $region106: #{decoder_block.1} parent=95 // pred_check_branch
          %837 = sbr.rel (%p835) target = $region108
        $region107: #{decoder_block.1} parent=95 // pred_region
          %s838 = sand.u32 %s109, 1
          %s839 = scalar_lea.sflag [#allocation4], %s838
          %s840 = sand.u32 %s109, 1
          %s841 = smul.addr %s840, 8
          %s842 = scalar_lea.vmem [#allocation3], %s841
          %s844 = ssub.s32 128, 128
          %845 = vsyncadd %s839, %s844
          %s846 = smul.addr %s47, 128
          %s847 = scalar_lea.hbm %s2, %s846
          %s849 = sshll.u32 %s842, 4
          %s850 = int_to_ptr.vmem [resolvable:$true] %s849
          %852 = dma.hbm_to_vmem [thread:$0]  %s847, 128, %s850, %s839
        $region108: #{decoder_block.1} parent=95 // pred_fallthru
          _
        // Predicated region
        $region109: #{decoder_block.1} parent=95 // pred_check
          %p853 = pneg %p145
        $region110: #{decoder_block.1} parent=95 // pred_check_branch
          %855 = sbr.rel (%p853) target = $region112
        $region111: #{decoder_block.1} parent=95 // pred_region
          %s856 = sand.u32 %s47, 1
          %s857 = scalar_lea.sflag [#allocation7], %s856
          %s858 = sand.u32 %s135, 1
          %s859 = smul.addr %s858, 8
          %s860 = scalar_lea.vmem [#allocation6], %s859
          %s862 = ssub.s32 128, 128
          %863 = vsyncadd %s857, %s862
          %s864 = smul.addr %s47, 128
          %s865 = scalar_lea.hbm %s3, %s864
          %s867 = sshll.u32 %s860, 4
          %s868 = int_to_ptr.vmem [resolvable:$true] %s867
          %870 = dma.hbm_to_vmem [thread:$0]  %s865, 128, %s868, %s857
        $region112: #{decoder_block.1} parent=95 // pred_fallthru
          _
      $region96: #{decoder_block.1} parent=5 // pred_fallthru
        _
      %p871 = scmp.le.s32.totalorder 1, %s47
      %p872 = scmp.lt.s32.totalorder %s47, 3
      %p873 = pnand %p871, %p872
      %p874 = pneg %p873
      // Predicated region
      $region113: #{decoder_block.1} parent=5 // pred_check
        _
      $region114: #{decoder_block.1} parent=5 // pred_check_branch
        %876 = sbr.rel (%p873) target = $region116
      $region115: #{decoder_block.1} parent=5 // pred_region
        %s877 = ssub.s32 %s47, 1
        %s878 = sand.u32 %s112, 1
        %s879 = scalar_lea.sflag [#allocation4], %s878
        %s880 = sand.u32 %s112, 1
        %s881 = smul.addr %s880, 8
        %s882 = scalar_lea.vmem [#allocation3], %s881
        // Predicated region
        $region117: #{decoder_block.1} parent=115 // pred_check
          %p883 = pneg %p125
        $region118: #{decoder_block.1} parent=115 // pred_check_branch
          %885 = sbr.rel (%p883) target = $region120
        $region119: #{decoder_block.1} parent=115 // pred_region
          %886 = dma.done %s879, 128
        $region120: #{decoder_block.1} parent=115 // pred_fallthru
          _
        %s887 = sand.u32 %s52, 1
        %s888 = scalar_lea.sflag [#allocation7], %s887
        %s889 = sand.u32 %s138, 1
        %s890 = smul.addr %s889, 8
        %s891 = scalar_lea.vmem [#allocation6], %s890
        // Predicated region
        $region121: #{decoder_block.1} parent=115 // pred_check
          %p892 = pneg %p151
        $region122: #{decoder_block.1} parent=115 // pred_check_branch
          %894 = sbr.rel (%p892) target = $region124
        $region123: #{decoder_block.1} parent=115 // pred_region
          %895 = dma.done %s888, 128
        $region124: #{decoder_block.1} parent=115 // pred_fallthru
          _
        // Predicated region
        $region125: #{decoder_block.1} parent=115 // pred_check
          %p896 = pneg %p172
        $region126: #{decoder_block.1} parent=115 // pred_check_branch
          %898 = sbr.rel (%p896) target = $region128
        $region127: #{decoder_block.1} parent=115 // pred_region
          %899 = dma.done [#allocation7], 16
        $region128: #{decoder_block.1} parent=115 // pred_fallthru
          _
        // Predicated region
        $region129: #{decoder_block.1} parent=115 // pred_check
          %p900 = pneg %p193
        $region130: #{decoder_block.1} parent=115 // pred_check_branch
          %902 = sbr.rel (%p900) target = $region132
        $region131: #{decoder_block.1} parent=115 // pred_region
          %903 = dma.done [#allocation10], 16
        $region132: #{decoder_block.1} parent=115 // pred_fallthru
          _
        // Predicated region
        $region133: #{decoder_block.1} parent=115 // pred_check
          %p904 = pneg %p235
        $region134: #{decoder_block.1} parent=115 // pred_check_branch
          %906 = sbr.rel (%p904) target = $region136
        $region135: #{decoder_block.1} parent=115 // pred_region
          %907 = dma.done [#allocation10], 16
        $region136: #{decoder_block.1} parent=115 // pred_fallthru
          _
        // Predicated region
        $region137: #{decoder_block.1} parent=115 // pred_check
          %p908 = pneg %p277
        $region138: #{decoder_block.1} parent=115 // pred_check_branch
          %910 = sbr.rel (%p908) target = $region140
        $region139: #{decoder_block.1} parent=115 // pred_region
          %911 = dma.done [#allocation13], 16
        $region140: #{decoder_block.1} parent=115 // pred_fallthru
          _
        // Predicated region
        $region141: #{decoder_block.1} parent=115 // pred_check
          %p912 = pneg %p298
        $region142: #{decoder_block.1} parent=115 // pred_check_branch
          %914 = sbr.rel (%p912) target = $region144
        $region143: #{decoder_block.1} parent=115 // pred_region
          %915 = dma.done [#allocation13], 16
        $region144: #{decoder_block.1} parent=115 // pred_fallthru
          _
        // Predicated region
        $region145: #{decoder_block.1} parent=115 // pred_check
          %p916 = pneg %p319
        $region146: #{decoder_block.1} parent=115 // pred_check_branch
          %918 = sbr.rel (%p916) target = $region148
        $region147: #{decoder_block.1} parent=115 // pred_region
          %919 = dma.done [#allocation16], 16
        $region148: #{decoder_block.1} parent=115 // pred_fallthru
          _
        // Predicated region
        $region149: #{decoder_block.1} parent=115 // pred_check
          %p920 = pneg %p340
        $region150: #{decoder_block.1} parent=115 // pred_check_branch
          %922 = sbr.rel (%p920) target = $region152
        $region151: #{decoder_block.1} parent=115 // pred_region
          %923 = dma.done [#allocation16], 256
        $region152: #{decoder_block.1} parent=115 // pred_fallthru
          _
        // Predicated region
        $region153: #{decoder_block.1} parent=115 // pred_check
          %p924 = pneg %p361
        $region154: #{decoder_block.1} parent=115 // pred_check_branch
          %926 = sbr.rel (%p924) target = $region156
        $region155: #{decoder_block.1} parent=115 // pred_region
          %927 = dma.done [#allocation19], 16
        $region156: #{decoder_block.1} parent=115 // pred_fallthru
          _
        // Predicated region
        $region157: #{decoder_block.1} parent=115 // pred_check
          %p928 = pneg %p382
        $region158: #{decoder_block.1} parent=115 // pred_check_branch
          %930 = sbr.rel (%p928) target = $region160
        $region159: #{decoder_block.1} parent=115 // pred_region
          %931 = dma.done [#allocation19], 256
        $region160: #{decoder_block.1} parent=115 // pred_fallthru
          _
        // Predicated region
        $region161: #{decoder_block.1} parent=115 // pred_check
          %p932 = pneg %p403
        $region162: #{decoder_block.1} parent=115 // pred_check_branch
          %934 = sbr.rel (%p932) target = $region164
        $region163: #{decoder_block.1} parent=115 // pred_region
          %935 = dma.done [#allocation22], 16
        $region164: #{decoder_block.1} parent=115 // pred_fallthru
          _
        // Predicated region
        $region165: #{decoder_block.1} parent=115 // pred_check
          %p936 = pneg %p424
        $region166: #{decoder_block.1} parent=115 // pred_check_branch
          %938 = sbr.rel (%p936) target = $region168
        $region167: #{decoder_block.1} parent=115 // pred_region
          %939 = dma.done [#allocation22], 256
        $region168: #{decoder_block.1} parent=115 // pred_fallthru
          _
        // Predicated region
        $region169: #{decoder_block.1} parent=115 // pred_check
          %p940 = pneg %p445
        $region170: #{decoder_block.1} parent=115 // pred_check_branch
          %942 = sbr.rel (%p940) target = $region172
        $region171: #{decoder_block.1} parent=115 // pred_region
          %943 = dma.done [#allocation25], 16
        $region172: #{decoder_block.1} parent=115 // pred_fallthru
          _
        // Predicated region
        $region173: #{decoder_block.1} parent=115 // pred_check
          %p944 = pneg %p466
        $region174: #{decoder_block.1} parent=115 // pred_check_branch
          %946 = sbr.rel (%p944) target = $region176
        $region175: #{decoder_block.1} parent=115 // pred_region
          %947 = dma.done [#allocation25], 16
        $region176: #{decoder_block.1} parent=115 // pred_fallthru
          _
        // Predicated region
        $region177: #{decoder_block.1} parent=115 // pred_check
          %p948 = pneg %p487
        $region178: #{decoder_block.1} parent=115 // pred_check_branch
          %950 = sbr.rel (%p948) target = $region180
        $region179: #{decoder_block.1} parent=115 // pred_region
          %951 = dma.done [#allocation28], 16
        $region180: #{decoder_block.1} parent=115 // pred_fallthru
          _
        // Predicated region
        $region181: #{decoder_block.1} parent=115 // pred_check
          %p952 = pneg %p508
        $region182: #{decoder_block.1} parent=115 // pred_check_branch
          %954 = sbr.rel (%p952) target = $region184
        $region183: #{decoder_block.1} parent=115 // pred_region
          %955 = dma.done [#allocation28], 256
        $region184: #{decoder_block.1} parent=115 // pred_fallthru
          _
        // Predicated region
        $region185: #{decoder_block.1} parent=115 // pred_check
          %p956 = pneg %p529
        $region186: #{decoder_block.1} parent=115 // pred_check_branch
          %958 = sbr.rel (%p956) target = $region188
        $region187: #{decoder_block.1} parent=115 // pred_region
          %959 = dma.done [#allocation31], 16
        $region188: #{decoder_block.1} parent=115 // pred_fallthru
          _
        // Predicated region
        $region189: #{decoder_block.1} parent=115 // pred_check
          %p960 = pneg %p571
        $region190: #{decoder_block.1} parent=115 // pred_check_branch
          %962 = sbr.rel (%p960) target = $region192
        $region191: #{decoder_block.1} parent=115 // pred_region
          %963 = dma.done [#allocation31], 16
        $region192: #{decoder_block.1} parent=115 // pred_fallthru
          _
        %p964 = scmp.lt.s32.totalorder %s52, 1
        %s965 = scalar_select %p964, %s52, 1
        %s966 = smul.addr %s965, 8
        %s967 = scalar_lea.vmem %s0, %s966
        %p968 = pneg %p73
        %p969 = pneg %p70
        %p970 = scmp.lt.s32.totalorder %s52, 1
        %s971 = scalar_select %p970, %s52, 1
        %s972 = smul.addr %s971, 2
        %s973 = smul.addr %s972, 8
        %s974 = scalar_lea.vmem %s1, %s973
        %p975 = pneg %p99
        %p976 = pneg %p96
        %s977 = sand.u32 %s112, 1
        %s978 = scalar_lea.sflag [#allocation4], %s977
        %s979 = sand.u32 %s112, 1
        %s980 = smul.addr %s979, 8
        %s981 = scalar_lea.vmem [#allocation3], %s980
        %p982 = pneg %p125
        %p983 = pneg %p122
        %s984 = sand.u32 %s52, 1
        %s985 = scalar_lea.sflag [#allocation7], %s984
        %s986 = sand.u32 %s138, 1
        %s987 = smul.addr %s986, 8
        %s988 = scalar_lea.vmem [#allocation6], %s987
        %p989 = pneg %p151
        %p990 = pneg %p148
        %p991 = pneg %p172
        %p992 = pneg %p169
        %p993 = pneg %p193
        %p994 = pneg %p190
        %p995 = pneg %p214
        %p996 = pneg %p211
        %p997 = pneg %p235
        %p998 = pneg %p232
        %p999 = pneg %p256
        %p1000 = pneg %p253
        %p1001 = pneg %p277
        %p1002 = pneg %p274
        %p1003 = pneg %p298
        %p1004 = pneg %p295
        %p1005 = pneg %p319
        %p1006 = pneg %p316
        %p1007 = pneg %p340
        %p1008 = pneg %p337
        %p1009 = pneg %p361
        %p1010 = pneg %p358
        %p1011 = pneg %p382
        %p1012 = pneg %p379
        %p1013 = pneg %p403
        %p1014 = pneg %p400
        %p1015 = pneg %p424
        %p1016 = pneg %p421
        %p1017 = pneg %p445
        %p1018 = pneg %p442
        %p1019 = pneg %p466
        %p1020 = pneg %p463
        %p1021 = pneg %p487
        %p1022 = pneg %p484
        %p1023 = pneg %p508
        %p1024 = pneg %p505
        %p1025 = pneg %p529
        %p1026 = pneg %p526
        %p1027 = pneg %p550
        %p1028 = pneg %p547
        %p1029 = pneg %p571
        %p1030 = pneg %p568
        %p1031 = pneg %p597
        %p1032 = pneg %p594
        %s1033 = sand.u32 %s584, 1
        %s1034 = scalar_lea.sflag [#allocation5], %s1033
        %s1035 = sand.u32 %s584, 1
        %s1036 = smul.addr %s1035, 8
        %s1037 = scalar_lea.vmem [#allocation33], %s1036
        %p1038 = scmp.lt.s32.totalorder %s52, 1
        %s1039 = scalar_select %p1038, %s52, 1
        %s1040 = smul.addr %s1039, 8
        %s1041 = scalar_lea.vmem %s0, %s1040
        %p1042 = scmp.lt.s32.totalorder %s52, 1
        %s1043 = scalar_select %p1042, %s52, 1
        %s1044 = smul.addr %s1043, 2
        %s1045 = smul.addr %s1044, 8
        %s1046 = scalar_lea.vmem %s1, %s1045
        %v1048 = vld [vmem:[%s1041] sm:$0xff]
        %v1049 = vld [vmem:[%s882] sm:$0xff]
        %vm1050 = vcmp.eq.f32.partialorder %v1049, 0.0
        %v1051 = vsel %vm1050, -1e+09, 0.0
        %v1052 = vld [vmem:[%s891] sm:$0xff]
        %vm1053 = vcmp.eq.f32.partialorder %v1052, 0.0
        %v1054 = vsel %vm1053, -1e+09, 0.0
        %v1055 = vld [vmem:[#allocation8] sm:$0x1]
        %v1056 = vld [vmem:[#allocation9] sm:$0x1]
        %vm1057 = vcmask 261120
        %v1058 = vsel %vm1057, %v1048, 0.0
        %1059 = vadd.xlane.f32.xlu0 %v1058
        %v1060 = vpop.xlane.xlu0 %1059
        %v1061 = vrcp.pop 32.0
        %v1062 = vmul.f32 %v1060, %v1061
        %v1063 = vsub.f32 %v1048, %v1062
        %v1064 = vmul.f32 %v1063, %v1063
        %v1065 = vsel %vm1057, %v1064, 0.0
        %1066 = vadd.xlane.f32.xlu0 %v1065
        %v1067 = vpop.xlane.xlu0 %1066
        %v1068 = vmul.f32 %v1067, %v1061
        %v1069 = vadd.f32 %v1068, 1e-05
        %v1070 = vrsqrt.pop %v1069
        %v1071 = vmul.f32 %v1063, %v1070
        %v1073 = vlaneseq
        %v1074 = vshrl.u32 %v1073, 7
        %v1075 = vsub.s32 0, %v1074
        %v1076 = vrot.slane %v1055, %v1075
        %v1078 = vmul.f32 %v1071, %v1076
        %v1080 = vlaneseq
        %v1081 = vshrl.u32 %v1080, 7
        %v1082 = vsub.s32 0, %v1081
        %v1083 = vrot.slane %v1056, %v1082
        %v1085 = vadd.f32 %v1078, %v1083
        %v1086 = vpack.c.bf16 %v1085, %v1085
        %v1087 = vld [vmem:[%s6] sm:$0xf]
        %v1088 = vld [vmem:[%s6 + $0x4] sm:$0xf]
        %v1089 = vld [vmem:[%s6 + $0x8] sm:$0xf]
        %v1090 = vld [vmem:[%s6 + $0xc] sm:$0xf]
        %v1091 = vld [vmem:[#allocation11] sm:$0x1]
        %v1093 = vlaneseq
        %v1094 = vshrl.u32 %v1093, 7
        %v1095 = vsub.s32 0, %v1094
        %v1096 = vrot.slane %v1091, %v1095
        %v1102 = vunpack.c.l.b16 %v1087
        %v1103 = vunpack.c.l.b16 %v1088
        %v1104 = vunpack.c.l.b16 %v1089
        %v1105 = vunpack.c.l.b16 %v1090
        %v1106 = vpack.c.b16 %v1103, %v1102
        %v1107 = vpack.c.b16 %v1105, %v1104
        %v1111 = vsel %vm1057, %v1086, 0
        %1113 = vmatprep.subr.bf16.mxu0 0
        %1114 = vmatpush1.bf16.msra.mxu0 0
        %1115 = vmatprep.subr.bf16.mxu0 0
        %1116 = vmatpush1.bf16.msra.mxu0 0
        %1117 = vmatprep.subr.bf16.mxu0 0
        %1118 = vmatpush1.bf16.msra.mxu0 0
        %1119 = vmatprep.subr.bf16.mxu0 0
        %1120 = vmatpush1.bf16.msra.mxu0 0
        %1121 = vmatprep.subr.bf16.mxu0 0
        %1122 = vmatpush1.bf16.msra.mxu0 0
        %1123 = vmatprep.subr.bf16.mxu0 0
        %1124 = vmatpush1.bf16.msra.mxu0 0
        %1125 = vmatprep.subr.bf16.mxu0 0
        %1126 = vmatpush1.bf16.msra.mxu0 %v1107
        %1127 = vmatprep.subr.bf16.mxu0 0
        %1128 = vmatpush1.bf16.msra.mxu0 %v1106
        %1129 = vmatprep.subr.bf16.mxu0 0
        %1130 = vmatpush2.bf16.msra.mxu0 0
        %1131 = vmatprep.subr.bf16.mxu0 0
        %1132 = vmatpush2.bf16.msra.mxu0 0
        %1133 = vmatprep.subr.bf16.mxu0 0
        %1134 = vmatpush2.bf16.msra.mxu0 0
        %1135 = vmatprep.subr.bf16.mxu0 0
        %1136 = vmatpush2.bf16.msra.mxu0 0
        %1137 = vmatprep.subr.bf16.mxu0 0
        %1138 = vmatpush2.bf16.msra.mxu0 0
        %1139 = vmatprep.subr.bf16.mxu0 0
        %1140 = vmatpush2.bf16.msra.mxu0 0
        %1141 = vmatprep.subr.bf16.mxu0 0
        %1142 = vmatpush2.bf16.msra.mxu0 0
        %1143 = vmatprep.subr.bf16.mxu0 0
        %1144 = vmatpush2.bf16.msra.mxu0 0
        %1145 = vmatprep.mubr.bf16.mxu0 0
        %1146 = vmatmul.mubr.bf16.gmra.mxu0 %v1111
        %v1147 = vpop.f32.mrf.mxu0
        %v1148 = vadd.f32 %v1096, %v1147
        %v1149 = vpop.f32.mrf.mxu0
        %v1150 = vpop.f32.mrf.mxu0
        %v1151 = vpop.f32.mrf.mxu0
        %1152 = vdwg.mxu0
        %v1153 = vpack.c.bf16 %v1148, %v1148
        %1155 = vrot.lane.b32.xlu0 %v1153, 96
        %v1156 = vpop.permute.xlu0 %1155
        %vm1157 = vcmask 64512
        %v1159 = vsel %vm1157, %v1153, 0
        %v1162 = vsel %vm1157, %v1156, 0
        %1164 = vmatprep.subr.bf16.mxu0 0
        %1165 = vmatpush1.bf16.xpose.msra.mxu0 0
        %1166 = vmatprep.subr.bf16.mxu0 0
        %1167 = vmatpush1.bf16.xpose.msra.mxu0 0
        %1168 = vmatprep.subr.bf16.mxu0 0
        %1169 = vmatpush1.bf16.xpose.msra.mxu0 0
        %1170 = vmatprep.subr.bf16.mxu0 0
        %1171 = vmatpush1.bf16.xpose.msra.mxu0 0
        %1172 = vmatprep.subr.bf16.mxu0 0
        %1173 = vmatpush1.bf16.xpose.msra.mxu0 0
        %1174 = vmatprep.subr.bf16.mxu0 0
        %1175 = vmatpush1.bf16.xpose.msra.mxu0 0
        %1176 = vmatprep.subr.bf16.mxu0 0
        %1177 = vmatpush1.bf16.xpose.msra.mxu0 0
        %1178 = vmatprep.subr.bf16.mxu0 0
        %1179 = vmatpush1.bf16.xpose.msra.mxu0 %v1162
        %1180 = vmatprep.subr.bf16.mxu0 0
        %1181 = vmatpush2.bf16.xpose.msra.mxu0 0
        %1182 = vmatprep.subr.bf16.mxu0 0
        %1183 = vmatpush2.bf16.xpose.msra.mxu0 0
        %1184 = vmatprep.subr.bf16.mxu0 0
        %1185 = vmatpush2.bf16.xpose.msra.mxu0 0
        %1186 = vmatprep.subr.bf16.mxu0 0
        %1187 = vmatpush2.bf16.xpose.msra.mxu0 0
        %1188 = vmatprep.subr.bf16.mxu0 0
        %1189 = vmatpush2.bf16.xpose.msra.mxu0 0
        %1190 = vmatprep.subr.bf16.mxu0 0
        %1191 = vmatpush2.bf16.xpose.msra.mxu0 0
        %1192 = vmatprep.subr.bf16.mxu0 0
        %1193 = vmatpush2.bf16.xpose.msra.mxu0 0
        %1194 = vmatprep.subr.bf16.mxu0 0
        %1195 = vmatpush2.bf16.xpose.msra.mxu0 0
        %1196 = vmatprep.mubr.bf16.mxu0 0
        %1197 = vmatmul.mubr.bf16.gmra.mxu0 %v1159
        %v1198 = vpop.f32.mrf.mxu0
        %v1199 = vadd.f32 0.0, %v1198
        %v1200 = vpop.f32.mrf.mxu0
        %v1201 = vpop.f32.mrf.mxu0
        %v1202 = vpop.f32.mrf.mxu0
        %1203 = vdwg.mxu0
        %v1204 = vmul.f32 %v1199, 0.35355338
        %v1205 = vadd.f32 %v1204, %v1051
        %v1206 = vsel %vm1157, %v1205, -inf
        %1207 = vmax.xlane.f32.xlu0 %v1206
        %v1208 = vpop.xlane.xlu0 %1207
        %v1209 = vsub.f32 %v1205, %v1208
        %v1210 = vmul.f32 %v1209, 1.442695
        %v1211 = vpow.pop %v1210
        %v1212 = vsel %vm1157, %v1211, 0.0
        %1213 = vadd.xlane.f32.xlu0 %v1212
        %v1214 = vpop.xlane.xlu0 %1213
        %v1215 = vrcp.pop %v1214
        %v1216 = vmul.f32 %v1211, %v1215
        %v1217 = vpack.c.bf16 %v1216, %v1216
        %1218 = vrot.lane.b32.xlu0 %v1153, 64
        %v1219 = vpop.permute.xlu0 %1218
        %v1221 = vsel %vm1157, %v1217, 0
        %vm1223 = vcmask 1043456
        %v1225 = vsel %vm1223, %v1219, 0
        %1227 = vmatprep.subr.bf16.mxu0 0
        %1228 = vmatpush1.bf16.msra.mxu0 0
        %1229 = vmatprep.subr.bf16.mxu0 0
        %1230 = vmatpush1.bf16.msra.mxu0 0
        %1231 = vmatprep.subr.bf16.mxu0 0
        %1232 = vmatpush1.bf16.msra.mxu0 0
        %1233 = vmatprep.subr.bf16.mxu0 0
        %1234 = vmatpush1.bf16.msra.mxu0 0
        %1235 = vmatprep.subr.bf16.mxu0 0
        %1236 = vmatpush1.bf16.msra.mxu0 0
        %1237 = vmatprep.subr.bf16.mxu0 0
        %1238 = vmatpush1.bf16.msra.mxu0 0
        %1239 = vmatprep.subr.bf16.mxu0 0
        %1240 = vmatpush1.bf16.msra.mxu0 0
        %1241 = vmatprep.subr.bf16.mxu0 0
        %1242 = vmatpush1.bf16.msra.mxu0 %v1225
        %1243 = vmatprep.subr.bf16.mxu0 0
        %1244 = vmatpush2.bf16.msra.mxu0 0
        %1245 = vmatprep.subr.bf16.mxu0 0
        %1246 = vmatpush2.bf16.msra.mxu0 0
        %1247 = vmatprep.subr.bf16.mxu0 0
        %1248 = vmatpush2.bf16.msra.mxu0 0
        %1249 = vmatprep.subr.bf16.mxu0 0
        %1250 = vmatpush2.bf16.msra.mxu0 0
        %1251 = vmatprep.subr.bf16.mxu0 0
        %1252 = vmatpush2.bf16.msra.mxu0 0
        %1253 = vmatprep.subr.bf16.mxu0 0
        %1254 = vmatpush2.bf16.msra.mxu0 0
        %1255 = vmatprep.subr.bf16.mxu0 0
        %1256 = vmatpush2.bf16.msra.mxu0 0
        %1257 = vmatprep.subr.bf16.mxu0 0
        %1258 = vmatpush2.bf16.msra.mxu0 0
        %1259 = vmatprep.mubr.bf16.mxu0 0
        %1260 = vmatmul.mubr.bf16.gmra.mxu0 %v1221
        %v1261 = vpop.f32.mrf.mxu0
        %v1262 = vadd.f32 0.0, %v1261
        %v1263 = vpop.f32.mrf.mxu0
        %v1264 = vpop.f32.mrf.mxu0
        %v1265 = vpop.f32.mrf.mxu0
        %1266 = vdwg.mxu0
        %1267 = vst.msk [vmem:[#allocation2] sm:$0xff] %vm1157, %v1262
        %1268 = vrot.lane.b32.xlu0 %v1153, 120
        %v1269 = vpop.permute.xlu0 %1268
        %1270 = vrot.lane.b32.xlu0 %v1153, 88
        %v1271 = vpop.permute.xlu0 %1270
        %v1273 = vsel %vm1157, %v1269, 0
        %v1276 = vsel %vm1157, %v1271, 0
        %1278 = vmatprep.subr.bf16.mxu0 0
        %1279 = vmatpush1.bf16.xpose.msra.mxu0 0
        %1280 = vmatprep.subr.bf16.mxu0 0
        %1281 = vmatpush1.bf16.xpose.msra.mxu0 0
        %1282 = vmatprep.subr.bf16.mxu0 0
        %1283 = vmatpush1.bf16.xpose.msra.mxu0 0
        %1284 = vmatprep.subr.bf16.mxu0 0
        %1285 = vmatpush1.bf16.xpose.msra.mxu0 0
        %1286 = vmatprep.subr.bf16.mxu0 0
        %1287 = vmatpush1.bf16.xpose.msra.mxu0 0
        %1288 = vmatprep.subr.bf16.mxu0 0
        %1289 = vmatpush1.bf16.xpose.msra.mxu0 0
        %1290 = vmatprep.subr.bf16.mxu0 0
        %1291 = vmatpush1.bf16.xpose.msra.mxu0 0
        %1292 = vmatprep.subr.bf16.mxu0 0
        %1293 = vmatpush1.bf16.xpose.msra.mxu0 %v1276
        %1294 = vmatprep.subr.bf16.mxu0 0
        %1295 = vmatpush2.bf16.xpose.msra.mxu0 0
        %1296 = vmatprep.subr.bf16.mxu0 0
        %1297 = vmatpush2.bf16.xpose.msra.mxu0 0
        %1298 = vmatprep.subr.bf16.mxu0 0
        %1299 = vmatpush2.bf16.xpose.msra.mxu0 0
        %1300 = vmatprep.subr.bf16.mxu0 0
        %1301 = vmatpush2.bf16.xpose.msra.mxu0 0
        %1302 = vmatprep.subr.bf16.mxu0 0
        %1303 = vmatpush2.bf16.xpose.msra.mxu0 0
        %1304 = vmatprep.subr.bf16.mxu0 0
        %1305 = vmatpush2.bf16.xpose.msra.mxu0 0
        %1306 = vmatprep.subr.bf16.mxu0 0
        %1307 = vmatpush2.bf16.xpose.msra.mxu0 0
        %1308 = vmatprep.subr.bf16.mxu0 0
        %1309 = vmatpush2.bf16.xpose.msra.mxu0 0
        %1310 = vmatprep.mubr.bf16.mxu0 0
        %1311 = vmatmul.mubr.bf16.gmra.mxu0 %v1273
        %v1312 = vpop.f32.mrf.mxu0
        %v1313 = vadd.f32 0.0, %v1312
        %v1314 = vpop.f32.mrf.mxu0
        %v1315 = vpop.f32.mrf.mxu0
        %v1316 = vpop.f32.mrf.mxu0
        %1317 = vdwg.mxu0
        %v1318 = vmul.f32 %v1313, 0.35355338
        %v1319 = vadd.f32 %v1318, %v1051
        %v1320 = vsel %vm1157, %v1319, -inf
        %1321 = vmax.xlane.f32.xlu0 %v1320
        %v1322 = vpop.xlane.xlu0 %1321
        %v1323 = vsub.f32 %v1319, %v1322
        %v1324 = vmul.f32 %v1323, 1.442695
        %v1325 = vpow.pop %v1324
        %v1326 = vsel %vm1157, %v1325, 0.0
        %1327 = vadd.xlane.f32.xlu0 %v1326
        %v1328 = vpop.xlane.xlu0 %1327
        %v1329 = vrcp.pop %v1328
        %v1330 = vmul.f32 %v1325, %v1329
        %v1331 = vpack.c.bf16 %v1330, %v1330
        %1332 = vrot.lane.b32.xlu0 %v1153, 56
        %v1333 = vpop.permute.xlu0 %1332
        %v1335 = vsel %vm1157, %v1331, 0
        %v1338 = vsel %vm1223, %v1333, 0
        %1340 = vmatprep.subr.bf16.mxu0 0
        %1341 = vmatpush1.bf16.msra.mxu0 0
        %1342 = vmatprep.subr.bf16.mxu0 0
        %1343 = vmatpush1.bf16.msra.mxu0 0
        %1344 = vmatprep.subr.bf16.mxu0 0
        %1345 = vmatpush1.bf16.msra.mxu0 0
        %1346 = vmatprep.subr.bf16.mxu0 0
        %1347 = vmatpush1.bf16.msra.mxu0 0
        %1348 = vmatprep.subr.bf16.mxu0 0
        %1349 = vmatpush1.bf16.msra.mxu0 0
        %1350 = vmatprep.subr.bf16.mxu0 0
        %1351 = vmatpush1.bf16.msra.mxu0 0
        %1352 = vmatprep.subr.bf16.mxu0 0
        %1353 = vmatpush1.bf16.msra.mxu0 0
        %1354 = vmatprep.subr.bf16.mxu0 0
        %1355 = vmatpush1.bf16.msra.mxu0 %v1338
        %1356 = vmatprep.subr.bf16.mxu0 0
        %1357 = vmatpush2.bf16.msra.mxu0 0
        %1358 = vmatprep.subr.bf16.mxu0 0
        %1359 = vmatpush2.bf16.msra.mxu0 0
        %1360 = vmatprep.subr.bf16.mxu0 0
        %1361 = vmatpush2.bf16.msra.mxu0 0
        %1362 = vmatprep.subr.bf16.mxu0 0
        %1363 = vmatpush2.bf16.msra.mxu0 0
        %1364 = vmatprep.subr.bf16.mxu0 0
        %1365 = vmatpush2.bf16.msra.mxu0 0
        %1366 = vmatprep.subr.bf16.mxu0 0
        %1367 = vmatpush2.bf16.msra.mxu0 0
        %1368 = vmatprep.subr.bf16.mxu0 0
        %1369 = vmatpush2.bf16.msra.mxu0 0
        %1370 = vmatprep.subr.bf16.mxu0 0
        %1371 = vmatpush2.bf16.msra.mxu0 0
        %1372 = vmatprep.mubr.bf16.mxu0 0
        %1373 = vmatmul.mubr.bf16.gmra.mxu0 %v1335
        %v1374 = vpop.f32.mrf.mxu0
        %v1375 = vadd.f32 0.0, %v1374
        %v1376 = vpop.f32.mrf.mxu0
        %v1377 = vpop.f32.mrf.mxu0
        %v1378 = vpop.f32.mrf.mxu0
        %1379 = vdwg.mxu0
        %1381 = vrot.lane.b32.xlu0 %v1375, 8
        %v1382 = vpop.permute.xlu0 %1381
        %vm1384 = vcmask 130112
        %1385 = vst.msk [vmem:[#allocation2] sm:$0xff] %vm1384, %v1382
        %1386 = vrot.lane.b32.xlu0 %v1153, 112
        %v1387 = vpop.permute.xlu0 %1386
        %1388 = vrot.lane.b32.xlu0 %v1153, 80
        %v1389 = vpop.permute.xlu0 %1388
        %v1391 = vsel %vm1157, %v1387, 0
        %v1394 = vsel %vm1157, %v1389, 0
        %1396 = vmatprep.subr.bf16.mxu0 0
        %1397 = vmatpush1.bf16.xpose.msra.mxu0 0
        %1398 = vmatprep.subr.bf16.mxu0 0
        %1399 = vmatpush1.bf16.xpose.msra.mxu0 0
        %1400 = vmatprep.subr.bf16.mxu0 0
        %1401 = vmatpush1.bf16.xpose.msra.mxu0 0
        %1402 = vmatprep.subr.bf16.mxu0 0
        %1403 = vmatpush1.bf16.xpose.msra.mxu0 0
        %1404 = vmatprep.subr.bf16.mxu0 0
        %1405 = vmatpush1.bf16.xpose.msra.mxu0 0
        %1406 = vmatprep.subr.bf16.mxu0 0
        %1407 = vmatpush1.bf16.xpose.msra.mxu0 0
        %1408 = vmatprep.subr.bf16.mxu0 0
        %1409 = vmatpush1.bf16.xpose.msra.mxu0 0
        %1410 = vmatprep.subr.bf16.mxu0 0
        %1411 = vmatpush1.bf16.xpose.msra.mxu0 %v1394
        %1412 = vmatprep.subr.bf16.mxu0 0
        %1413 = vmatpush2.bf16.xpose.msra.mxu0 0
        %1414 = vmatprep.subr.bf16.mxu0 0
        %1415 = vmatpush2.bf16.xpose.msra.mxu0 0
        %1416 = vmatprep.subr.bf16.mxu0 0
        %1417 = vmatpush2.bf16.xpose.msra.mxu0 0
        %1418 = vmatprep.subr.bf16.mxu0 0
        %1419 = vmatpush2.bf16.xpose.msra.mxu0 0
        %1420 = vmatprep.subr.bf16.mxu0 0
        %1421 = vmatpush2.bf16.xpose.msra.mxu0 0
        %1422 = vmatprep.subr.bf16.mxu0 0
        %1423 = vmatpush2.bf16.xpose.msra.mxu0 0
        %1424 = vmatprep.subr.bf16.mxu0 0
        %1425 = vmatpush2.bf16.xpose.msra.mxu0 0
        %1426 = vmatprep.subr.bf16.mxu0 0
        %1427 = vmatpush2.bf16.xpose.msra.mxu0 0
        %1428 = vmatprep.mubr.bf16.mxu0 0
        %1429 = vmatmul.mubr.bf16.gmra.mxu0 %v1391
        %v1430 = vpop.f32.mrf.mxu0
        %v1431 = vadd.f32 0.0, %v1430
        %v1432 = vpop.f32.mrf.mxu0
        %v1433 = vpop.f32.mrf.mxu0
        %v1434 = vpop.f32.mrf.mxu0
        %1435 = vdwg.mxu0
        %v1436 = vmul.f32 %v1431, 0.35355338
        %v1437 = vadd.f32 %v1436, %v1051
        %v1438 = vsel %vm1157, %v1437, -inf
        %1439 = vmax.xlane.f32.xlu0 %v1438
        %v1440 = vpop.xlane.xlu0 %1439
        %v1441 = vsub.f32 %v1437, %v1440
        %v1442 = vmul.f32 %v1441, 1.442695
        %v1443 = vpow.pop %v1442
        %v1444 = vsel %vm1157, %v1443, 0.0
        %1445 = vadd.xlane.f32.xlu0 %v1444
        %v1446 = vpop.xlane.xlu0 %1445
        %v1447 = vrcp.pop %v1446
        %v1448 = vmul.f32 %v1443, %v1447
        %v1449 = vpack.c.bf16 %v1448, %v1448
        %1450 = vrot.lane.b32.xlu0 %v1153, 48
        %v1451 = vpop.permute.xlu0 %1450
        %v1453 = vsel %vm1157, %v1449, 0
        %v1456 = vsel %vm1223, %v1451, 0
        %1458 = vmatprep.subr.bf16.mxu0 0
        %1459 = vmatpush1.bf16.msra.mxu0 0
        %1460 = vmatprep.subr.bf16.mxu0 0
        %1461 = vmatpush1.bf16.msra.mxu0 0
        %1462 = vmatprep.subr.bf16.mxu0 0
        %1463 = vmatpush1.bf16.msra.mxu0 0
        %1464 = vmatprep.subr.bf16.mxu0 0
        %1465 = vmatpush1.bf16.msra.mxu0 0
        %1466 = vmatprep.subr.bf16.mxu0 0
        %1467 = vmatpush1.bf16.msra.mxu0 0
        %1468 = vmatprep.subr.bf16.mxu0 0
        %1469 = vmatpush1.bf16.msra.mxu0 0
        %1470 = vmatprep.subr.bf16.mxu0 0
        %1471 = vmatpush1.bf16.msra.mxu0 0
        %1472 = vmatprep.subr.bf16.mxu0 0
        %1473 = vmatpush1.bf16.msra.mxu0 %v1456
        %1474 = vmatprep.subr.bf16.mxu0 0
        %1475 = vmatpush2.bf16.msra.mxu0 0
        %1476 = vmatprep.subr.bf16.mxu0 0
        %1477 = vmatpush2.bf16.msra.mxu0 0
        %1478 = vmatprep.subr.bf16.mxu0 0
        %1479 = vmatpush2.bf16.msra.mxu0 0
        %1480 = vmatprep.subr.bf16.mxu0 0
        %1481 = vmatpush2.bf16.msra.mxu0 0
        %1482 = vmatprep.subr.bf16.mxu0 0
        %1483 = vmatpush2.bf16.msra.mxu0 0
        %1484 = vmatprep.subr.bf16.mxu0 0
        %1485 = vmatpush2.bf16.msra.mxu0 0
        %1486 = vmatprep.subr.bf16.mxu0 0
        %1487 = vmatpush2.bf16.msra.mxu0 0
        %1488 = vmatprep.subr.bf16.mxu0 0
        %1489 = vmatpush2.bf16.msra.mxu0 0
        %1490 = vmatprep.mubr.bf16.mxu0 0
        %1491 = vmatmul.mubr.bf16.gmra.mxu0 %v1453
        %v1492 = vpop.f32.mrf.mxu0
        %v1493 = vadd.f32 0.0, %v1492
        %v1494 = vpop.f32.mrf.mxu0
        %v1495 = vpop.f32.mrf.mxu0
        %v1496 = vpop.f32.mrf.mxu0
        %1497 = vdwg.mxu0
        %1499 = vrot.lane.b32.xlu0 %v1493, 16
        %v1500 = vpop.permute.xlu0 %1499
        %vm1502 = vcmask 195712
        %1503 = vst.msk [vmem:[#allocation2] sm:$0xff] %vm1502, %v1500
        %1504 = vrot.lane.b32.xlu0 %v1153, 104
        %v1505 = vpop.permute.xlu0 %1504
        %1506 = vrot.lane.b32.xlu0 %v1153, 72
        %v1507 = vpop.permute.xlu0 %1506
        %v1509 = vsel %vm1157, %v1505, 0
        %v1512 = vsel %vm1157, %v1507, 0
        %1514 = vmatprep.subr.bf16.mxu0 0
        %1515 = vmatpush1.bf16.xpose.msra.mxu0 0
        %1516 = vmatprep.subr.bf16.mxu0 0
        %1517 = vmatpush1.bf16.xpose.msra.mxu0 0
        %1518 = vmatprep.subr.bf16.mxu0 0
        %1519 = vmatpush1.bf16.xpose.msra.mxu0 0
        %1520 = vmatprep.subr.bf16.mxu0 0
        %1521 = vmatpush1.bf16.xpose.msra.mxu0 0
        %1522 = vmatprep.subr.bf16.mxu0 0
        %1523 = vmatpush1.bf16.xpose.msra.mxu0 0
        %1524 = vmatprep.subr.bf16.mxu0 0
        %1525 = vmatpush1.bf16.xpose.msra.mxu0 0
        %1526 = vmatprep.subr.bf16.mxu0 0
        %1527 = vmatpush1.bf16.xpose.msra.mxu0 0
        %1528 = vmatprep.subr.bf16.mxu0 0
        %1529 = vmatpush1.bf16.xpose.msra.mxu0 %v1512
        %1530 = vmatprep.subr.bf16.mxu0 0
        %1531 = vmatpush2.bf16.xpose.msra.mxu0 0
        %1532 = vmatprep.subr.bf16.mxu0 0
        %1533 = vmatpush2.bf16.xpose.msra.mxu0 0
        %1534 = vmatprep.subr.bf16.mxu0 0
        %1535 = vmatpush2.bf16.xpose.msra.mxu0 0
        %1536 = vmatprep.subr.bf16.mxu0 0
        %1537 = vmatpush2.bf16.xpose.msra.mxu0 0
        %1538 = vmatprep.subr.bf16.mxu0 0
        %1539 = vmatpush2.bf16.xpose.msra.mxu0 0
        %1540 = vmatprep.subr.bf16.mxu0 0
        %1541 = vmatpush2.bf16.xpose.msra.mxu0 0
        %1542 = vmatprep.subr.bf16.mxu0 0
        %1543 = vmatpush2.bf16.xpose.msra.mxu0 0
        %1544 = vmatprep.subr.bf16.mxu0 0
        %1545 = vmatpush2.bf16.xpose.msra.mxu0 0
        %1546 = vmatprep.mubr.bf16.mxu0 0
        %1547 = vmatmul.mubr.bf16.gmra.mxu0 %v1509
        %v1548 = vpop.f32.mrf.mxu0
        %v1549 = vadd.f32 0.0, %v1548
        %v1550 = vpop.f32.mrf.mxu0
        %v1551 = vpop.f32.mrf.mxu0
        %v1552 = vpop.f32.mrf.mxu0
        %1553 = vdwg.mxu0
        %v1554 = vmul.f32 %v1549, 0.35355338
        %v1555 = vadd.f32 %v1554, %v1051
        %v1556 = vsel %vm1157, %v1555, -inf
        %1557 = vmax.xlane.f32.xlu0 %v1556
        %v1558 = vpop.xlane.xlu0 %1557
        %v1559 = vsub.f32 %v1555, %v1558
        %v1560 = vmul.f32 %v1559, 1.442695
        %v1561 = vpow.pop %v1560
        %v1562 = vsel %vm1157, %v1561, 0.0
        %1563 = vadd.xlane.f32.xlu0 %v1562
        %v1564 = vpop.xlane.xlu0 %1563
        %v1565 = vrcp.pop %v1564
        %v1566 = vmul.f32 %v1561, %v1565
        %v1567 = vpack.c.bf16 %v1566, %v1566
        %1568 = vrot.lane.b32.xlu0 %v1153, 40
        %v1569 = vpop.permute.xlu0 %1568
        %v1571 = vsel %vm1157, %v1567, 0
        %v1574 = vsel %vm1223, %v1569, 0
        %1576 = vmatprep.subr.bf16.mxu0 0
        %1577 = vmatpush1.bf16.msra.mxu0 0
        %1578 = vmatprep.subr.bf16.mxu0 0
        %1579 = vmatpush1.bf16.msra.mxu0 0
        %1580 = vmatprep.subr.bf16.mxu0 0
        %1581 = vmatpush1.bf16.msra.mxu0 0
        %1582 = vmatprep.subr.bf16.mxu0 0
        %1583 = vmatpush1.bf16.msra.mxu0 0
        %1584 = vmatprep.subr.bf16.mxu0 0
        %1585 = vmatpush1.bf16.msra.mxu0 0
        %1586 = vmatprep.subr.bf16.mxu0 0
        %1587 = vmatpush1.bf16.msra.mxu0 0
        %1588 = vmatprep.subr.bf16.mxu0 0
        %1589 = vmatpush1.bf16.msra.mxu0 0
        %1590 = vmatprep.subr.bf16.mxu0 0
        %1591 = vmatpush1.bf16.msra.mxu0 %v1574
        %1592 = vmatprep.subr.bf16.mxu0 0
        %1593 = vmatpush2.bf16.msra.mxu0 0
        %1594 = vmatprep.subr.bf16.mxu0 0
        %1595 = vmatpush2.bf16.msra.mxu0 0
        %1596 = vmatprep.subr.bf16.mxu0 0
        %1597 = vmatpush2.bf16.msra.mxu0 0
        %1598 = vmatprep.subr.bf16.mxu0 0
        %1599 = vmatpush2.bf16.msra.mxu0 0
        %1600 = vmatprep.subr.bf16.mxu0 0
        %1601 = vmatpush2.bf16.msra.mxu0 0
        %1602 = vmatprep.subr.bf16.mxu0 0
        %1603 = vmatpush2.bf16.msra.mxu0 0
        %1604 = vmatprep.subr.bf16.mxu0 0
        %1605 = vmatpush2.bf16.msra.mxu0 0
        %1606 = vmatprep.subr.bf16.mxu0 0
        %1607 = vmatpush2.bf16.msra.mxu0 0
        %1608 = vmatprep.mubr.bf16.mxu0 0
        %1609 = vmatmul.mubr.bf16.gmra.mxu0 %v1571
        %v1610 = vpop.f32.mrf.mxu0
        %v1611 = vadd.f32 0.0, %v1610
        %v1612 = vpop.f32.mrf.mxu0
        %v1613 = vpop.f32.mrf.mxu0
        %v1614 = vpop.f32.mrf.mxu0
        %1615 = vdwg.mxu0
        %1617 = vrot.lane.b32.xlu0 %v1611, 24
        %v1618 = vpop.permute.xlu0 %1617
        %vm1620 = vcmask 261312
        %1621 = vst.msk [vmem:[#allocation2] sm:$0xff] %vm1620, %v1618
        %v1622 = vld [vmem:[#allocation2] sm:$0xff]
        %v1623 = vpack.c.bf16 %v1622, %v1622
        %v1624 = vld [vmem:[%s8] sm:$0xf]
        %v1625 = vld [vmem:[%s8 + $0x4] sm:$0xf]
        %v1626 = vld [vmem:[%s8 + $0x8] sm:$0xf]
        %v1627 = vld [vmem:[%s8 + $0xc] sm:$0xf]
        %v1632 = vunpack.c.l.b16 %v1624
        %v1633 = vunpack.c.l.b16 %v1625
        %v1634 = vunpack.c.l.b16 %v1626
        %v1635 = vunpack.c.l.b16 %v1627
        %v1636 = vpack.c.b16 %v1633, %v1632
        %v1637 = vpack.c.b16 %v1635, %v1634
        %v1641 = vsel %vm1057, %v1623, 0
        %1643 = vmatprep.subr.bf16.mxu0 0
        %1644 = vmatpush1.bf16.msra.mxu0 0
        %1645 = vmatprep.subr.bf16.mxu0 0
        %1646 = vmatpush1.bf16.msra.mxu0 0
        %1647 = vmatprep.subr.bf16.mxu0 0
        %1648 = vmatpush1.bf16.msra.mxu0 0
        %1649 = vmatprep.subr.bf16.mxu0 0
        %1650 = vmatpush1.bf16.msra.mxu0 0
        %1651 = vmatprep.subr.bf16.mxu0 0
        %1652 = vmatpush1.bf16.msra.mxu0 0
        %1653 = vmatprep.subr.bf16.mxu0 0
        %1654 = vmatpush1.bf16.msra.mxu0 0
        %1655 = vmatprep.subr.bf16.mxu0 0
        %1656 = vmatpush1.bf16.msra.mxu0 %v1637
        %1657 = vmatprep.subr.bf16.mxu0 0
        %1658 = vmatpush1.bf16.msra.mxu0 %v1636
        %1659 = vmatprep.subr.bf16.mxu0 0
        %1660 = vmatpush2.bf16.msra.mxu0 0
        %1661 = vmatprep.subr.bf16.mxu0 0
        %1662 = vmatpush2.bf16.msra.mxu0 0
        %1663 = vmatprep.subr.bf16.mxu0 0
        %1664 = vmatpush2.bf16.msra.mxu0 0
        %1665 = vmatprep.subr.bf16.mxu0 0
        %1666 = vmatpush2.bf16.msra.mxu0 0
        %1667 = vmatprep.subr.bf16.mxu0 0
        %1668 = vmatpush2.bf16.msra.mxu0 0
        %1669 = vmatprep.subr.bf16.mxu0 0
        %1670 = vmatpush2.bf16.msra.mxu0 0
        %1671 = vmatprep.subr.bf16.mxu0 0
        %1672 = vmatpush2.bf16.msra.mxu0 0
        %1673 = vmatprep.subr.bf16.mxu0 0
        %1674 = vmatpush2.bf16.msra.mxu0 0
        %1675 = vmatprep.mubr.bf16.mxu0 0
        %1676 = vmatmul.mubr.bf16.gmra.mxu0 %v1641
        %v1677 = vpop.f32.mrf.mxu0
        %v1678 = vadd.f32 0.0, %v1677
        %v1679 = vpop.f32.mrf.mxu0
        %v1680 = vpop.f32.mrf.mxu0
        %v1681 = vpop.f32.mrf.mxu0
        %1682 = vdwg.mxu0
        %v1683 = vadd.f32 %v1048, %v1678
        %v1684 = vld [vmem:[#allocation12] sm:$0x1]
        %v1686 = vlaneseq
        %v1687 = vshrl.u32 %v1686, 7
        %v1688 = vsub.s32 0, %v1687
        %v1689 = vrot.slane %v1684, %v1688
        %v1691 = vadd.f32 %v1683, %v1689
        %v1692 = vld [vmem:[#allocation14] sm:$0x1]
        %v1693 = vld [vmem:[#allocation15] sm:$0x1]
        %v1694 = vsel %vm1057, %v1691, 0.0
        %1695 = vadd.xlane.f32.xlu0 %v1694
        %v1696 = vpop.xlane.xlu0 %1695
        %v1697 = vmul.f32 %v1696, %v1061
        %v1698 = vsub.f32 %v1691, %v1697
        %v1699 = vmul.f32 %v1698, %v1698
        %v1700 = vsel %vm1057, %v1699, 0.0
        %1701 = vadd.xlane.f32.xlu0 %v1700
        %v1702 = vpop.xlane.xlu0 %1701
        %v1703 = vmul.f32 %v1702, %v1061
        %v1704 = vadd.f32 %v1703, 1e-05
        %v1705 = vrsqrt.pop %v1704
        %v1706 = vmul.f32 %v1698, %v1705
        %v1708 = vlaneseq
        %v1709 = vshrl.u32 %v1708, 7
        %v1710 = vsub.s32 0, %v1709
        %v1711 = vrot.slane %v1692, %v1710
        %v1713 = vmul.f32 %v1706, %v1711
        %v1715 = vlaneseq
        %v1716 = vshrl.u32 %v1715, 7
        %v1717 = vsub.s32 0, %v1716
        %v1718 = vrot.slane %v1693, %v1717
        %v1720 = vadd.f32 %v1713, %v1718
        %v1721 = vpack.c.bf16 %v1720, %v1720
        %v1722 = vld [vmem:[#allocation17] sm:$0xf]
        %v1723 = vld [vmem:[#allocation17 + $0x4] sm:$0xf]
        %v1724 = vld [vmem:[#allocation17 + $0x8] sm:$0xf]
        %v1725 = vld [vmem:[#allocation17 + $0xc] sm:$0xf]
        %v1726 = vld [vmem:[#allocation18] sm:$0x1]
        %v1728 = vlaneseq
        %v1729 = vshrl.u32 %v1728, 7
        %v1730 = vsub.s32 0, %v1729
        %v1731 = vrot.slane %v1726, %v1730
        %v1737 = vunpack.c.l.b16 %v1722
        %v1738 = vunpack.c.l.b16 %v1723
        %v1739 = vunpack.c.l.b16 %v1724
        %v1740 = vunpack.c.l.b16 %v1725
        %v1741 = vpack.c.b16 %v1738, %v1737
        %v1742 = vpack.c.b16 %v1740, %v1739
        %v1746 = vsel %vm1057, %v1721, 0
        %1748 = vmatprep.subr.bf16.mxu0 0
        %1749 = vmatpush1.bf16.msra.mxu0 0
        %1750 = vmatprep.subr.bf16.mxu0 0
        %1751 = vmatpush1.bf16.msra.mxu0 0
        %1752 = vmatprep.subr.bf16.mxu0 0
        %1753 = vmatpush1.bf16.msra.mxu0 0
        %1754 = vmatprep.subr.bf16.mxu0 0
        %1755 = vmatpush1.bf16.msra.mxu0 0
        %1756 = vmatprep.subr.bf16.mxu0 0
        %1757 = vmatpush1.bf16.msra.mxu0 0
        %1758 = vmatprep.subr.bf16.mxu0 0
        %1759 = vmatpush1.bf16.msra.mxu0 0
        %1760 = vmatprep.subr.bf16.mxu0 0
        %1761 = vmatpush1.bf16.msra.mxu0 %v1742
        %1762 = vmatprep.subr.bf16.mxu0 0
        %1763 = vmatpush1.bf16.msra.mxu0 %v1741
        %1764 = vmatprep.subr.bf16.mxu0 0
        %1765 = vmatpush2.bf16.msra.mxu0 0
        %1766 = vmatprep.subr.bf16.mxu0 0
        %1767 = vmatpush2.bf16.msra.mxu0 0
        %1768 = vmatprep.subr.bf16.mxu0 0
        %1769 = vmatpush2.bf16.msra.mxu0 0
        %1770 = vmatprep.subr.bf16.mxu0 0
        %1771 = vmatpush2.bf16.msra.mxu0 0
        %1772 = vmatprep.subr.bf16.mxu0 0
        %1773 = vmatpush2.bf16.msra.mxu0 0
        %1774 = vmatprep.subr.bf16.mxu0 0
        %1775 = vmatpush2.bf16.msra.mxu0 0
        %1776 = vmatprep.subr.bf16.mxu0 0
        %1777 = vmatpush2.bf16.msra.mxu0 0
        %1778 = vmatprep.subr.bf16.mxu0 0
        %1779 = vmatpush2.bf16.msra.mxu0 0
        %1780 = vmatprep.mubr.bf16.mxu0 0
        %1781 = vmatmul.mubr.bf16.gmra.mxu0 %v1746
        %v1782 = vpop.f32.mrf.mxu0
        %v1783 = vadd.f32 %v1731, %v1782
        %v1784 = vpop.f32.mrf.mxu0
        %v1785 = vpop.f32.mrf.mxu0
        %v1786 = vpop.f32.mrf.mxu0
        %1787 = vdwg.mxu0
        %v1788 = vld [vmem:[%s1046] sm:$0xff]
        %v1789 = vld [vmem:[%s1046 + $0x8] sm:$0xff]
        %v1790 = vpack.c.bf16 %v1789, %v1788
        %v1791 = vld [vmem:[#allocation20] sm:$0xf]
        %v1792 = vld [vmem:[#allocation20 + $0x4] sm:$0xf]
        %v1793 = vld [vmem:[#allocation20 + $0x8] sm:$0xf]
        %v1794 = vld [vmem:[#allocation20 + $0xc] sm:$0xf]
        %v1795 = vld [vmem:[#allocation21] sm:$0x1]
        %v1797 = vlaneseq
        %v1798 = vshrl.u32 %v1797, 7
        %v1799 = vsub.s32 0, %v1798
        %v1800 = vrot.slane %v1795, %v1799
        %v1806 = vunpack.c.l.b16 %v1791
        %v1807 = vunpack.c.l.b16 %v1792
        %v1808 = vunpack.c.l.b16 %v1793
        %v1809 = vunpack.c.l.b16 %v1794
        %v1810 = vpack.c.b16 %v1807, %v1806
        %v1811 = vpack.c.b16 %v1809, %v1808
        %v1815 = vsel %vm1057, %v1790, 0
        %1817 = vmatprep.subr.bf16.mxu0 0
        %1818 = vmatpush1.bf16.msra.mxu0 0
        %1819 = vmatprep.subr.bf16.mxu0 0
        %1820 = vmatpush1.bf16.msra.mxu0 0
        %1821 = vmatprep.subr.bf16.mxu0 0
        %1822 = vmatpush1.bf16.msra.mxu0 0
        %1823 = vmatprep.subr.bf16.mxu0 0
        %1824 = vmatpush1.bf16.msra.mxu0 0
        %1825 = vmatprep.subr.bf16.mxu0 0
        %1826 = vmatpush1.bf16.msra.mxu0 0
        %1827 = vmatprep.subr.bf16.mxu0 0
        %1828 = vmatpush1.bf16.msra.mxu0 0
        %1829 = vmatprep.subr.bf16.mxu0 0
        %1830 = vmatpush1.bf16.msra.mxu0 %v1811
        %1831 = vmatprep.subr.bf16.mxu0 0
        %1832 = vmatpush1.bf16.msra.mxu0 %v1810
        %1833 = vmatprep.subr.bf16.mxu0 0
        %1834 = vmatpush2.bf16.msra.mxu0 0
        %1835 = vmatprep.subr.bf16.mxu0 0
        %1836 = vmatpush2.bf16.msra.mxu0 0
        %1837 = vmatprep.subr.bf16.mxu0 0
        %1838 = vmatpush2.bf16.msra.mxu0 0
        %1839 = vmatprep.subr.bf16.mxu0 0
        %1840 = vmatpush2.bf16.msra.mxu0 0
        %1841 = vmatprep.subr.bf16.mxu0 0
        %1842 = vmatpush2.bf16.msra.mxu0 0
        %1843 = vmatprep.subr.bf16.mxu0 0
        %1844 = vmatpush2.bf16.msra.mxu0 0
        %1845 = vmatprep.subr.bf16.mxu0 0
        %1846 = vmatpush2.bf16.msra.mxu0 0
        %1847 = vmatprep.subr.bf16.mxu0 0
        %1848 = vmatpush2.bf16.msra.mxu0 0
        %1849 = vmatprep.mubr.bf16.mxu0 0
        %1850 = vmatmul.mubr.bf16.gmra.mxu0 %v1815
        %v1851 = vpop.f32.mrf.mxu0
        %v1852 = vadd.f32 %v1800, %v1851
        %v1853 = vpop.f32.mrf.mxu0
        %v1854 = vpop.f32.mrf.mxu0
        %v1855 = vadd.f32 %v1800, %v1854
        %v1856 = vpop.f32.mrf.mxu0
        %1857 = vdwg.mxu0
        %v1858 = vpack.c.bf16 %v1783, %v1783
        %v1859 = vpack.c.bf16 %v1855, %v1852
        %v1861 = vsel %vm1157, %v1858, 0
        %v1864 = vsel %vm1157, %v1859, 0
        %1866 = vmatprep.subr.bf16.mxu0 0
        %1867 = vmatpush1.bf16.xpose.msra.mxu0 0
        %1868 = vmatprep.subr.bf16.mxu0 0
        %1869 = vmatpush1.bf16.xpose.msra.mxu0 0
        %1870 = vmatprep.subr.bf16.mxu0 0
        %1871 = vmatpush1.bf16.xpose.msra.mxu0 0
        %1872 = vmatprep.subr.bf16.mxu0 0
        %1873 = vmatpush1.bf16.xpose.msra.mxu0 0
        %1874 = vmatprep.subr.bf16.mxu0 0
        %1875 = vmatpush1.bf16.xpose.msra.mxu0 0
        %1876 = vmatprep.subr.bf16.mxu0 0
        %1877 = vmatpush1.bf16.xpose.msra.mxu0 0
        %1878 = vmatprep.subr.bf16.mxu0 0
        %1879 = vmatpush1.bf16.xpose.msra.mxu0 0
        %1880 = vmatprep.subr.bf16.mxu0 0
        %1881 = vmatpush1.bf16.xpose.msra.mxu0 %v1864
        %1882 = vmatprep.subr.bf16.mxu0 0
        %1883 = vmatpush2.bf16.xpose.msra.mxu0 0
        %1884 = vmatprep.subr.bf16.mxu0 0
        %1885 = vmatpush2.bf16.xpose.msra.mxu0 0
        %1886 = vmatprep.subr.bf16.mxu0 0
        %1887 = vmatpush2.bf16.xpose.msra.mxu0 0
        %1888 = vmatprep.subr.bf16.mxu0 0
        %1889 = vmatpush2.bf16.xpose.msra.mxu0 0
        %1890 = vmatprep.subr.bf16.mxu0 0
        %1891 = vmatpush2.bf16.xpose.msra.mxu0 0
        %1892 = vmatprep.subr.bf16.mxu0 0
        %1893 = vmatpush2.bf16.xpose.msra.mxu0 0
        %1894 = vmatprep.subr.bf16.mxu0 0
        %1895 = vmatpush2.bf16.xpose.msra.mxu0 0
        %1896 = vmatprep.subr.bf16.mxu0 0
        %1897 = vmatpush2.bf16.xpose.msra.mxu0 0
        %1898 = vmatprep.mubr.bf16.mxu0 0
        %1899 = vmatmul.mubr.bf16.gmra.mxu0 %v1861
        %v1900 = vpop.f32.mrf.mxu0
        %v1901 = vadd.f32 0.0, %v1900
        %v1902 = vpop.f32.mrf.mxu0
        %v1903 = vpop.f32.mrf.mxu0
        %v1904 = vpop.f32.mrf.mxu0
        %1905 = vdwg.mxu0
        %v1906 = vmul.f32 %v1901, 0.35355338
        %v1907 = vadd.f32 %v1906, %v1054
        %vm1908 = vcmask 130048
        %v1909 = vsel %vm1908, %v1907, -inf
        %1910 = vmax.xlane.f32.xlu0 %v1909
        %v1911 = vpop.xlane.xlu0 %1910
        %v1912 = vsub.f32 %v1907, %v1911
        %v1913 = vmul.f32 %v1912, 1.442695
        %v1914 = vpow.pop %v1913
        %v1915 = vsel %vm1908, %v1914, 0.0
        %1916 = vadd.xlane.f32.xlu0 %v1915
        %v1917 = vpop.xlane.xlu0 %1916
        %v1918 = vrcp.pop %v1917
        %v1919 = vmul.f32 %v1914, %v1918
        %v1920 = vpack.c.bf16 %v1919, %v1919
        %1922 = vrot.lane.b32.xlu0 %v1859, 96
        %v1923 = vpop.permute.xlu0 %1922
        %v1926 = vsel %vm1908, %v1920, 0
        %1928 = vmatprep.subr.bf16.mxu0 0
        %1929 = vmatpush1.bf16.msra.mxu0 0
        %1930 = vmatprep.subr.bf16.mxu0 0
        %1931 = vmatpush1.bf16.msra.mxu0 0
        %1932 = vmatprep.subr.bf16.mxu0 0
        %1933 = vmatpush1.bf16.msra.mxu0 0
        %1934 = vmatprep.subr.bf16.mxu0 0
        %1935 = vmatpush1.bf16.msra.mxu0 0
        %1936 = vmatprep.subr.bf16.mxu0 0
        %1937 = vmatpush1.bf16.msra.mxu0 0
        %1938 = vmatprep.subr.bf16.mxu0 0
        %1939 = vmatpush1.bf16.msra.mxu0 0
        %1940 = vmatprep.subr.bf16.mxu0 0
        %1941 = vmatpush1.bf16.msra.mxu0 0
        %1942 = vmatprep.subr.bf16.mxu0 0
        %1943 = vmatpush1.bf16.msra.mxu0 %v1923
        %1944 = vmatprep.subr.bf16.mxu0 0
        %1945 = vmatpush2.bf16.msra.mxu0 0
        %1946 = vmatprep.subr.bf16.mxu0 0
        %1947 = vmatpush2.bf16.msra.mxu0 0
        %1948 = vmatprep.subr.bf16.mxu0 0
        %1949 = vmatpush2.bf16.msra.mxu0 0
        %1950 = vmatprep.subr.bf16.mxu0 0
        %1951 = vmatpush2.bf16.msra.mxu0 0
        %1952 = vmatprep.subr.bf16.mxu0 0
        %1953 = vmatpush2.bf16.msra.mxu0 0
        %1954 = vmatprep.subr.bf16.mxu0 0
        %1955 = vmatpush2.bf16.msra.mxu0 0
        %1956 = vmatprep.subr.bf16.mxu0 0
        %1957 = vmatpush2.bf16.msra.mxu0 0
        %1958 = vmatprep.subr.bf16.mxu0 0
        %1959 = vmatpush2.bf16.msra.mxu0 0
        %1960 = vmatprep.mubr.bf16.mxu0 0
        %1961 = vmatmul.mubr.bf16.gmra.mxu0 %v1926
        %v1962 = vpop.f32.mrf.mxu0
        %v1963 = vadd.f32 0.0, %v1962
        %v1964 = vpop.f32.mrf.mxu0
        %v1965 = vpop.f32.mrf.mxu0
        %v1966 = vpop.f32.mrf.mxu0
        %1967 = vdwg.mxu0
        %1968 = vst.msk [vmem:[#allocation2] sm:$0xff] %vm1157, %v1963
        %1970 = vrot.lane.b32.xlu0 %v1858, 120
        %v1971 = vpop.permute.xlu0 %1970
        %1972 = vrot.lane.b32.xlu0 %v1859, 120
        %v1973 = vpop.permute.xlu0 %1972
        %v1975 = vsel %vm1157, %v1971, 0
        %v1978 = vsel %vm1157, %v1973, 0
        %1980 = vmatprep.subr.bf16.mxu0 0
        %1981 = vmatpush1.bf16.xpose.msra.mxu0 0
        %1982 = vmatprep.subr.bf16.mxu0 0
        %1983 = vmatpush1.bf16.xpose.msra.mxu0 0
        %1984 = vmatprep.subr.bf16.mxu0 0
        %1985 = vmatpush1.bf16.xpose.msra.mxu0 0
        %1986 = vmatprep.subr.bf16.mxu0 0
        %1987 = vmatpush1.bf16.xpose.msra.mxu0 0
        %1988 = vmatprep.subr.bf16.mxu0 0
        %1989 = vmatpush1.bf16.xpose.msra.mxu0 0
        %1990 = vmatprep.subr.bf16.mxu0 0
        %1991 = vmatpush1.bf16.xpose.msra.mxu0 0
        %1992 = vmatprep.subr.bf16.mxu0 0
        %1993 = vmatpush1.bf16.xpose.msra.mxu0 0
        %1994 = vmatprep.subr.bf16.mxu0 0
        %1995 = vmatpush1.bf16.xpose.msra.mxu0 %v1978
        %1996 = vmatprep.subr.bf16.mxu0 0
        %1997 = vmatpush2.bf16.xpose.msra.mxu0 0
        %1998 = vmatprep.subr.bf16.mxu0 0
        %1999 = vmatpush2.bf16.xpose.msra.mxu0 0
        %2000 = vmatprep.subr.bf16.mxu0 0
        %2001 = vmatpush2.bf16.xpose.msra.mxu0 0
        %2002 = vmatprep.subr.bf16.mxu0 0
        %2003 = vmatpush2.bf16.xpose.msra.mxu0 0
        %2004 = vmatprep.subr.bf16.mxu0 0
        %2005 = vmatpush2.bf16.xpose.msra.mxu0 0
        %2006 = vmatprep.subr.bf16.mxu0 0
        %2007 = vmatpush2.bf16.xpose.msra.mxu0 0
        %2008 = vmatprep.subr.bf16.mxu0 0
        %2009 = vmatpush2.bf16.xpose.msra.mxu0 0
        %2010 = vmatprep.subr.bf16.mxu0 0
        %2011 = vmatpush2.bf16.xpose.msra.mxu0 0
        %2012 = vmatprep.mubr.bf16.mxu0 0
        %2013 = vmatmul.mubr.bf16.gmra.mxu0 %v1975
        %v2014 = vpop.f32.mrf.mxu0
        %v2015 = vadd.f32 0.0, %v2014
        %v2016 = vpop.f32.mrf.mxu0
        %v2017 = vpop.f32.mrf.mxu0
        %v2018 = vpop.f32.mrf.mxu0
        %2019 = vdwg.mxu0
        %v2020 = vmul.f32 %v2015, 0.35355338
        %v2021 = vadd.f32 %v2020, %v1054
        %v2022 = vsel %vm1908, %v2021, -inf
        %2023 = vmax.xlane.f32.xlu0 %v2022
        %v2024 = vpop.xlane.xlu0 %2023
        %v2025 = vsub.f32 %v2021, %v2024
        %v2026 = vmul.f32 %v2025, 1.442695
        %v2027 = vpow.pop %v2026
        %v2028 = vsel %vm1908, %v2027, 0.0
        %2029 = vadd.xlane.f32.xlu0 %v2028
        %v2030 = vpop.xlane.xlu0 %2029
        %v2031 = vrcp.pop %v2030
        %v2032 = vmul.f32 %v2027, %v2031
        %v2033 = vpack.c.bf16 %v2032, %v2032
        %2034 = vrot.lane.b32.xlu0 %v1859, 88
        %v2035 = vpop.permute.xlu0 %2034
        %v2038 = vsel %vm1908, %v2033, 0
        %2040 = vmatprep.subr.bf16.mxu0 0
        %2041 = vmatpush1.bf16.msra.mxu0 0
        %2042 = vmatprep.subr.bf16.mxu0 0
        %2043 = vmatpush1.bf16.msra.mxu0 0
        %2044 = vmatprep.subr.bf16.mxu0 0
        %2045 = vmatpush1.bf16.msra.mxu0 0
        %2046 = vmatprep.subr.bf16.mxu0 0
        %2047 = vmatpush1.bf16.msra.mxu0 0
        %2048 = vmatprep.subr.bf16.mxu0 0
        %2049 = vmatpush1.bf16.msra.mxu0 0
        %2050 = vmatprep.subr.bf16.mxu0 0
        %2051 = vmatpush1.bf16.msra.mxu0 0
        %2052 = vmatprep.subr.bf16.mxu0 0
        %2053 = vmatpush1.bf16.msra.mxu0 0
        %2054 = vmatprep.subr.bf16.mxu0 0
        %2055 = vmatpush1.bf16.msra.mxu0 %v2035
        %2056 = vmatprep.subr.bf16.mxu0 0
        %2057 = vmatpush2.bf16.msra.mxu0 0
        %2058 = vmatprep.subr.bf16.mxu0 0
        %2059 = vmatpush2.bf16.msra.mxu0 0
        %2060 = vmatprep.subr.bf16.mxu0 0
        %2061 = vmatpush2.bf16.msra.mxu0 0
        %2062 = vmatprep.subr.bf16.mxu0 0
        %2063 = vmatpush2.bf16.msra.mxu0 0
        %2064 = vmatprep.subr.bf16.mxu0 0
        %2065 = vmatpush2.bf16.msra.mxu0 0
        %2066 = vmatprep.subr.bf16.mxu0 0
        %2067 = vmatpush2.bf16.msra.mxu0 0
        %2068 = vmatprep.subr.bf16.mxu0 0
        %2069 = vmatpush2.bf16.msra.mxu0 0
        %2070 = vmatprep.subr.bf16.mxu0 0
        %2071 = vmatpush2.bf16.msra.mxu0 0
        %2072 = vmatprep.mubr.bf16.mxu0 0
        %2073 = vmatmul.mubr.bf16.gmra.mxu0 %v2038
        %v2074 = vpop.f32.mrf.mxu0
        %v2075 = vadd.f32 0.0, %v2074
        %v2076 = vpop.f32.mrf.mxu0
        %v2077 = vpop.f32.mrf.mxu0
        %v2078 = vpop.f32.mrf.mxu0
        %2079 = vdwg.mxu0
        %2081 = vrot.lane.b32.xlu0 %v2075, 8
        %v2082 = vpop.permute.xlu0 %2081
        %2084 = vst.msk [vmem:[#allocation2] sm:$0xff] %vm1384, %v2082
        %2085 = vrot.lane.b32.xlu0 %v1858, 112
        %v2086 = vpop.permute.xlu0 %2085
        %2087 = vrot.lane.b32.xlu0 %v1859, 112
        %v2088 = vpop.permute.xlu0 %2087
        %v2090 = vsel %vm1157, %v2086, 0
        %v2093 = vsel %vm1157, %v2088, 0
        %2095 = vmatprep.subr.bf16.mxu0 0
        %2096 = vmatpush1.bf16.xpose.msra.mxu0 0
        %2097 = vmatprep.subr.bf16.mxu0 0
        %2098 = vmatpush1.bf16.xpose.msra.mxu0 0
        %2099 = vmatprep.subr.bf16.mxu0 0
        %2100 = vmatpush1.bf16.xpose.msra.mxu0 0
        %2101 = vmatprep.subr.bf16.mxu0 0
        %2102 = vmatpush1.bf16.xpose.msra.mxu0 0
        %2103 = vmatprep.subr.bf16.mxu0 0
        %2104 = vmatpush1.bf16.xpose.msra.mxu0 0
        %2105 = vmatprep.subr.bf16.mxu0 0
        %2106 = vmatpush1.bf16.xpose.msra.mxu0 0
        %2107 = vmatprep.subr.bf16.mxu0 0
        %2108 = vmatpush1.bf16.xpose.msra.mxu0 0
        %2109 = vmatprep.subr.bf16.mxu0 0
        %2110 = vmatpush1.bf16.xpose.msra.mxu0 %v2093
        %2111 = vmatprep.subr.bf16.mxu0 0
        %2112 = vmatpush2.bf16.xpose.msra.mxu0 0
        %2113 = vmatprep.subr.bf16.mxu0 0
        %2114 = vmatpush2.bf16.xpose.msra.mxu0 0
        %2115 = vmatprep.subr.bf16.mxu0 0
        %2116 = vmatpush2.bf16.xpose.msra.mxu0 0
        %2117 = vmatprep.subr.bf16.mxu0 0
        %2118 = vmatpush2.bf16.xpose.msra.mxu0 0
        %2119 = vmatprep.subr.bf16.mxu0 0
        %2120 = vmatpush2.bf16.xpose.msra.mxu0 0
        %2121 = vmatprep.subr.bf16.mxu0 0
        %2122 = vmatpush2.bf16.xpose.msra.mxu0 0
        %2123 = vmatprep.subr.bf16.mxu0 0
        %2124 = vmatpush2.bf16.xpose.msra.mxu0 0
        %2125 = vmatprep.subr.bf16.mxu0 0
        %2126 = vmatpush2.bf16.xpose.msra.mxu0 0
        %2127 = vmatprep.mubr.bf16.mxu0 0
        %2128 = vmatmul.mubr.bf16.gmra.mxu0 %v2090
        %v2129 = vpop.f32.mrf.mxu0
        %v2130 = vadd.f32 0.0, %v2129
        %v2131 = vpop.f32.mrf.mxu0
        %v2132 = vpop.f32.mrf.mxu0
        %v2133 = vpop.f32.mrf.mxu0
        %2134 = vdwg.mxu0
        %v2135 = vmul.f32 %v2130, 0.35355338
        %v2136 = vadd.f32 %v2135, %v1054
        %v2137 = vsel %vm1908, %v2136, -inf
        %2138 = vmax.xlane.f32.xlu0 %v2137
        %v2139 = vpop.xlane.xlu0 %2138
        %v2140 = vsub.f32 %v2136, %v2139
        %v2141 = vmul.f32 %v2140, 1.442695
        %v2142 = vpow.pop %v2141
        %v2143 = vsel %vm1908, %v2142, 0.0
        %2144 = vadd.xlane.f32.xlu0 %v2143
        %v2145 = vpop.xlane.xlu0 %2144
        %v2146 = vrcp.pop %v2145
        %v2147 = vmul.f32 %v2142, %v2146
        %v2148 = vpack.c.bf16 %v2147, %v2147
        %2149 = vrot.lane.b32.xlu0 %v1859, 80
        %v2150 = vpop.permute.xlu0 %2149
        %v2153 = vsel %vm1908, %v2148, 0
        %2155 = vmatprep.subr.bf16.mxu0 0
        %2156 = vmatpush1.bf16.msra.mxu0 0
        %2157 = vmatprep.subr.bf16.mxu0 0
        %2158 = vmatpush1.bf16.msra.mxu0 0
        %2159 = vmatprep.subr.bf16.mxu0 0
        %2160 = vmatpush1.bf16.msra.mxu0 0
        %2161 = vmatprep.subr.bf16.mxu0 0
        %2162 = vmatpush1.bf16.msra.mxu0 0
        %2163 = vmatprep.subr.bf16.mxu0 0
        %2164 = vmatpush1.bf16.msra.mxu0 0
        %2165 = vmatprep.subr.bf16.mxu0 0
        %2166 = vmatpush1.bf16.msra.mxu0 0
        %2167 = vmatprep.subr.bf16.mxu0 0
        %2168 = vmatpush1.bf16.msra.mxu0 0
        %2169 = vmatprep.subr.bf16.mxu0 0
        %2170 = vmatpush1.bf16.msra.mxu0 %v2150
        %2171 = vmatprep.subr.bf16.mxu0 0
        %2172 = vmatpush2.bf16.msra.mxu0 0
        %2173 = vmatprep.subr.bf16.mxu0 0
        %2174 = vmatpush2.bf16.msra.mxu0 0
        %2175 = vmatprep.subr.bf16.mxu0 0
        %2176 = vmatpush2.bf16.msra.mxu0 0
        %2177 = vmatprep.subr.bf16.mxu0 0
        %2178 = vmatpush2.bf16.msra.mxu0 0
        %2179 = vmatprep.subr.bf16.mxu0 0
        %2180 = vmatpush2.bf16.msra.mxu0 0
        %2181 = vmatprep.subr.bf16.mxu0 0
        %2182 = vmatpush2.bf16.msra.mxu0 0
        %2183 = vmatprep.subr.bf16.mxu0 0
        %2184 = vmatpush2.bf16.msra.mxu0 0
        %2185 = vmatprep.subr.bf16.mxu0 0
        %2186 = vmatpush2.bf16.msra.mxu0 0
        %2187 = vmatprep.mubr.bf16.mxu0 0
        %2188 = vmatmul.mubr.bf16.gmra.mxu0 %v2153
        %v2189 = vpop.f32.mrf.mxu0
        %v2190 = vadd.f32 0.0, %v2189
        %v2191 = vpop.f32.mrf.mxu0
        %v2192 = vpop.f32.mrf.mxu0
        %v2193 = vpop.f32.mrf.mxu0
        %2194 = vdwg.mxu0
        %2196 = vrot.lane.b32.xlu0 %v2190, 16
        %v2197 = vpop.permute.xlu0 %2196
        %2199 = vst.msk [vmem:[#allocation2] sm:$0xff] %vm1502, %v2197
        %2200 = vrot.lane.b32.xlu0 %v1858, 104
        %v2201 = vpop.permute.xlu0 %2200
        %2202 = vrot.lane.b32.xlu0 %v1859, 104
        %v2203 = vpop.permute.xlu0 %2202
        %v2205 = vsel %vm1157, %v2201, 0
        %v2208 = vsel %vm1157, %v2203, 0
        %2210 = vmatprep.subr.bf16.mxu0 0
        %2211 = vmatpush1.bf16.xpose.msra.mxu0 0
        %2212 = vmatprep.subr.bf16.mxu0 0
        %2213 = vmatpush1.bf16.xpose.msra.mxu0 0
        %2214 = vmatprep.subr.bf16.mxu0 0
        %2215 = vmatpush1.bf16.xpose.msra.mxu0 0
        %2216 = vmatprep.subr.bf16.mxu0 0
        %2217 = vmatpush1.bf16.xpose.msra.mxu0 0
        %2218 = vmatprep.subr.bf16.mxu0 0
        %2219 = vmatpush1.bf16.xpose.msra.mxu0 0
        %2220 = vmatprep.subr.bf16.mxu0 0
        %2221 = vmatpush1.bf16.xpose.msra.mxu0 0
        %2222 = vmatprep.subr.bf16.mxu0 0
        %2223 = vmatpush1.bf16.xpose.msra.mxu0 0
        %2224 = vmatprep.subr.bf16.mxu0 0
        %2225 = vmatpush1.bf16.xpose.msra.mxu0 %v2208
        %2226 = vmatprep.subr.bf16.mxu0 0
        %2227 = vmatpush2.bf16.xpose.msra.mxu0 0
        %2228 = vmatprep.subr.bf16.mxu0 0
        %2229 = vmatpush2.bf16.xpose.msra.mxu0 0
        %2230 = vmatprep.subr.bf16.mxu0 0
        %2231 = vmatpush2.bf16.xpose.msra.mxu0 0
        %2232 = vmatprep.subr.bf16.mxu0 0
        %2233 = vmatpush2.bf16.xpose.msra.mxu0 0
        %2234 = vmatprep.subr.bf16.mxu0 0
        %2235 = vmatpush2.bf16.xpose.msra.mxu0 0
        %2236 = vmatprep.subr.bf16.mxu0 0
        %2237 = vmatpush2.bf16.xpose.msra.mxu0 0
        %2238 = vmatprep.subr.bf16.mxu0 0
        %2239 = vmatpush2.bf16.xpose.msra.mxu0 0
        %2240 = vmatprep.subr.bf16.mxu0 0
        %2241 = vmatpush2.bf16.xpose.msra.mxu0 0
        %2242 = vmatprep.mubr.bf16.mxu0 0
        %2243 = vmatmul.mubr.bf16.gmra.mxu0 %v2205
        %v2244 = vpop.f32.mrf.mxu0
        %v2245 = vadd.f32 0.0, %v2244
        %v2246 = vpop.f32.mrf.mxu0
        %v2247 = vpop.f32.mrf.mxu0
        %v2248 = vpop.f32.mrf.mxu0
        %2249 = vdwg.mxu0
        %v2250 = vmul.f32 %v2245, 0.35355338
        %v2251 = vadd.f32 %v2250, %v1054
        %v2252 = vsel %vm1908, %v2251, -inf
        %2253 = vmax.xlane.f32.xlu0 %v2252
        %v2254 = vpop.xlane.xlu0 %2253
        %v2255 = vsub.f32 %v2251, %v2254
        %v2256 = vmul.f32 %v2255, 1.442695
        %v2257 = vpow.pop %v2256
        %v2258 = vsel %vm1908, %v2257, 0.0
        %2259 = vadd.xlane.f32.xlu0 %v2258
        %v2260 = vpop.xlane.xlu0 %2259
        %v2261 = vrcp.pop %v2260
        %v2262 = vmul.f32 %v2257, %v2261
        %v2263 = vpack.c.bf16 %v2262, %v2262
        %2264 = vrot.lane.b32.xlu0 %v1859, 72
        %v2265 = vpop.permute.xlu0 %2264
        %v2268 = vsel %vm1908, %v2263, 0
        %2270 = vmatprep.subr.bf16.mxu0 0
        %2271 = vmatpush1.bf16.msra.mxu0 0
        %2272 = vmatprep.subr.bf16.mxu0 0
        %2273 = vmatpush1.bf16.msra.mxu0 0
        %2274 = vmatprep.subr.bf16.mxu0 0
        %2275 = vmatpush1.bf16.msra.mxu0 0
        %2276 = vmatprep.subr.bf16.mxu0 0
        %2277 = vmatpush1.bf16.msra.mxu0 0
        %2278 = vmatprep.subr.bf16.mxu0 0
        %2279 = vmatpush1.bf16.msra.mxu0 0
        %2280 = vmatprep.subr.bf16.mxu0 0
        %2281 = vmatpush1.bf16.msra.mxu0 0
        %2282 = vmatprep.subr.bf16.mxu0 0
        %2283 = vmatpush1.bf16.msra.mxu0 0
        %2284 = vmatprep.subr.bf16.mxu0 0
        %2285 = vmatpush1.bf16.msra.mxu0 %v2265
        %2286 = vmatprep.subr.bf16.mxu0 0
        %2287 = vmatpush2.bf16.msra.mxu0 0
        %2288 = vmatprep.subr.bf16.mxu0 0
        %2289 = vmatpush2.bf16.msra.mxu0 0
        %2290 = vmatprep.subr.bf16.mxu0 0
        %2291 = vmatpush2.bf16.msra.mxu0 0
        %2292 = vmatprep.subr.bf16.mxu0 0
        %2293 = vmatpush2.bf16.msra.mxu0 0
        %2294 = vmatprep.subr.bf16.mxu0 0
        %2295 = vmatpush2.bf16.msra.mxu0 0
        %2296 = vmatprep.subr.bf16.mxu0 0
        %2297 = vmatpush2.bf16.msra.mxu0 0
        %2298 = vmatprep.subr.bf16.mxu0 0
        %2299 = vmatpush2.bf16.msra.mxu0 0
        %2300 = vmatprep.subr.bf16.mxu0 0
        %2301 = vmatpush2.bf16.msra.mxu0 0
        %2302 = vmatprep.mubr.bf16.mxu0 0
        %2303 = vmatmul.mubr.bf16.gmra.mxu0 %v2268
        %v2304 = vpop.f32.mrf.mxu0
        %v2305 = vadd.f32 0.0, %v2304
        %v2306 = vpop.f32.mrf.mxu0
        %v2307 = vpop.f32.mrf.mxu0
        %v2308 = vpop.f32.mrf.mxu0
        %2309 = vdwg.mxu0
        %2311 = vrot.lane.b32.xlu0 %v2305, 24
        %v2312 = vpop.permute.xlu0 %2311
        %2314 = vst.msk [vmem:[#allocation2] sm:$0xff] %vm1620, %v2312
        %v2315 = vld [vmem:[#allocation2] sm:$0xff]
        %v2316 = vpack.c.bf16 %v2315, %v2315
        %v2317 = vld [vmem:[#allocation23] sm:$0xf]
        %v2318 = vld [vmem:[#allocation23 + $0x4] sm:$0xf]
        %v2319 = vld [vmem:[#allocation23 + $0x8] sm:$0xf]
        %v2320 = vld [vmem:[#allocation23 + $0xc] sm:$0xf]
        %v2325 = vunpack.c.l.b16 %v2317
        %v2326 = vunpack.c.l.b16 %v2318
        %v2327 = vunpack.c.l.b16 %v2319
        %v2328 = vunpack.c.l.b16 %v2320
        %v2329 = vpack.c.b16 %v2326, %v2325
        %v2330 = vpack.c.b16 %v2328, %v2327
        %v2334 = vsel %vm1057, %v2316, 0
        %2336 = vmatprep.subr.bf16.mxu0 0
        %2337 = vmatpush1.bf16.msra.mxu0 0
        %2338 = vmatprep.subr.bf16.mxu0 0
        %2339 = vmatpush1.bf16.msra.mxu0 0
        %2340 = vmatprep.subr.bf16.mxu0 0
        %2341 = vmatpush1.bf16.msra.mxu0 0
        %2342 = vmatprep.subr.bf16.mxu0 0
        %2343 = vmatpush1.bf16.msra.mxu0 0
        %2344 = vmatprep.subr.bf16.mxu0 0
        %2345 = vmatpush1.bf16.msra.mxu0 0
        %2346 = vmatprep.subr.bf16.mxu0 0
        %2347 = vmatpush1.bf16.msra.mxu0 0
        %2348 = vmatprep.subr.bf16.mxu0 0
        %2349 = vmatpush1.bf16.msra.mxu0 %v2330
        %2350 = vmatprep.subr.bf16.mxu0 0
        %2351 = vmatpush1.bf16.msra.mxu0 %v2329
        %2352 = vmatprep.subr.bf16.mxu0 0
        %2353 = vmatpush2.bf16.msra.mxu0 0
        %2354 = vmatprep.subr.bf16.mxu0 0
        %2355 = vmatpush2.bf16.msra.mxu0 0
        %2356 = vmatprep.subr.bf16.mxu0 0
        %2357 = vmatpush2.bf16.msra.mxu0 0
        %2358 = vmatprep.subr.bf16.mxu0 0
        %2359 = vmatpush2.bf16.msra.mxu0 0
        %2360 = vmatprep.subr.bf16.mxu0 0
        %2361 = vmatpush2.bf16.msra.mxu0 0
        %2362 = vmatprep.subr.bf16.mxu0 0
        %2363 = vmatpush2.bf16.msra.mxu0 0
        %2364 = vmatprep.subr.bf16.mxu0 0
        %2365 = vmatpush2.bf16.msra.mxu0 0
        %2366 = vmatprep.subr.bf16.mxu0 0
        %2367 = vmatpush2.bf16.msra.mxu0 0
        %2368 = vmatprep.mubr.bf16.mxu0 0
        %2369 = vmatmul.mubr.bf16.gmra.mxu0 %v2334
        %v2370 = vpop.f32.mrf.mxu0
        %v2371 = vadd.f32 0.0, %v2370
        %v2372 = vpop.f32.mrf.mxu0
        %v2373 = vpop.f32.mrf.mxu0
        %v2374 = vpop.f32.mrf.mxu0
        %2375 = vdwg.mxu0
        %v2376 = vadd.f32 %v1691, %v2371
        %v2377 = vld [vmem:[#allocation24] sm:$0x1]
        %v2379 = vlaneseq
        %v2380 = vshrl.u32 %v2379, 7
        %v2381 = vsub.s32 0, %v2380
        %v2382 = vrot.slane %v2377, %v2381
        %v2384 = vadd.f32 %v2376, %v2382
        %v2385 = vld [vmem:[#allocation26] sm:$0x1]
        %v2386 = vld [vmem:[#allocation27] sm:$0x1]
        %v2387 = vsel %vm1057, %v2384, 0.0
        %2388 = vadd.xlane.f32.xlu0 %v2387
        %v2389 = vpop.xlane.xlu0 %2388
        %v2390 = vmul.f32 %v2389, %v1061
        %v2391 = vsub.f32 %v2384, %v2390
        %v2392 = vmul.f32 %v2391, %v2391
        %v2393 = vsel %vm1057, %v2392, 0.0
        %2394 = vadd.xlane.f32.xlu0 %v2393
        %v2395 = vpop.xlane.xlu0 %2394
        %v2396 = vmul.f32 %v2395, %v1061
        %v2397 = vadd.f32 %v2396, 1e-05
        %v2398 = vrsqrt.pop %v2397
        %v2399 = vmul.f32 %v2391, %v2398
        %v2401 = vlaneseq
        %v2402 = vshrl.u32 %v2401, 7
        %v2403 = vsub.s32 0, %v2402
        %v2404 = vrot.slane %v2385, %v2403
        %v2406 = vmul.f32 %v2399, %v2404
        %v2408 = vlaneseq
        %v2409 = vshrl.u32 %v2408, 7
        %v2410 = vsub.s32 0, %v2409
        %v2411 = vrot.slane %v2386, %v2410
        %v2413 = vadd.f32 %v2406, %v2411
        %v2414 = vpack.c.bf16 %v2413, %v2413
        %v2415 = vld [vmem:[#allocation29] sm:$0xf]
        %v2416 = vld [vmem:[#allocation29 + $0x4] sm:$0xf]
        %v2417 = vld [vmem:[#allocation29 + $0x8] sm:$0xf]
        %v2418 = vld [vmem:[#allocation29 + $0xc] sm:$0xf]
        %v2419 = vld [vmem:[#allocation30] sm:$0x1]
        %v2421 = vlaneseq
        %v2422 = vshrl.u32 %v2421, 7
        %v2423 = vsub.s32 0, %v2422
        %v2424 = vrot.slane %v2419, %v2423
        %v2430 = vunpack.c.l.b16 %v2415
        %v2431 = vunpack.c.l.b16 %v2416
        %v2432 = vunpack.c.l.b16 %v2417
        %v2433 = vunpack.c.l.b16 %v2418
        %v2434 = vpack.c.b16 %v2431, %v2430
        %v2435 = vpack.c.b16 %v2433, %v2432
        %v2439 = vsel %vm1057, %v2414, 0
        %2441 = vmatprep.subr.bf16.mxu0 0
        %2442 = vmatpush1.bf16.msra.mxu0 0
        %2443 = vmatprep.subr.bf16.mxu0 0
        %2444 = vmatpush1.bf16.msra.mxu0 0
        %2445 = vmatprep.subr.bf16.mxu0 0
        %2446 = vmatpush1.bf16.msra.mxu0 0
        %2447 = vmatprep.subr.bf16.mxu0 0
        %2448 = vmatpush1.bf16.msra.mxu0 0
        %2449 = vmatprep.subr.bf16.mxu0 0
        %2450 = vmatpush1.bf16.msra.mxu0 0
        %2451 = vmatprep.subr.bf16.mxu0 0
        %2452 = vmatpush1.bf16.msra.mxu0 0
        %2453 = vmatprep.subr.bf16.mxu0 0
        %2454 = vmatpush1.bf16.msra.mxu0 %v2435
        %2455 = vmatprep.subr.bf16.mxu0 0
        %2456 = vmatpush1.bf16.msra.mxu0 %v2434
        %2457 = vmatprep.subr.bf16.mxu0 0
        %2458 = vmatpush2.bf16.msra.mxu0 0
        %2459 = vmatprep.subr.bf16.mxu0 0
        %2460 = vmatpush2.bf16.msra.mxu0 0
        %2461 = vmatprep.subr.bf16.mxu0 0
        %2462 = vmatpush2.bf16.msra.mxu0 0
        %2463 = vmatprep.subr.bf16.mxu0 0
        %2464 = vmatpush2.bf16.msra.mxu0 0
        %2465 = vmatprep.subr.bf16.mxu0 0
        %2466 = vmatpush2.bf16.msra.mxu0 0
        %2467 = vmatprep.subr.bf16.mxu0 0
        %2468 = vmatpush2.bf16.msra.mxu0 0
        %2469 = vmatprep.subr.bf16.mxu0 0
        %2470 = vmatpush2.bf16.msra.mxu0 0
        %2471 = vmatprep.subr.bf16.mxu0 0
        %2472 = vmatpush2.bf16.msra.mxu0 0
        %2473 = vmatprep.mubr.bf16.mxu0 0
        %2474 = vmatmul.mubr.bf16.gmra.mxu0 %v2439
        %v2475 = vpop.f32.mrf.mxu0
        %v2476 = vadd.f32 %v2424, %v2475
        %v2477 = vpop.f32.mrf.mxu0
        %v2478 = vpop.f32.mrf.mxu0
        %v2479 = vpop.f32.mrf.mxu0
        %2480 = vdwg.mxu0
        %v2481 = vmax.f32 %v2476, 0.0
        %v2482 = vpack.c.bf16 %v2481, %v2481
        %v2483 = vld [vmem:[%s22] sm:$0xf]
        %v2484 = vld [vmem:[%s22 + $0x4] sm:$0xf]
        %v2485 = vld [vmem:[%s22 + $0x8] sm:$0xf]
        %v2486 = vld [vmem:[%s22 + $0xc] sm:$0xf]
        %v2487 = vld [vmem:[%s22 + $0x10] sm:$0xf]
        %v2488 = vld [vmem:[%s22 + $0x14] sm:$0xf]
        %v2489 = vld [vmem:[%s22 + $0x18] sm:$0xf]
        %v2490 = vld [vmem:[%s22 + $0x1c] sm:$0xf]
        %v2499 = vunpack.c.l.b16 %v2483
        %v2500 = vunpack.c.l.b16 %v2484
        %v2501 = vunpack.c.l.b16 %v2485
        %v2502 = vunpack.c.l.b16 %v2486
        %v2503 = vunpack.c.l.b16 %v2487
        %v2504 = vunpack.c.l.b16 %v2488
        %v2505 = vunpack.c.l.b16 %v2489
        %v2506 = vunpack.c.l.b16 %v2490
        %v2507 = vpack.c.b16 %v2500, %v2499
        %v2508 = vpack.c.b16 %v2502, %v2501
        %v2509 = vpack.c.b16 %v2504, %v2503
        %v2510 = vpack.c.b16 %v2506, %v2505
        %vm2515 = vcmask 523264
        %v2517 = vsel %vm2515, %v2482, 0
        %2519 = vmatprep.subr.bf16.mxu0 0
        %2520 = vmatpush1.bf16.msra.mxu0 0
        %2521 = vmatprep.subr.bf16.mxu0 0
        %2522 = vmatpush1.bf16.msra.mxu0 0
        %2523 = vmatprep.subr.bf16.mxu0 0
        %2524 = vmatpush1.bf16.msra.mxu0 0
        %2525 = vmatprep.subr.bf16.mxu0 0
        %2526 = vmatpush1.bf16.msra.mxu0 0
        %2527 = vmatprep.subr.bf16.mxu0 0
        %2528 = vmatpush1.bf16.msra.mxu0 %v2510
        %2529 = vmatprep.subr.bf16.mxu0 0
        %2530 = vmatpush1.bf16.msra.mxu0 %v2509
        %2531 = vmatprep.subr.bf16.mxu0 0
        %2532 = vmatpush1.bf16.msra.mxu0 %v2508
        %2533 = vmatprep.subr.bf16.mxu0 0
        %2534 = vmatpush1.bf16.msra.mxu0 %v2507
        %2535 = vmatprep.subr.bf16.mxu0 0
        %2536 = vmatpush2.bf16.msra.mxu0 0
        %2537 = vmatprep.subr.bf16.mxu0 0
        %2538 = vmatpush2.bf16.msra.mxu0 0
        %2539 = vmatprep.subr.bf16.mxu0 0
        %2540 = vmatpush2.bf16.msra.mxu0 0
        %2541 = vmatprep.subr.bf16.mxu0 0
        %2542 = vmatpush2.bf16.msra.mxu0 0
        %2543 = vmatprep.subr.bf16.mxu0 0
        %2544 = vmatpush2.bf16.msra.mxu0 0
        %2545 = vmatprep.subr.bf16.mxu0 0
        %2546 = vmatpush2.bf16.msra.mxu0 0
        %2547 = vmatprep.subr.bf16.mxu0 0
        %2548 = vmatpush2.bf16.msra.mxu0 0
        %2549 = vmatprep.subr.bf16.mxu0 0
        %2550 = vmatpush2.bf16.msra.mxu0 0
        %2551 = vmatprep.mubr.bf16.mxu0 0
        %2552 = vmatmul.mubr.bf16.gmra.mxu0 %v2517
        %v2553 = vpop.f32.mrf.mxu0
        %v2554 = vadd.f32 0.0, %v2553
        %v2555 = vpop.f32.mrf.mxu0
        %v2556 = vpop.f32.mrf.mxu0
        %v2557 = vpop.f32.mrf.mxu0
        %2558 = vdwg.mxu0
        %v2559 = vadd.f32 %v2384, %v2554
        %v2560 = vld [vmem:[#allocation32] sm:$0x1]
        %v2562 = vlaneseq
        %v2563 = vshrl.u32 %v2562, 7
        %v2564 = vsub.s32 0, %v2563
        %v2565 = vrot.slane %v2560, %v2564
        %v2567 = vadd.f32 %v2559, %v2565
        %2568 = vst.msk [vmem:[%s1037] sm:$0xff] %vm1057, %v2567
        %s2569 = sand.u32 %s584, 1
        %s2570 = scalar_lea.sflag [#allocation5], %s2569
        %s2571 = sand.u32 %s584, 1
        %s2572 = smul.addr %s2571, 8
        %s2573 = scalar_lea.vmem [#allocation33], %s2572
        // Predicated region
        $region193: #{decoder_block.1} parent=115 // pred_check
          %p2574 = pneg %p594
        $region194: #{decoder_block.1} parent=115 // pred_check_branch
          %2576 = sbr.rel (%p2574) target = $region196
        $region195: #{decoder_block.1} parent=115 // pred_region
          %s2578 = ssub.s32 128, 128
          %2579 = vsyncadd %s2570, %s2578
          %s2580 = smul.addr %s52, 128
          %s2581 = scalar_lea.hbm %s24, %s2580
          %s2583 = sshll.u32 %s2573, 4
          %s2584 = int_to_ptr.vmem [resolvable:$true] %s2583
          %2586 = dma.vmem_to_hbm [thread:$0]  %s2584, 128, %s2581, %s2570
        $region196: #{decoder_block.1} parent=115 // pred_fallthru
          _
      $region116: #{decoder_block.1} parent=5 // pred_fallthru
        _
      %p2587 = scmp.le.s32.totalorder 2, %s47
      // Predicated region
      $region197: #{decoder_block.1} parent=5 // pred_check
        %p2588 = pneg %p2587
      $region198: #{decoder_block.1} parent=5 // pred_check_branch
        %2590 = sbr.rel (%p2588) target = $region200
      $region199: #{decoder_block.1} parent=5 // pred_region
        %s2591 = ssub.s32 %s47, 2
        // Predicated region
        $region201: #{decoder_block.1} parent=199 // pred_check
          %p2592 = pneg %p600
        $region202: #{decoder_block.1} parent=199 // pred_check_branch
          %2594 = sbr.rel (%p2592) target = $region204
        $region203: #{decoder_block.1} parent=199 // pred_region
          %s2595 = sand.u32 %s585, 1
          %s2596 = scalar_lea.sflag [#allocation5], %s2595
          %s2597 = sand.u32 %s585, 1
          %s2598 = smul.addr %s2597, 8
          %s2599 = scalar_lea.vmem [#allocation33], %s2598
          %2600 = dma.done %s2596, 128
        $region204: #{decoder_block.1} parent=199 // pred_fallthru
          _
      $region200: #{decoder_block.1} parent=5 // pred_fallthru
        _
    $region6: #{decoder_block.1} parent=1 // loop_footer
      %s51 = sadd.s32 1, %s47
    $region7: #{decoder_block.1} parent=1 // loop_footer_branch
      %46 = sbr.rel target = $region3
    $region8: #{decoder_block.1} parent=1 // loop_exit
      _
    %2601 = vsyncpa [#allocation4], 1
    %s2602 = scalar_lea.sflag [#allocation4], 1
    %2603 = vsyncpa %s2602, 1
    %2604 = vsyncpa [#allocation7], 1
    %s2605 = scalar_lea.sflag [#allocation7], 1
    %2606 = vsyncpa %s2605, 1
    %2607 = vsyncpa [#allocation10], 1
    %2608 = vsyncpa [#allocation13], 1
    %2609 = vsyncpa [#allocation16], 1
    %2610 = vsyncpa [#allocation19], 1
    %2611 = vsyncpa [#allocation22], 1
    %2612 = vsyncpa [#allocation25], 1
    %2613 = vsyncpa [#allocation28], 1
    %2614 = vsyncpa [#allocation31], 1
    %2615 = vsyncpa [#allocation5], 1
    %s2616 = scalar_lea.sflag [#allocation5], 1
    %2617 = vsyncpa %s2616, 1

</llo_original>
